<compile_context>
chip_gen: v6e
topology: v6e:2x2x1
jax: 0.10.0
libtpu: 0.0.40
codegen_flags: <defaults>
</compile_context>

<pallas_src>
import math
import functools

import jax
import jax.numpy as jnp
from jax import lax
from jax.experimental import pallas as pl


# ---------------------------------------------------------------------------
# fused kernel: DiffusionEmbedding + CondUpsampler prologue, then the full
# channels-first residual stack and the skip / final output projections.
# ---------------------------------------------------------------------------
def _eps_theta_kernel(
        loc_ref, emb_ref, cond_ref, x_ref,
        p1w_ref, p1b_ref, p2w_ref, p2b_ref, dpw_ref, dpb_ref,
        l1w_ref, l1b_ref, n1g_ref, n1b_ref,
        vw_ref, vb_ref, ow_ref, ob_ref,
        n2g_ref, n2b_ref, l2w_ref, l2b_ref,
        inpw_ref, inpb_ref,
        condw_ref, condb_ref,
        dilw_ref, dilb_ref,
        outw_ref, outb_ref,
        skipw_ref, skipb_ref,
        finw_ref, finb_ref,
        o_ref,
        *, num_layers, channels, length, batch, padded_cols, dilation_cycle, eps):
    f32 = jnp.float32
    C, L, NL, B = channels, length, num_layers, batch
    BL, BLp = B * L, padded_cols

    def silu(y):
        return y * jax.nn.sigmoid(y)

    def leaky(y):                                  # F.leaky_relu(y, 0.4)
        return jnp.where(y >= 0.0, y, 0.4 * y)

    def layernorm(y, g, b):                        # nn.LayerNorm over last dim
        mu = jnp.mean(y, axis=-1, keepdims=True)
        yc = y - mu
        var = jnp.mean(yc * yc, axis=-1, keepdims=True)
        return yc * lax.rsqrt(var + eps) * g + b

    # ---- prologue A: DiffusionEmbedding MLP + stacked per-layer diffusion
    #      projections (one (NL*C, 1) channels-first column for the whole stack).
    e = emb_ref[...]                                                       # (1, 2*Dt)
    d = silu(jnp.dot(e, p1w_ref[...], preferred_element_type=f32) + p1b_ref[...])
    d = silu(jnp.dot(d, p2w_ref[...], preferred_element_type=f32) + p2b_ref[...])  # (1, H)
    # row (layer*C + c) of dp_w is that layer's Linear(H, C) weight row for
    # channel c; a broadcast multiply + lane reduce avoids an N=1 matmul.
    dp_col = (jnp.sum(dpw_ref[...] * d, axis=-1, keepdims=True)
              + dpb_ref[...])                                              # (NL*C, 1)

    # ---- prologue B: CondUpsampler (row form, hidden=256 on the lane axis)
    c = jnp.dot(cond_ref[...], l1w_ref[...], preferred_element_type=f32) + l1b_ref[...]
    c = leaky(layernorm(c, n1g_ref[...], n1b_ref[...]))                    # (B, 256)
    identity = c
    # CrossAttention(x, x) with seq_len == 1: softmax over one key is 1 and the
    # head split/merge is the identity, so attention(x, x) == to_out(to_v(x)).
    v = jnp.dot(c, vw_ref[...], preferred_element_type=f32) + vb_ref[...]
    a = jnp.dot(v, ow_ref[...], preferred_element_type=f32) + ob_ref[...]
    h = layernorm(a + identity, n2g_ref[...], n2b_ref[...])
    cond_bl = leaky(jnp.dot(h, l2w_ref[...], preferred_element_type=f32)
                    + l2b_ref[...])                                        # (B, L)

    # fold batch onto the LANE axis: one lane-dense conditioner row (1, BLp).
    pieces = [cond_bl[b:b + 1, :] for b in range(B)]
    if BLp > BL:
        pieces.append(jnp.zeros((1, BLp - BL), f32))
    cond_row = jnp.concatenate(pieces, axis=1) if len(pieces) > 1 else pieces[0]

    # ---- residual stack, channels-first: C on sublanes, B*L (lane-padded to a
    #      multiple of 128) on lanes.  Padding lanes carry finite junk and are
    #      never read by the output.
    loc = loc_ref[...]                                                     # (1, BLp) int32
    x_row = x_ref[...]                                                     # (1, BLp)

    # input_projection Conv1d(1, C, 1) + relu
    x = jnp.maximum(inpw_ref[...] * x_row + inpb_ref[...], 0.0)            # (C, BLp)

    skip_sum = jnp.zeros((C, BLp), f32)
    inv_sqrt2 = 1.0 / math.sqrt(2.0)

    # NL is small (8): fully unrolled (equivalent to lax.fori_loop(unroll=True));
    # all per-layer weights come from static leading-axis ref views inside the
    # layer body, so live values across the loop are just x / skip_sum /
    # cond_row / dp_col / loc.
    for layer in range(NL):
        dil = 2 ** (layer % dilation_cycle)

        dp_l = dp_col[layer * C:(layer + 1) * C, :]                        # (C, 1)
        y = x + dp_l                                                       # (C, BLp)

        # dilated Conv1d(C, 2C, 3, padding=dil, dilation=dil): shifted taps as
        # lane shifts, masked at sequence edges / folded batch boundaries —
        # identical to the conv's zero padding for any dilation.
        zpad = jnp.zeros((C, dil), f32)
        y_m = jnp.where(loc >= dil,
                        jnp.concatenate([zpad, y[:, :BLp - dil]], axis=1),
                        0.0)                                               # y[l - dil]
        y_p = jnp.where(loc < L - dil,
                        jnp.concatenate([y[:, dil:], zpad], axis=1),
                        0.0)                                               # y[l + dil]

        # conditioner_projection Conv1d(1, 2C, 1): per-layer broadcast FMA
        cpart = condw_ref[layer] * cond_row + condb_ref[layer]             # (2C, BLp)

        y2 = (jnp.dot(dilw_ref[3 * layer + 0], y_m, preferred_element_type=f32)
              + jnp.dot(dilw_ref[3 * layer + 1], y, preferred_element_type=f32)
              + jnp.dot(dilw_ref[3 * layer + 2], y_p, preferred_element_type=f32)
              + dilb_ref[layer] + cpart)                                   # (2C, BLp)

        z = jax.nn.sigmoid(y2[:C, :]) * jnp.tanh(y2[C:, :])                # (C, BLp)

        # output_projection Conv1d(C, 2C, 1)
        y4 = (jnp.dot(outw_ref[layer], z, preferred_element_type=f32)
              + outb_ref[layer])                                           # (2C, BLp)
        x = (x + y4[:C, :]) * inv_sqrt2
        skip_sum = skip_sum + y4[C:, :]

    # skip_projection + relu + final output_projection
    xs = skip_sum * (1.0 / math.sqrt(NL))
    xs = jnp.maximum(jnp.dot(skipw_ref[...], xs, preferred_element_type=f32)
                     + skipb_ref[...], 0.0)                                # (C, BLp)
    o_ref[...] = (jnp.dot(finw_ref[...], xs, preferred_element_type=f32)
                  + finb_ref[...])                                         # (1, BLp)


# ---------------------------------------------------------------------------
# parameter init (deterministic, synthetic) in the kernel's layouts
# ---------------------------------------------------------------------------
def init_params(key, cfg):
    C = cfg["residual_channels"]
    NL = cfg["residual_layers"]
    H = cfg["residual_hidden"]
    Dt = cfg["time_emb_dim"]
    Ld = cfg["target_dim"]
    Lc = cfg["cond_length"]
    hidden = 256                       # CondUpsampler hidden dim (hard-coded in module)

    keys = jax.random.split(key, 40)
    it = iter(keys)

    def w(shape, scale=0.1):
        return scale * jax.random.normal(next(it), shape, dtype=jnp.float32)

    return {
        # DiffusionEmbedding Linear layers, stored (in, out); biases as (1, N) rows
        "de_p1_w": w((2 * Dt, H)), "de_p1_b": w((1, H)),
        "de_p2_w": w((H, H)),      "de_p2_b": w((1, H)),
        # per-layer diffusion_projection Linear(H, C), stacked channels-first:
        # row layer*C + c is that layer's weight row for channel c.
        "dp_w": w((NL * C, H)), "dp_b": w((NL * C, 1)),
        # CondUpsampler (to_q / to_k omitted: dead for seq_len == 1)
        "cu_l1_w": w((Lc, hidden)), "cu_l1_b": w((1, hidden)),
        "cu_n1_g": jnp.ones((1, hidden), jnp.float32),
        "cu_n1_b": jnp.zeros((1, hidden), jnp.float32),
        "cu_v_w": w((hidden, hidden)), "cu_v_b": w((1, hidden)),
        "cu_o_w": w((hidden, hidden)), "cu_o_b": w((1, hidden)),
        "cu_n2_g": jnp.ones((1, hidden), jnp.float32),
        "cu_n2_b": jnp.zeros((1, hidden), jnp.float32),
        "cu_l2_w": w((hidden, Ld)), "cu_l2_b": w((1, Ld)),
        # input_projection Conv1d(1, C, 1): channels-first column
        "inp_w": w((C, 1)), "inp_b": w((C, 1)),
        # per-layer conditioner_projection Conv1d(1, 2C, 1)
        "cond_w": w((NL, 2 * C, 1)), "cond_b": w((NL, 2 * C, 1)),
        # per-layer dilated Conv1d(C, 2C, 3): index 3*layer + tap, taps ordered
        # (l-d, l, l+d), each a (2C_out, C_in) matrix.
        "dil_w": w((NL * 3, 2 * C, C)), "dil_b": w((NL, 2 * C, 1)),
        # per-layer output_projection Conv1d(C, 2C, 1): (2C_out, C_in)
        "out_w": w((NL, 2 * C, C)), "out_b": w((NL, 2 * C, 1)),
        # skip_projection Conv1d(C, C, 1) and final output_projection Conv1d(C, 1, 1)
        "skip_w": w((C, C)), "skip_b": w((C, 1)),
        "fin_w": w((1, C)), "fin_b": w((1, 1)),
    }


# ---------------------------------------------------------------------------
# model forward (tiny glue in JAX, all compute in the single Pallas kernel)
# ---------------------------------------------------------------------------
def build_embedding_table(dim, max_steps):
    steps = jnp.arange(max_steps, dtype=jnp.float32)[:, None]
    dims = jnp.arange(dim, dtype=jnp.float32)[None, :]
    table = steps * 10.0 ** (dims * 4.0 / dim)     # matches the torch module exactly
    return jnp.concatenate([jnp.sin(table), jnp.cos(table)], axis=1)


def epsilon_theta_cond_forward(params, x, time_step, condition, cfg):
    p = params
    B, _, L = x.shape
    C = cfg["residual_channels"]
    NL = cfg["residual_layers"]
    Dt = cfg["time_emb_dim"]
    Ld = cfg["target_dim"]
    assert L == Ld, "input length must equal target_dim (required by the torch model)"

    BL = B * L
    BLp = ((BL + 127) // 128) * 128        # lane-pad the folded batch*length axis

    # diffusion-step sinusoidal table lookup (glue); time is a scalar in the
    # torch model (time.item()), shared across the batch.
    table = build_embedding_table(Dt, max_steps=400)                    # T = 400
    emb_row = table[time_step][None, :]                                 # (1, 2*Dt)

    cond2d = condition[:, 0, :]                                         # (B, Lc)

    # noisy input folded to one lane-dense row: lane b*L + l == (batch b, pos l)
    x_row = jnp.zeros((1, BLp), jnp.float32).at[:, :BL].set(x[:, 0, :].reshape(1, BL))

    # static per-batch local position of every lane (constant, built in XLA)
    loc = jnp.concatenate([jnp.tile(jnp.arange(L, dtype=jnp.int32), B),
                           jnp.full((BLp - BL,), L, dtype=jnp.int32)])[None, :]

    kernel = functools.partial(
        _eps_theta_kernel, num_layers=NL, channels=C, length=L, batch=B,
        padded_cols=BLp, dilation_cycle=cfg["dilation_cycle_length"], eps=1e-5)

    # Single fused, grid-free pallas_call: all weights + activations stay
    # resident in VMEM (well under 1 MiB padded); one launch, no HBM
    # round-trips for the dp / conditioner intermediates.
    # TODO(synk): on v7x (2 TensorCores) a grid=(B,) with
    #   dimension_semantics=("parallel",) over the batch would use both cores;
    #   kept grid-free here since v5e/v6e have one core and B is tiny.
    out_row = pl.pallas_call(
        kernel,
        out_shape=jax.ShapeDtypeStruct((1, BLp), jnp.float32),
    )(loc, emb_row, cond2d, x_row,
      p["de_p1_w"], p["de_p1_b"], p["de_p2_w"], p["de_p2_b"],
      p["dp_w"], p["dp_b"],
      p["cu_l1_w"], p["cu_l1_b"], p["cu_n1_g"], p["cu_n1_b"],
      p["cu_v_w"], p["cu_v_b"], p["cu_o_w"], p["cu_o_b"],
      p["cu_n2_g"], p["cu_n2_b"], p["cu_l2_w"], p["cu_l2_b"],
      p["inp_w"], p["inp_b"],
      p["cond_w"], p["cond_b"],
      p["dil_w"], p["dil_b"],
      p["out_w"], p["out_b"],
      p["skip_w"], p["skip_b"],
      p["fin_w"], p["fin_b"])

    return out_row[:, :BL].reshape(B, 1, L)                             # back to NCL


# ---------------------------------------------------------------------------
if __name__ == "__main__":
    cfg = dict(target_dim=24, cond_length=48, time_emb_dim=32,
               residual_layers=8, residual_channels=8,
               dilation_cycle_length=2, residual_hidden=64)
    B = 2

    key = jax.random.PRNGKey(0)
    kx, kc = jax.random.split(key)
    x = jax.random.normal(kx, (B, 1, cfg["target_dim"]), dtype=jnp.float32)       # noisy input
    condition = jax.random.normal(kc, (B, 1, cfg["cond_length"]), dtype=jnp.float32)
    time_step = 17  # scalar diffusion step (torch calls .item())

    params = init_params(jax.random.PRNGKey(1234), cfg)

    fwd = jax.jit(functools.partial(epsilon_theta_cond_forward, cfg=cfg))
    out = jax.block_until_ready(fwd(params, x, time_step, condition))

    assert out.shape == (B, 1, cfg["target_dim"])
    assert bool(jnp.all(jnp.isfinite(out)))
    print("KERNEL_OK")
</pallas_src>

<mosaic_0001>
module attributes {stable_mosaic.version = 11 : i64} {
  func.func @_eps_theta_kernel(%arg0: memref<1x128xi32, #tpu.memory_space<vmem>>, %arg1: memref<1x64xf32, #tpu.memory_space<vmem>>, %arg2: memref<2x48xf32, #tpu.memory_space<vmem>>, %arg3: memref<1x128xf32, #tpu.memory_space<vmem>>, %arg4: memref<64x64xf32, #tpu.memory_space<vmem>>, %arg5: memref<1x64xf32, #tpu.memory_space<vmem>>, %arg6: memref<64x64xf32, #tpu.memory_space<vmem>>, %arg7: memref<1x64xf32, #tpu.memory_space<vmem>>, %arg8: memref<64x64xf32, #tpu.memory_space<vmem>>, %arg9: memref<64x1xf32, #tpu.memory_space<vmem>>, %arg10: memref<48x256xf32, #tpu.memory_space<vmem>>, %arg11: memref<1x256xf32, #tpu.memory_space<vmem>>, %arg12: memref<1x256xf32, #tpu.memory_space<vmem>>, %arg13: memref<1x256xf32, #tpu.memory_space<vmem>>, %arg14: memref<256x256xf32, #tpu.memory_space<vmem>>, %arg15: memref<1x256xf32, #tpu.memory_space<vmem>>, %arg16: memref<256x256xf32, #tpu.memory_space<vmem>>, %arg17: memref<1x256xf32, #tpu.memory_space<vmem>>, %arg18: memref<1x256xf32, #tpu.memory_space<vmem>>, %arg19: memref<1x256xf32, #tpu.memory_space<vmem>>, %arg20: memref<256x24xf32, #tpu.memory_space<vmem>>, %arg21: memref<1x24xf32, #tpu.memory_space<vmem>>, %arg22: memref<8x1xf32, #tpu.memory_space<vmem>>, %arg23: memref<8x1xf32, #tpu.memory_space<vmem>>, %arg24: memref<8x16x1xf32, #tpu.memory_space<vmem>>, %arg25: memref<8x16x1xf32, #tpu.memory_space<vmem>>, %arg26: memref<24x16x8xf32, #tpu.memory_space<vmem>>, %arg27: memref<8x16x1xf32, #tpu.memory_space<vmem>>, %arg28: memref<8x16x8xf32, #tpu.memory_space<vmem>>, %arg29: memref<8x16x1xf32, #tpu.memory_space<vmem>>, %arg30: memref<8x8xf32, #tpu.memory_space<vmem>>, %arg31: memref<8x1xf32, #tpu.memory_space<vmem>>, %arg32: memref<1x8xf32, #tpu.memory_space<vmem>>, %arg33: memref<1x1xf32, #tpu.memory_space<vmem>>, %arg34: memref<1x128xf32, #tpu.memory_space<vmem>>) attributes {dimension_semantics = [], scalar_prefetch = 0 : i64, scratch_operands = 0 : i64, tpu.core_type = #tpu.core_type<tc>} {
    %c0 = arith.constant 0 : index
    %c0_0 = arith.constant 0 : index
    %0 = vector.load %arg1[%c0, %c0_0] : memref<1x64xf32, #tpu.memory_space<vmem>>, vector<1x64xf32>
    %c0_1 = arith.constant 0 : index
    %c0_2 = arith.constant 0 : index
    %1 = vector.load %arg4[%c0_1, %c0_2] : memref<64x64xf32, #tpu.memory_space<vmem>>, vector<64x64xf32>
    %cst = arith.constant dense<0.000000e+00> : vector<1x64xf32>
    %2 = tpu.matmul %0, %1, %cst {dimension_numbers = #tpu.dot_dimension_numbers<[1], [0], [0], [1], [0, 0, 1, 1], [], []>} : vector<1x64xf32>, vector<64x64xf32>, vector<1x64xf32> -> vector<1x64xf32>
    %c0_3 = arith.constant 0 : index
    %c0_4 = arith.constant 0 : index
    %3 = vector.load %arg5[%c0_3, %c0_4] : memref<1x64xf32, #tpu.memory_space<vmem>>, vector<1x64xf32>
    %4 = arith.addf %2, %3 : vector<1x64xf32>
    %5 = arith.negf %4 : vector<1x64xf32>
    %6 = math.exp %5 : vector<1x64xf32>
    %cst_5 = arith.constant 1.000000e+00 : f32
    %7 = vector.broadcast %cst_5 : f32 to vector<1x64xf32>
    %8 = arith.addf %7, %6 : vector<1x64xf32>
    %9 = arith.divf %7, %8 : vector<1x64xf32>
    %10 = arith.mulf %4, %9 : vector<1x64xf32>
    %c0_6 = arith.constant 0 : index
    %c0_7 = arith.constant 0 : index
    %11 = vector.load %arg6[%c0_6, %c0_7] : memref<64x64xf32, #tpu.memory_space<vmem>>, vector<64x64xf32>
    %cst_8 = arith.constant dense<0.000000e+00> : vector<1x64xf32>
    %12 = tpu.matmul %10, %11, %cst_8 {dimension_numbers = #tpu.dot_dimension_numbers<[1], [0], [0], [1], [0, 0, 1, 1], [], []>} : vector<1x64xf32>, vector<64x64xf32>, vector<1x64xf32> -> vector<1x64xf32>
    %c0_9 = arith.constant 0 : index
    %c0_10 = arith.constant 0 : index
    %13 = vector.load %arg7[%c0_9, %c0_10] : memref<1x64xf32, #tpu.memory_space<vmem>>, vector<1x64xf32>
    %14 = arith.addf %12, %13 : vector<1x64xf32>
    %15 = arith.negf %14 : vector<1x64xf32>
    %16 = math.exp %15 : vector<1x64xf32>
    %cst_11 = arith.constant 1.000000e+00 : f32
    %17 = vector.broadcast %cst_11 : f32 to vector<1x64xf32>
    %18 = arith.addf %17, %16 : vector<1x64xf32>
    %19 = arith.divf %17, %18 : vector<1x64xf32>
    %20 = arith.mulf %14, %19 : vector<1x64xf32>
    %c0_12 = arith.constant 0 : index
    %c0_13 = arith.constant 0 : index
    %21 = vector.load %arg8[%c0_12, %c0_13] : memref<64x64xf32, #tpu.memory_space<vmem>>, vector<64x64xf32>
    %22 = vector.broadcast %20 : vector<1x64xf32> to vector<64x64xf32>
    %23 = arith.mulf %21, %22 : vector<64x64xf32>
    %cst_14 = arith.constant dense<0.000000e+00> : vector<64xf32>
    %24 = vector.multi_reduction <add>, %23, %cst_14 [1] : vector<64x64xf32> to vector<64xf32>
    %25 = vector.shape_cast %24 : vector<64xf32> to vector<64x1xf32>
    %c0_15 = arith.constant 0 : index
    %c0_16 = arith.constant 0 : index
    %26 = vector.load %arg9[%c0_15, %c0_16] : memref<64x1xf32, #tpu.memory_space<vmem>>, vector<64x1xf32>
    %27 = arith.addf %25, %26 : vector<64x1xf32>
    %c0_17 = arith.constant 0 : index
    %c0_18 = arith.constant 0 : index
    %28 = vector.load %arg2[%c0_17, %c0_18] : memref<2x48xf32, #tpu.memory_space<vmem>>, vector<2x48xf32>
    %c0_19 = arith.constant 0 : index
    %c0_20 = arith.constant 0 : index
    %29 = vector.load %arg10[%c0_19, %c0_20] : memref<48x256xf32, #tpu.memory_space<vmem>>, vector<48x256xf32>
    %cst_21 = arith.constant dense<0.000000e+00> : vector<2x256xf32>
    %30 = tpu.matmul %28, %29, %cst_21 {dimension_numbers = #tpu.dot_dimension_numbers<[1], [0], [0], [1], [0, 0, 1, 1], [], []>} : vector<2x48xf32>, vector<48x256xf32>, vector<2x256xf32> -> vector<2x256xf32>
    %c0_22 = arith.constant 0 : index
    %c0_23 = arith.constant 0 : index
    %31 = vector.load %arg11[%c0_22, %c0_23] : memref<1x256xf32, #tpu.memory_space<vmem>>, vector<1x256xf32>
    %32 = vector.broadcast %31 : vector<1x256xf32> to vector<2x256xf32>
    %33 = arith.addf %30, %32 : vector<2x256xf32>
    %c0_24 = arith.constant 0 : index
    %c0_25 = arith.constant 0 : index
    %34 = vector.load %arg12[%c0_24, %c0_25] : memref<1x256xf32, #tpu.memory_space<vmem>>, vector<1x256xf32>
    %c0_26 = arith.constant 0 : index
    %c0_27 = arith.constant 0 : index
    %35 = vector.load %arg13[%c0_26, %c0_27] : memref<1x256xf32, #tpu.memory_space<vmem>>, vector<1x256xf32>
    %cst_28 = arith.constant dense<0.000000e+00> : vector<2xf32>
    %36 = vector.multi_reduction <add>, %33, %cst_28 [1] : vector<2x256xf32> to vector<2xf32>
    %37 = vector.shape_cast %36 : vector<2xf32> to vector<2x1xf32>
    %cst_29 = arith.constant 2.560000e+02 : f32
    %38 = vector.broadcast %cst_29 : f32 to vector<2x1xf32>
    %39 = arith.divf %37, %38 : vector<2x1xf32>
    %40 = vector.broadcast %39 : vector<2x1xf32> to vector<2x256xf32>
    %41 = arith.subf %33, %40 : vector<2x256xf32>
    %42 = arith.mulf %41, %41 : vector<2x256xf32>
    %cst_30 = arith.constant dense<0.000000e+00> : vector<2xf32>
    %43 = vector.multi_reduction <add>, %42, %cst_30 [1] : vector<2x256xf32> to vector<2xf32>
    %44 = vector.shape_cast %43 : vector<2xf32> to vector<2x1xf32>
    %cst_31 = arith.constant 2.560000e+02 : f32
    %45 = vector.broadcast %cst_31 : f32 to vector<2x1xf32>
    %46 = arith.divf %44, %45 : vector<2x1xf32>
    %cst_32 = arith.constant 9.99999974E-6 : f32
    %47 = vector.broadcast %cst_32 : f32 to vector<2x1xf32>
    %48 = arith.addf %46, %47 : vector<2x1xf32>
    %49 = math.rsqrt %48 : vector<2x1xf32>
    %50 = vector.broadcast %49 : vector<2x1xf32> to vector<2x256xf32>
    %51 = arith.mulf %41, %50 : vector<2x256xf32>
    %52 = vector.broadcast %34 : vector<1x256xf32> to vector<2x256xf32>
    %53 = arith.mulf %51, %52 : vector<2x256xf32>
    %54 = vector.broadcast %35 : vector<1x256xf32> to vector<2x256xf32>
    %55 = arith.addf %53, %54 : vector<2x256xf32>
    %cst_33 = arith.constant 0.000000e+00 : f32
    %56 = vector.broadcast %cst_33 : f32 to vector<2x256xf32>
    %57 = arith.cmpf oge, %55, %56 : vector<2x256xf32>
    %cst_34 = arith.constant 4.000000e-01 : f32
    %58 = vector.broadcast %cst_34 : f32 to vector<2x256xf32>
    %59 = arith.mulf %58, %55 : vector<2x256xf32>
    %60 = arith.select %57, %55, %59 : vector<2x256xi1>, vector<2x256xf32>
    %c0_35 = arith.constant 0 : index
    %c0_36 = arith.constant 0 : index
    %61 = vector.load %arg14[%c0_35, %c0_36] : memref<256x256xf32, #tpu.memory_space<vmem>>, vector<256x256xf32>
    %cst_37 = arith.constant dense<0.000000e+00> : vector<2x256xf32>
    %62 = tpu.matmul %60, %61, %cst_37 {dimension_numbers = #tpu.dot_dimension_numbers<[1], [0], [0], [1], [0, 0, 1, 1], [], []>} : vector<2x256xf32>, vector<256x256xf32>, vector<2x256xf32> -> vector<2x256xf32>
    %c0_38 = arith.constant 0 : index
    %c0_39 = arith.constant 0 : index
    %63 = vector.load %arg15[%c0_38, %c0_39] : memref<1x256xf32, #tpu.memory_space<vmem>>, vector<1x256xf32>
    %64 = vector.broadcast %63 : vector<1x256xf32> to vector<2x256xf32>
    %65 = arith.addf %62, %64 : vector<2x256xf32>
    %c0_40 = arith.constant 0 : index
    %c0_41 = arith.constant 0 : index
    %66 = vector.load %arg16[%c0_40, %c0_41] : memref<256x256xf32, #tpu.memory_space<vmem>>, vector<256x256xf32>
    %cst_42 = arith.constant dense<0.000000e+00> : vector<2x256xf32>
    %67 = tpu.matmul %65, %66, %cst_42 {dimension_numbers = #tpu.dot_dimension_numbers<[1], [0], [0], [1], [0, 0, 1, 1], [], []>} : vector<2x256xf32>, vector<256x256xf32>, vector<2x256xf32> -> vector<2x256xf32>
    %c0_43 = arith.constant 0 : index
    %c0_44 = arith.constant 0 : index
    %68 = vector.load %arg17[%c0_43, %c0_44] : memref<1x256xf32, #tpu.memory_space<vmem>>, vector<1x256xf32>
    %69 = vector.broadcast %68 : vector<1x256xf32> to vector<2x256xf32>
    %70 = arith.addf %67, %69 : vector<2x256xf32>
    %71 = arith.addf %70, %60 : vector<2x256xf32>
    %c0_45 = arith.constant 0 : index
    %c0_46 = arith.constant 0 : index
    %72 = vector.load %arg18[%c0_45, %c0_46] : memref<1x256xf32, #tpu.memory_space<vmem>>, vector<1x256xf32>
    %c0_47 = arith.constant 0 : index
    %c0_48 = arith.constant 0 : index
    %73 = vector.load %arg19[%c0_47, %c0_48] : memref<1x256xf32, #tpu.memory_space<vmem>>, vector<1x256xf32>
    %cst_49 = arith.constant dense<0.000000e+00> : vector<2xf32>
    %74 = vector.multi_reduction <add>, %71, %cst_49 [1] : vector<2x256xf32> to vector<2xf32>
    %75 = vector.shape_cast %74 : vector<2xf32> to vector<2x1xf32>
    %cst_50 = arith.constant 2.560000e+02 : f32
    %76 = vector.broadcast %cst_50 : f32 to vector<2x1xf32>
    %77 = arith.divf %75, %76 : vector<2x1xf32>
    %78 = vector.broadcast %77 : vector<2x1xf32> to vector<2x256xf32>
    %79 = arith.subf %71, %78 : vector<2x256xf32>
    %80 = arith.mulf %79, %79 : vector<2x256xf32>
    %cst_51 = arith.constant dense<0.000000e+00> : vector<2xf32>
    %81 = vector.multi_reduction <add>, %80, %cst_51 [1] : vector<2x256xf32> to vector<2xf32>
    %82 = vector.shape_cast %81 : vector<2xf32> to vector<2x1xf32>
    %cst_52 = arith.constant 2.560000e+02 : f32
    %83 = vector.broadcast %cst_52 : f32 to vector<2x1xf32>
    %84 = arith.divf %82, %83 : vector<2x1xf32>
    %cst_53 = arith.constant 9.99999974E-6 : f32
    %85 = vector.broadcast %cst_53 : f32 to vector<2x1xf32>
    %86 = arith.addf %84, %85 : vector<2x1xf32>
    %87 = math.rsqrt %86 : vector<2x1xf32>
    %88 = vector.broadcast %87 : vector<2x1xf32> to vector<2x256xf32>
    %89 = arith.mulf %79, %88 : vector<2x256xf32>
    %90 = vector.broadcast %72 : vector<1x256xf32> to vector<2x256xf32>
    %91 = arith.mulf %89, %90 : vector<2x256xf32>
    %92 = vector.broadcast %73 : vector<1x256xf32> to vector<2x256xf32>
    %93 = arith.addf %91, %92 : vector<2x256xf32>
    %c0_54 = arith.constant 0 : index
    %c0_55 = arith.constant 0 : index
    %94 = vector.load %arg20[%c0_54, %c0_55] : memref<256x24xf32, #tpu.memory_space<vmem>>, vector<256x24xf32>
    %cst_56 = arith.constant dense<0.000000e+00> : vector<2x24xf32>
    %95 = tpu.matmul %93, %94, %cst_56 {dimension_numbers = #tpu.dot_dimension_numbers<[1], [0], [0], [1], [0, 0, 1, 1], [], []>} : vector<2x256xf32>, vector<256x24xf32>, vector<2x24xf32> -> vector<2x24xf32>
    %c0_57 = arith.constant 0 : index
    %c0_58 = arith.constant 0 : index
    %96 = vector.load %arg21[%c0_57, %c0_58] : memref<1x24xf32, #tpu.memory_space<vmem>>, vector<1x24xf32>
    %97 = vector.broadcast %96 : vector<1x24xf32> to vector<2x24xf32>
    %98 = arith.addf %95, %97 : vector<2x24xf32>
    %cst_59 = arith.constant 0.000000e+00 : f32
    %99 = vector.broadcast %cst_59 : f32 to vector<2x24xf32>
    %100 = arith.cmpf oge, %98, %99 : vector<2x24xf32>
    %cst_60 = arith.constant 4.000000e-01 : f32
    %101 = vector.broadcast %cst_60 : f32 to vector<2x24xf32>
    %102 = arith.mulf %101, %98 : vector<2x24xf32>
    %103 = arith.select %100, %98, %102 : vector<2x24xi1>, vector<2x24xf32>
    %104 = vector.extract_strided_slice %103 {offsets = [0, 0], sizes = [1, 24], strides = [1, 1]} : vector<2x24xf32> to vector<1x24xf32>
    %105 = vector.extract_strided_slice %103 {offsets = [1, 0], sizes = [1, 24], strides = [1, 1]} : vector<2x24xf32> to vector<1x24xf32>
    %cst_61 = arith.constant 0.000000e+00 : f32
    %106 = vector.broadcast %cst_61 : f32 to vector<1x80xf32>
    %107 = tpu.concatenate %104, %105, %106 in 1 : vector<1x24xf32>, vector<1x24xf32>, vector<1x80xf32> -> vector<1x128xf32>
    %c0_62 = arith.constant 0 : index
    %c0_63 = arith.constant 0 : index
    %108 = vector.load %arg0[%c0_62, %c0_63] : memref<1x128xi32, #tpu.memory_space<vmem>>, vector<1x128xi32>
    %c0_64 = arith.constant 0 : index
    %c0_65 = arith.constant 0 : index
    %109 = vector.load %arg3[%c0_64, %c0_65] : memref<1x128xf32, #tpu.memory_space<vmem>>, vector<1x128xf32>
    %c0_66 = arith.constant 0 : index
    %c0_67 = arith.constant 0 : index
    %110 = vector.load %arg22[%c0_66, %c0_67] : memref<8x1xf32, #tpu.memory_space<vmem>>, vector<8x1xf32>
    %111 = vector.broadcast %110 : vector<8x1xf32> to vector<8x128xf32>
    %112 = vector.broadcast %109 : vector<1x128xf32> to vector<8x128xf32>
    %113 = arith.mulf %111, %112 : vector<8x128xf32>
    %c0_68 = arith.constant 0 : index
    %c0_69 = arith.constant 0 : index
    %114 = vector.load %arg23[%c0_68, %c0_69] : memref<8x1xf32, #tpu.memory_space<vmem>>, vector<8x1xf32>
    %115 = vector.broadcast %114 : vector<8x1xf32> to vector<8x128xf32>
    %116 = arith.addf %113, %115 : vector<8x128xf32>
    %cst_70 = arith.constant 0.000000e+00 : f32
    %117 = vector.broadcast %cst_70 : f32 to vector<8x128xf32>
    %118 = arith.maximumf %116, %117 : vector<8x128xf32>
    %cst_71 = arith.constant 0.000000e+00 : f32
    %119 = vector.broadcast %cst_71 : f32 to vector<8x128xf32>
    %120 = vector.extract_strided_slice %27 {offsets = [0, 0], sizes = [8, 1], strides = [1, 1]} : vector<64x1xf32> to vector<8x1xf32>
    %121 = vector.broadcast %120 : vector<8x1xf32> to vector<8x128xf32>
    %122 = arith.addf %118, %121 : vector<8x128xf32>
    %cst_72 = arith.constant 0.000000e+00 : f32
    %123 = vector.broadcast %cst_72 : f32 to vector<8x1xf32>
    %c1_i32 = arith.constant 1 : i32
    %124 = vector.broadcast %c1_i32 : i32 to vector<1x128xi32>
    %125 = arith.cmpi sge, %108, %124 : vector<1x128xi32>
    %126 = vector.extract_strided_slice %122 {offsets = [0, 0], sizes = [8, 127], strides = [1, 1]} : vector<8x128xf32> to vector<8x127xf32>
    %127 = tpu.concatenate %123, %126 in 1 : vector<8x1xf32>, vector<8x127xf32> -> vector<8x128xf32>
    %cst_73 = arith.constant 0.000000e+00 : f32
    %128 = vector.shape_cast %125 : vector<1x128xi1> to vector<1x128xi1>
    %129 = vector.broadcast %128 : vector<1x128xi1> to vector<8x128xi1>
    %130 = vector.broadcast %cst_73 : f32 to vector<8x128xf32>
    %131 = arith.select %129, %127, %130 : vector<8x128xi1>, vector<8x128xf32>
    %c23_i32 = arith.constant 23 : i32
    %132 = vector.broadcast %c23_i32 : i32 to vector<1x128xi32>
    %133 = arith.cmpi slt, %108, %132 : vector<1x128xi32>
    %134 = vector.extract_strided_slice %122 {offsets = [0, 1], sizes = [8, 127], strides = [1, 1]} : vector<8x128xf32> to vector<8x127xf32>
    %135 = tpu.concatenate %134, %123 in 1 : vector<8x127xf32>, vector<8x1xf32> -> vector<8x128xf32>
    %cst_74 = arith.constant 0.000000e+00 : f32
    %136 = vector.shape_cast %133 : vector<1x128xi1> to vector<1x128xi1>
    %137 = vector.broadcast %136 : vector<1x128xi1> to vector<8x128xi1>
    %138 = vector.broadcast %cst_74 : f32 to vector<8x128xf32>
    %139 = arith.select %137, %135, %138 : vector<8x128xi1>, vector<8x128xf32>
    %c0_75 = arith.constant 0 : index
    %c0_76 = arith.constant 0 : index
    %c0_77 = arith.constant 0 : index
    %140 = vector.load %arg24[%c0_75, %c0_76, %c0_77] : memref<8x16x1xf32, #tpu.memory_space<vmem>>, vector<1x16x1xf32>
    %141 = vector.shape_cast %140 : vector<1x16x1xf32> to vector<16x1xf32>
    %142 = vector.broadcast %141 : vector<16x1xf32> to vector<16x128xf32>
    %143 = vector.broadcast %107 : vector<1x128xf32> to vector<16x128xf32>
    %144 = arith.mulf %142, %143 : vector<16x128xf32>
    %c0_78 = arith.constant 0 : index
    %c0_79 = arith.constant 0 : index
    %c0_80 = arith.constant 0 : index
    %145 = vector.load %arg25[%c0_78, %c0_79, %c0_80] : memref<8x16x1xf32, #tpu.memory_space<vmem>>, vector<1x16x1xf32>
    %146 = vector.shape_cast %145 : vector<1x16x1xf32> to vector<16x1xf32>
    %147 = vector.broadcast %146 : vector<16x1xf32> to vector<16x128xf32>
    %148 = arith.addf %144, %147 : vector<16x128xf32>
    %c0_81 = arith.constant 0 : index
    %c0_82 = arith.constant 0 : index
    %c0_83 = arith.constant 0 : index
    %149 = vector.load %arg26[%c0_81, %c0_82, %c0_83] : memref<24x16x8xf32, #tpu.memory_space<vmem>>, vector<1x16x8xf32>
    %150 = vector.shape_cast %149 : vector<1x16x8xf32> to vector<16x8xf32>
    %cst_84 = arith.constant dense<0.000000e+00> : vector<16x128xf32>
    %151 = tpu.matmul %150, %131, %cst_84 {dimension_numbers = #tpu.dot_dimension_numbers<[1], [0], [0], [1], [0, 0, 1, 1], [], []>} : vector<16x8xf32>, vector<8x128xf32>, vector<16x128xf32> -> vector<16x128xf32>
    %c1 = arith.constant 1 : index
    %c0_85 = arith.constant 0 : index
    %c0_86 = arith.constant 0 : index
    %152 = vector.load %arg26[%c1, %c0_85, %c0_86] : memref<24x16x8xf32, #tpu.memory_space<vmem>>, vector<1x16x8xf32>
    %153 = vector.shape_cast %152 : vector<1x16x8xf32> to vector<16x8xf32>
    %cst_87 = arith.constant dense<0.000000e+00> : vector<16x128xf32>
    %154 = tpu.matmul %153, %122, %cst_87 {dimension_numbers = #tpu.dot_dimension_numbers<[1], [0], [0], [1], [0, 0, 1, 1], [], []>} : vector<16x8xf32>, vector<8x128xf32>, vector<16x128xf32> -> vector<16x128xf32>
    %155 = arith.addf %151, %154 : vector<16x128xf32>
    %c2 = arith.constant 2 : index
    %c0_88 = arith.constant 0 : index
    %c0_89 = arith.constant 0 : index
    %156 = vector.load %arg26[%c2, %c0_88, %c0_89] : memref<24x16x8xf32, #tpu.memory_space<vmem>>, vector<1x16x8xf32>
    %157 = vector.shape_cast %156 : vector<1x16x8xf32> to vector<16x8xf32>
    %cst_90 = arith.constant dense<0.000000e+00> : vector<16x128xf32>
    %158 = tpu.matmul %157, %139, %cst_90 {dimension_numbers = #tpu.dot_dimension_numbers<[1], [0], [0], [1], [0, 0, 1, 1], [], []>} : vector<16x8xf32>, vector<8x128xf32>, vector<16x128xf32> -> vector<16x128xf32>
    %159 = arith.addf %155, %158 : vector<16x128xf32>
    %c0_91 = arith.constant 0 : index
    %c0_92 = arith.constant 0 : index
    %c0_93 = arith.constant 0 : index
    %160 = vector.load %arg27[%c0_91, %c0_92, %c0_93] : memref<8x16x1xf32, #tpu.memory_space<vmem>>, vector<1x16x1xf32>
    %161 = vector.shape_cast %160 : vector<1x16x1xf32> to vector<16x1xf32>
    %162 = vector.broadcast %161 : vector<16x1xf32> to vector<16x128xf32>
    %163 = arith.addf %159, %162 : vector<16x128xf32>
    %164 = arith.addf %163, %148 : vector<16x128xf32>
    %165 = vector.extract_strided_slice %164 {offsets = [0, 0], sizes = [8, 128], strides = [1, 1]} : vector<16x128xf32> to vector<8x128xf32>
    %166 = arith.negf %165 : vector<8x128xf32>
    %167 = math.exp %166 : vector<8x128xf32>
    %cst_94 = arith.constant 1.000000e+00 : f32
    %168 = vector.broadcast %cst_94 : f32 to vector<8x128xf32>
    %169 = arith.addf %168, %167 : vector<8x128xf32>
    %170 = arith.divf %168, %169 : vector<8x128xf32>
    %171 = vector.extract_strided_slice %164 {offsets = [8, 0], sizes = [8, 128], strides = [1, 1]} : vector<16x128xf32> to vector<8x128xf32>
    %172 = math.tanh %171 : vector<8x128xf32>
    %173 = arith.mulf %170, %172 : vector<8x128xf32>
    %c0_95 = arith.constant 0 : index
    %c0_96 = arith.constant 0 : index
    %c0_97 = arith.constant 0 : index
    %174 = vector.load %arg28[%c0_95, %c0_96, %c0_97] : memref<8x16x8xf32, #tpu.memory_space<vmem>>, vector<1x16x8xf32>
    %175 = vector.shape_cast %174 : vector<1x16x8xf32> to vector<16x8xf32>
    %cst_98 = arith.constant dense<0.000000e+00> : vector<16x128xf32>
    %176 = tpu.matmul %175, %173, %cst_98 {dimension_numbers = #tpu.dot_dimension_numbers<[1], [0], [0], [1], [0, 0, 1, 1], [], []>} : vector<16x8xf32>, vector<8x128xf32>, vector<16x128xf32> -> vector<16x128xf32>
    %c0_99 = arith.constant 0 : index
    %c0_100 = arith.constant 0 : index
    %c0_101 = arith.constant 0 : index
    %177 = vector.load %arg29[%c0_99, %c0_100, %c0_101] : memref<8x16x1xf32, #tpu.memory_space<vmem>>, vector<1x16x1xf32>
    %178 = vector.shape_cast %177 : vector<1x16x1xf32> to vector<16x1xf32>
    %179 = vector.broadcast %178 : vector<16x1xf32> to vector<16x128xf32>
    %180 = arith.addf %176, %179 : vector<16x128xf32>
    %181 = vector.extract_strided_slice %180 {offsets = [0, 0], sizes = [8, 128], strides = [1, 1]} : vector<16x128xf32> to vector<8x128xf32>
    %182 = arith.addf %118, %181 : vector<8x128xf32>
    %cst_102 = arith.constant 0.707106769 : f32
    %183 = vector.broadcast %cst_102 : f32 to vector<8x128xf32>
    %184 = arith.mulf %182, %183 : vector<8x128xf32>
    %185 = vector.extract_strided_slice %180 {offsets = [8, 0], sizes = [8, 128], strides = [1, 1]} : vector<16x128xf32> to vector<8x128xf32>
    %186 = arith.addf %119, %185 : vector<8x128xf32>
    %187 = vector.extract_strided_slice %27 {offsets = [8, 0], sizes = [8, 1], strides = [1, 1]} : vector<64x1xf32> to vector<8x1xf32>
    %188 = vector.broadcast %187 : vector<8x1xf32> to vector<8x128xf32>
    %189 = arith.addf %184, %188 : vector<8x128xf32>
    %cst_103 = arith.constant 0.000000e+00 : f32
    %190 = vector.broadcast %cst_103 : f32 to vector<8x2xf32>
    %c2_i32 = arith.constant 2 : i32
    %191 = vector.broadcast %c2_i32 : i32 to vector<1x128xi32>
    %192 = arith.cmpi sge, %108, %191 : vector<1x128xi32>
    %193 = vector.extract_strided_slice %189 {offsets = [0, 0], sizes = [8, 126], strides = [1, 1]} : vector<8x128xf32> to vector<8x126xf32>
    %194 = tpu.concatenate %190, %193 in 1 : vector<8x2xf32>, vector<8x126xf32> -> vector<8x128xf32>
    %cst_104 = arith.constant 0.000000e+00 : f32
    %195 = vector.shape_cast %192 : vector<1x128xi1> to vector<1x128xi1>
    %196 = vector.broadcast %195 : vector<1x128xi1> to vector<8x128xi1>
    %197 = vector.broadcast %cst_104 : f32 to vector<8x128xf32>
    %198 = arith.select %196, %194, %197 : vector<8x128xi1>, vector<8x128xf32>
    %c22_i32 = arith.constant 22 : i32
    %199 = vector.broadcast %c22_i32 : i32 to vector<1x128xi32>
    %200 = arith.cmpi slt, %108, %199 : vector<1x128xi32>
    %201 = vector.extract_strided_slice %189 {offsets = [0, 2], sizes = [8, 126], strides = [1, 1]} : vector<8x128xf32> to vector<8x126xf32>
    %202 = tpu.concatenate %201, %190 in 1 : vector<8x126xf32>, vector<8x2xf32> -> vector<8x128xf32>
    %cst_105 = arith.constant 0.000000e+00 : f32
    %203 = vector.shape_cast %200 : vector<1x128xi1> to vector<1x128xi1>
    %204 = vector.broadcast %203 : vector<1x128xi1> to vector<8x128xi1>
    %205 = vector.broadcast %cst_105 : f32 to vector<8x128xf32>
    %206 = arith.select %204, %202, %205 : vector<8x128xi1>, vector<8x128xf32>
    %c1_106 = arith.constant 1 : index
    %c0_107 = arith.constant 0 : index
    %c0_108 = arith.constant 0 : index
    %207 = vector.load %arg24[%c1_106, %c0_107, %c0_108] : memref<8x16x1xf32, #tpu.memory_space<vmem>>, vector<1x16x1xf32>
    %208 = vector.shape_cast %207 : vector<1x16x1xf32> to vector<16x1xf32>
    %209 = vector.broadcast %208 : vector<16x1xf32> to vector<16x128xf32>
    %210 = vector.broadcast %107 : vector<1x128xf32> to vector<16x128xf32>
    %211 = arith.mulf %209, %210 : vector<16x128xf32>
    %c1_109 = arith.constant 1 : index
    %c0_110 = arith.constant 0 : index
    %c0_111 = arith.constant 0 : index
    %212 = vector.load %arg25[%c1_109, %c0_110, %c0_111] : memref<8x16x1xf32, #tpu.memory_space<vmem>>, vector<1x16x1xf32>
    %213 = vector.shape_cast %212 : vector<1x16x1xf32> to vector<16x1xf32>
    %214 = vector.broadcast %213 : vector<16x1xf32> to vector<16x128xf32>
    %215 = arith.addf %211, %214 : vector<16x128xf32>
    %c3 = arith.constant 3 : index
    %c0_112 = arith.constant 0 : index
    %c0_113 = arith.constant 0 : index
    %216 = vector.load %arg26[%c3, %c0_112, %c0_113] : memref<24x16x8xf32, #tpu.memory_space<vmem>>, vector<1x16x8xf32>
    %217 = vector.shape_cast %216 : vector<1x16x8xf32> to vector<16x8xf32>
    %cst_114 = arith.constant dense<0.000000e+00> : vector<16x128xf32>
    %218 = tpu.matmul %217, %198, %cst_114 {dimension_numbers = #tpu.dot_dimension_numbers<[1], [0], [0], [1], [0, 0, 1, 1], [], []>} : vector<16x8xf32>, vector<8x128xf32>, vector<16x128xf32> -> vector<16x128xf32>
    %c4 = arith.constant 4 : index
    %c0_115 = arith.constant 0 : index
    %c0_116 = arith.constant 0 : index
    %219 = vector.load %arg26[%c4, %c0_115, %c0_116] : memref<24x16x8xf32, #tpu.memory_space<vmem>>, vector<1x16x8xf32>
    %220 = vector.shape_cast %219 : vector<1x16x8xf32> to vector<16x8xf32>
    %cst_117 = arith.constant dense<0.000000e+00> : vector<16x128xf32>
    %221 = tpu.matmul %220, %189, %cst_117 {dimension_numbers = #tpu.dot_dimension_numbers<[1], [0], [0], [1], [0, 0, 1, 1], [], []>} : vector<16x8xf32>, vector<8x128xf32>, vector<16x128xf32> -> vector<16x128xf32>
    %222 = arith.addf %218, %221 : vector<16x128xf32>
    %c5 = arith.constant 5 : index
    %c0_118 = arith.constant 0 : index
    %c0_119 = arith.constant 0 : index
    %223 = vector.load %arg26[%c5, %c0_118, %c0_119] : memref<24x16x8xf32, #tpu.memory_space<vmem>>, vector<1x16x8xf32>
    %224 = vector.shape_cast %223 : vector<1x16x8xf32> to vector<16x8xf32>
    %cst_120 = arith.constant dense<0.000000e+00> : vector<16x128xf32>
    %225 = tpu.matmul %224, %206, %cst_120 {dimension_numbers = #tpu.dot_dimension_numbers<[1], [0], [0], [1], [0, 0, 1, 1], [], []>} : vector<16x8xf32>, vector<8x128xf32>, vector<16x128xf32> -> vector<16x128xf32>
    %226 = arith.addf %222, %225 : vector<16x128xf32>
    %c1_121 = arith.constant 1 : index
    %c0_122 = arith.constant 0 : index
    %c0_123 = arith.constant 0 : index
    %227 = vector.load %arg27[%c1_121, %c0_122, %c0_123] : memref<8x16x1xf32, #tpu.memory_space<vmem>>, vector<1x16x1xf32>
    %228 = vector.shape_cast %227 : vector<1x16x1xf32> to vector<16x1xf32>
    %229 = vector.broadcast %228 : vector<16x1xf32> to vector<16x128xf32>
    %230 = arith.addf %226, %229 : vector<16x128xf32>
    %231 = arith.addf %230, %215 : vector<16x128xf32>
    %232 = vector.extract_strided_slice %231 {offsets = [0, 0], sizes = [8, 128], strides = [1, 1]} : vector<16x128xf32> to vector<8x128xf32>
    %233 = arith.negf %232 : vector<8x128xf32>
    %234 = math.exp %233 : vector<8x128xf32>
    %cst_124 = arith.constant 1.000000e+00 : f32
    %235 = vector.broadcast %cst_124 : f32 to vector<8x128xf32>
    %236 = arith.addf %235, %234 : vector<8x128xf32>
    %237 = arith.divf %235, %236 : vector<8x128xf32>
    %238 = vector.extract_strided_slice %231 {offsets = [8, 0], sizes = [8, 128], strides = [1, 1]} : vector<16x128xf32> to vector<8x128xf32>
    %239 = math.tanh %238 : vector<8x128xf32>
    %240 = arith.mulf %237, %239 : vector<8x128xf32>
    %c1_125 = arith.constant 1 : index
    %c0_126 = arith.constant 0 : index
    %c0_127 = arith.constant 0 : index
    %241 = vector.load %arg28[%c1_125, %c0_126, %c0_127] : memref<8x16x8xf32, #tpu.memory_space<vmem>>, vector<1x16x8xf32>
    %242 = vector.shape_cast %241 : vector<1x16x8xf32> to vector<16x8xf32>
    %cst_128 = arith.constant dense<0.000000e+00> : vector<16x128xf32>
    %243 = tpu.matmul %242, %240, %cst_128 {dimension_numbers = #tpu.dot_dimension_numbers<[1], [0], [0], [1], [0, 0, 1, 1], [], []>} : vector<16x8xf32>, vector<8x128xf32>, vector<16x128xf32> -> vector<16x128xf32>
    %c1_129 = arith.constant 1 : index
    %c0_130 = arith.constant 0 : index
    %c0_131 = arith.constant 0 : index
    %244 = vector.load %arg29[%c1_129, %c0_130, %c0_131] : memref<8x16x1xf32, #tpu.memory_space<vmem>>, vector<1x16x1xf32>
    %245 = vector.shape_cast %244 : vector<1x16x1xf32> to vector<16x1xf32>
    %246 = vector.broadcast %245 : vector<16x1xf32> to vector<16x128xf32>
    %247 = arith.addf %243, %246 : vector<16x128xf32>
    %248 = vector.extract_strided_slice %247 {offsets = [0, 0], sizes = [8, 128], strides = [1, 1]} : vector<16x128xf32> to vector<8x128xf32>
    %249 = arith.addf %184, %248 : vector<8x128xf32>
    %cst_132 = arith.constant 0.707106769 : f32
    %250 = vector.broadcast %cst_132 : f32 to vector<8x128xf32>
    %251 = arith.mulf %249, %250 : vector<8x128xf32>
    %252 = vector.extract_strided_slice %247 {offsets = [8, 0], sizes = [8, 128], strides = [1, 1]} : vector<16x128xf32> to vector<8x128xf32>
    %253 = arith.addf %186, %252 : vector<8x128xf32>
    %254 = vector.extract_strided_slice %27 {offsets = [16, 0], sizes = [8, 1], strides = [1, 1]} : vector<64x1xf32> to vector<8x1xf32>
    %255 = vector.broadcast %254 : vector<8x1xf32> to vector<8x128xf32>
    %256 = arith.addf %251, %255 : vector<8x128xf32>
    %cst_133 = arith.constant 0.000000e+00 : f32
    %257 = vector.broadcast %cst_133 : f32 to vector<8x1xf32>
    %c1_i32_134 = arith.constant 1 : i32
    %258 = vector.broadcast %c1_i32_134 : i32 to vector<1x128xi32>
    %259 = arith.cmpi sge, %108, %258 : vector<1x128xi32>
    %260 = vector.extract_strided_slice %256 {offsets = [0, 0], sizes = [8, 127], strides = [1, 1]} : vector<8x128xf32> to vector<8x127xf32>
    %261 = tpu.concatenate %257, %260 in 1 : vector<8x1xf32>, vector<8x127xf32> -> vector<8x128xf32>
    %cst_135 = arith.constant 0.000000e+00 : f32
    %262 = vector.shape_cast %259 : vector<1x128xi1> to vector<1x128xi1>
    %263 = vector.broadcast %262 : vector<1x128xi1> to vector<8x128xi1>
    %264 = vector.broadcast %cst_135 : f32 to vector<8x128xf32>
    %265 = arith.select %263, %261, %264 : vector<8x128xi1>, vector<8x128xf32>
    %c23_i32_136 = arith.constant 23 : i32
    %266 = vector.broadcast %c23_i32_136 : i32 to vector<1x128xi32>
    %267 = arith.cmpi slt, %108, %266 : vector<1x128xi32>
    %268 = vector.extract_strided_slice %256 {offsets = [0, 1], sizes = [8, 127], strides = [1, 1]} : vector<8x128xf32> to vector<8x127xf32>
    %269 = tpu.concatenate %268, %257 in 1 : vector<8x127xf32>, vector<8x1xf32> -> vector<8x128xf32>
    %cst_137 = arith.constant 0.000000e+00 : f32
    %270 = vector.shape_cast %267 : vector<1x128xi1> to vector<1x128xi1>
    %271 = vector.broadcast %270 : vector<1x128xi1> to vector<8x128xi1>
    %272 = vector.broadcast %cst_137 : f32 to vector<8x128xf32>
    %273 = arith.select %271, %269, %272 : vector<8x128xi1>, vector<8x128xf32>
    %c2_138 = arith.constant 2 : index
    %c0_139 = arith.constant 0 : index
    %c0_140 = arith.constant 0 : index
    %274 = vector.load %arg24[%c2_138, %c0_139, %c0_140] : memref<8x16x1xf32, #tpu.memory_space<vmem>>, vector<1x16x1xf32>
    %275 = vector.shape_cast %274 : vector<1x16x1xf32> to vector<16x1xf32>
    %276 = vector.broadcast %275 : vector<16x1xf32> to vector<16x128xf32>
    %277 = vector.broadcast %107 : vector<1x128xf32> to vector<16x128xf32>
    %278 = arith.mulf %276, %277 : vector<16x128xf32>
    %c2_141 = arith.constant 2 : index
    %c0_142 = arith.constant 0 : index
    %c0_143 = arith.constant 0 : index
    %279 = vector.load %arg25[%c2_141, %c0_142, %c0_143] : memref<8x16x1xf32, #tpu.memory_space<vmem>>, vector<1x16x1xf32>
    %280 = vector.shape_cast %279 : vector<1x16x1xf32> to vector<16x1xf32>
    %281 = vector.broadcast %280 : vector<16x1xf32> to vector<16x128xf32>
    %282 = arith.addf %278, %281 : vector<16x128xf32>
    %c6 = arith.constant 6 : index
    %c0_144 = arith.constant 0 : index
    %c0_145 = arith.constant 0 : index
    %283 = vector.load %arg26[%c6, %c0_144, %c0_145] : memref<24x16x8xf32, #tpu.memory_space<vmem>>, vector<1x16x8xf32>
    %284 = vector.shape_cast %283 : vector<1x16x8xf32> to vector<16x8xf32>
    %cst_146 = arith.constant dense<0.000000e+00> : vector<16x128xf32>
    %285 = tpu.matmul %284, %265, %cst_146 {dimension_numbers = #tpu.dot_dimension_numbers<[1], [0], [0], [1], [0, 0, 1, 1], [], []>} : vector<16x8xf32>, vector<8x128xf32>, vector<16x128xf32> -> vector<16x128xf32>
    %c7 = arith.constant 7 : index
    %c0_147 = arith.constant 0 : index
    %c0_148 = arith.constant 0 : index
    %286 = vector.load %arg26[%c7, %c0_147, %c0_148] : memref<24x16x8xf32, #tpu.memory_space<vmem>>, vector<1x16x8xf32>
    %287 = vector.shape_cast %286 : vector<1x16x8xf32> to vector<16x8xf32>
    %cst_149 = arith.constant dense<0.000000e+00> : vector<16x128xf32>
    %288 = tpu.matmul %287, %256, %cst_149 {dimension_numbers = #tpu.dot_dimension_numbers<[1], [0], [0], [1], [0, 0, 1, 1], [], []>} : vector<16x8xf32>, vector<8x128xf32>, vector<16x128xf32> -> vector<16x128xf32>
    %289 = arith.addf %285, %288 : vector<16x128xf32>
    %c8 = arith.constant 8 : index
    %c0_150 = arith.constant 0 : index
    %c0_151 = arith.constant 0 : index
    %290 = vector.load %arg26[%c8, %c0_150, %c0_151] : memref<24x16x8xf32, #tpu.memory_space<vmem>>, vector<1x16x8xf32>
    %291 = vector.shape_cast %290 : vector<1x16x8xf32> to vector<16x8xf32>
    %cst_152 = arith.constant dense<0.000000e+00> : vector<16x128xf32>
    %292 = tpu.matmul %291, %273, %cst_152 {dimension_numbers = #tpu.dot_dimension_numbers<[1], [0], [0], [1], [0, 0, 1, 1], [], []>} : vector<16x8xf32>, vector<8x128xf32>, vector<16x128xf32> -> vector<16x128xf32>
    %293 = arith.addf %289, %292 : vector<16x128xf32>
    %c2_153 = arith.constant 2 : index
    %c0_154 = arith.constant 0 : index
    %c0_155 = arith.constant 0 : index
    %294 = vector.load %arg27[%c2_153, %c0_154, %c0_155] : memref<8x16x1xf32, #tpu.memory_space<vmem>>, vector<1x16x1xf32>
    %295 = vector.shape_cast %294 : vector<1x16x1xf32> to vector<16x1xf32>
    %296 = vector.broadcast %295 : vector<16x1xf32> to vector<16x128xf32>
    %297 = arith.addf %293, %296 : vector<16x128xf32>
    %298 = arith.addf %297, %282 : vector<16x128xf32>
    %299 = vector.extract_strided_slice %298 {offsets = [0, 0], sizes = [8, 128], strides = [1, 1]} : vector<16x128xf32> to vector<8x128xf32>
    %300 = arith.negf %299 : vector<8x128xf32>
    %301 = math.exp %300 : vector<8x128xf32>
    %cst_156 = arith.constant 1.000000e+00 : f32
    %302 = vector.broadcast %cst_156 : f32 to vector<8x128xf32>
    %303 = arith.addf %302, %301 : vector<8x128xf32>
    %304 = arith.divf %302, %303 : vector<8x128xf32>
    %305 = vector.extract_strided_slice %298 {offsets = [8, 0], sizes = [8, 128], strides = [1, 1]} : vector<16x128xf32> to vector<8x128xf32>
    %306 = math.tanh %305 : vector<8x128xf32>
    %307 = arith.mulf %304, %306 : vector<8x128xf32>
    %c2_157 = arith.constant 2 : index
    %c0_158 = arith.constant 0 : index
    %c0_159 = arith.constant 0 : index
    %308 = vector.load %arg28[%c2_157, %c0_158, %c0_159] : memref<8x16x8xf32, #tpu.memory_space<vmem>>, vector<1x16x8xf32>
    %309 = vector.shape_cast %308 : vector<1x16x8xf32> to vector<16x8xf32>
    %cst_160 = arith.constant dense<0.000000e+00> : vector<16x128xf32>
    %310 = tpu.matmul %309, %307, %cst_160 {dimension_numbers = #tpu.dot_dimension_numbers<[1], [0], [0], [1], [0, 0, 1, 1], [], []>} : vector<16x8xf32>, vector<8x128xf32>, vector<16x128xf32> -> vector<16x128xf32>
    %c2_161 = arith.constant 2 : index
    %c0_162 = arith.constant 0 : index
    %c0_163 = arith.constant 0 : index
    %311 = vector.load %arg29[%c2_161, %c0_162, %c0_163] : memref<8x16x1xf32, #tpu.memory_space<vmem>>, vector<1x16x1xf32>
    %312 = vector.shape_cast %311 : vector<1x16x1xf32> to vector<16x1xf32>
    %313 = vector.broadcast %312 : vector<16x1xf32> to vector<16x128xf32>
    %314 = arith.addf %310, %313 : vector<16x128xf32>
    %315 = vector.extract_strided_slice %314 {offsets = [0, 0], sizes = [8, 128], strides = [1, 1]} : vector<16x128xf32> to vector<8x128xf32>
    %316 = arith.addf %251, %315 : vector<8x128xf32>
    %cst_164 = arith.constant 0.707106769 : f32
    %317 = vector.broadcast %cst_164 : f32 to vector<8x128xf32>
    %318 = arith.mulf %316, %317 : vector<8x128xf32>
    %319 = vector.extract_strided_slice %314 {offsets = [8, 0], sizes = [8, 128], strides = [1, 1]} : vector<16x128xf32> to vector<8x128xf32>
    %320 = arith.addf %253, %319 : vector<8x128xf32>
    %321 = vector.extract_strided_slice %27 {offsets = [24, 0], sizes = [8, 1], strides = [1, 1]} : vector<64x1xf32> to vector<8x1xf32>
    %322 = vector.broadcast %321 : vector<8x1xf32> to vector<8x128xf32>
    %323 = arith.addf %318, %322 : vector<8x128xf32>
    %cst_165 = arith.constant 0.000000e+00 : f32
    %324 = vector.broadcast %cst_165 : f32 to vector<8x2xf32>
    %c2_i32_166 = arith.constant 2 : i32
    %325 = vector.broadcast %c2_i32_166 : i32 to vector<1x128xi32>
    %326 = arith.cmpi sge, %108, %325 : vector<1x128xi32>
    %327 = vector.extract_strided_slice %323 {offsets = [0, 0], sizes = [8, 126], strides = [1, 1]} : vector<8x128xf32> to vector<8x126xf32>
    %328 = tpu.concatenate %324, %327 in 1 : vector<8x2xf32>, vector<8x126xf32> -> vector<8x128xf32>
    %cst_167 = arith.constant 0.000000e+00 : f32
    %329 = vector.shape_cast %326 : vector<1x128xi1> to vector<1x128xi1>
    %330 = vector.broadcast %329 : vector<1x128xi1> to vector<8x128xi1>
    %331 = vector.broadcast %cst_167 : f32 to vector<8x128xf32>
    %332 = arith.select %330, %328, %331 : vector<8x128xi1>, vector<8x128xf32>
    %c22_i32_168 = arith.constant 22 : i32
    %333 = vector.broadcast %c22_i32_168 : i32 to vector<1x128xi32>
    %334 = arith.cmpi slt, %108, %333 : vector<1x128xi32>
    %335 = vector.extract_strided_slice %323 {offsets = [0, 2], sizes = [8, 126], strides = [1, 1]} : vector<8x128xf32> to vector<8x126xf32>
    %336 = tpu.concatenate %335, %324 in 1 : vector<8x126xf32>, vector<8x2xf32> -> vector<8x128xf32>
    %cst_169 = arith.constant 0.000000e+00 : f32
    %337 = vector.shape_cast %334 : vector<1x128xi1> to vector<1x128xi1>
    %338 = vector.broadcast %337 : vector<1x128xi1> to vector<8x128xi1>
    %339 = vector.broadcast %cst_169 : f32 to vector<8x128xf32>
    %340 = arith.select %338, %336, %339 : vector<8x128xi1>, vector<8x128xf32>
    %c3_170 = arith.constant 3 : index
    %c0_171 = arith.constant 0 : index
    %c0_172 = arith.constant 0 : index
    %341 = vector.load %arg24[%c3_170, %c0_171, %c0_172] : memref<8x16x1xf32, #tpu.memory_space<vmem>>, vector<1x16x1xf32>
    %342 = vector.shape_cast %341 : vector<1x16x1xf32> to vector<16x1xf32>
    %343 = vector.broadcast %342 : vector<16x1xf32> to vector<16x128xf32>
    %344 = vector.broadcast %107 : vector<1x128xf32> to vector<16x128xf32>
    %345 = arith.mulf %343, %344 : vector<16x128xf32>
    %c3_173 = arith.constant 3 : index
    %c0_174 = arith.constant 0 : index
    %c0_175 = arith.constant 0 : index
    %346 = vector.load %arg25[%c3_173, %c0_174, %c0_175] : memref<8x16x1xf32, #tpu.memory_space<vmem>>, vector<1x16x1xf32>
    %347 = vector.shape_cast %346 : vector<1x16x1xf32> to vector<16x1xf32>
    %348 = vector.broadcast %347 : vector<16x1xf32> to vector<16x128xf32>
    %349 = arith.addf %345, %348 : vector<16x128xf32>
    %c9 = arith.constant 9 : index
    %c0_176 = arith.constant 0 : index
    %c0_177 = arith.constant 0 : index
    %350 = vector.load %arg26[%c9, %c0_176, %c0_177] : memref<24x16x8xf32, #tpu.memory_space<vmem>>, vector<1x16x8xf32>
    %351 = vector.shape_cast %350 : vector<1x16x8xf32> to vector<16x8xf32>
    %cst_178 = arith.constant dense<0.000000e+00> : vector<16x128xf32>
    %352 = tpu.matmul %351, %332, %cst_178 {dimension_numbers = #tpu.dot_dimension_numbers<[1], [0], [0], [1], [0, 0, 1, 1], [], []>} : vector<16x8xf32>, vector<8x128xf32>, vector<16x128xf32> -> vector<16x128xf32>
    %c10 = arith.constant 10 : index
    %c0_179 = arith.constant 0 : index
    %c0_180 = arith.constant 0 : index
    %353 = vector.load %arg26[%c10, %c0_179, %c0_180] : memref<24x16x8xf32, #tpu.memory_space<vmem>>, vector<1x16x8xf32>
    %354 = vector.shape_cast %353 : vector<1x16x8xf32> to vector<16x8xf32>
    %cst_181 = arith.constant dense<0.000000e+00> : vector<16x128xf32>
    %355 = tpu.matmul %354, %323, %cst_181 {dimension_numbers = #tpu.dot_dimension_numbers<[1], [0], [0], [1], [0, 0, 1, 1], [], []>} : vector<16x8xf32>, vector<8x128xf32>, vector<16x128xf32> -> vector<16x128xf32>
    %356 = arith.addf %352, %355 : vector<16x128xf32>
    %c11 = arith.constant 11 : index
    %c0_182 = arith.constant 0 : index
    %c0_183 = arith.constant 0 : index
    %357 = vector.load %arg26[%c11, %c0_182, %c0_183] : memref<24x16x8xf32, #tpu.memory_space<vmem>>, vector<1x16x8xf32>
    %358 = vector.shape_cast %357 : vector<1x16x8xf32> to vector<16x8xf32>
    %cst_184 = arith.constant dense<0.000000e+00> : vector<16x128xf32>
    %359 = tpu.matmul %358, %340, %cst_184 {dimension_numbers = #tpu.dot_dimension_numbers<[1], [0], [0], [1], [0, 0, 1, 1], [], []>} : vector<16x8xf32>, vector<8x128xf32>, vector<16x128xf32> -> vector<16x128xf32>
    %360 = arith.addf %356, %359 : vector<16x128xf32>
    %c3_185 = arith.constant 3 : index
    %c0_186 = arith.constant 0 : index
    %c0_187 = arith.constant 0 : index
    %361 = vector.load %arg27[%c3_185, %c0_186, %c0_187] : memref<8x16x1xf32, #tpu.memory_space<vmem>>, vector<1x16x1xf32>
    %362 = vector.shape_cast %361 : vector<1x16x1xf32> to vector<16x1xf32>
    %363 = vector.broadcast %362 : vector<16x1xf32> to vector<16x128xf32>
    %364 = arith.addf %360, %363 : vector<16x128xf32>
    %365 = arith.addf %364, %349 : vector<16x128xf32>
    %366 = vector.extract_strided_slice %365 {offsets = [0, 0], sizes = [8, 128], strides = [1, 1]} : vector<16x128xf32> to vector<8x128xf32>
    %367 = arith.negf %366 : vector<8x128xf32>
    %368 = math.exp %367 : vector<8x128xf32>
    %cst_188 = arith.constant 1.000000e+00 : f32
    %369 = vector.broadcast %cst_188 : f32 to vector<8x128xf32>
    %370 = arith.addf %369, %368 : vector<8x128xf32>
    %371 = arith.divf %369, %370 : vector<8x128xf32>
    %372 = vector.extract_strided_slice %365 {offsets = [8, 0], sizes = [8, 128], strides = [1, 1]} : vector<16x128xf32> to vector<8x128xf32>
    %373 = math.tanh %372 : vector<8x128xf32>
    %374 = arith.mulf %371, %373 : vector<8x128xf32>
    %c3_189 = arith.constant 3 : index
    %c0_190 = arith.constant 0 : index
    %c0_191 = arith.constant 0 : index
    %375 = vector.load %arg28[%c3_189, %c0_190, %c0_191] : memref<8x16x8xf32, #tpu.memory_space<vmem>>, vector<1x16x8xf32>
    %376 = vector.shape_cast %375 : vector<1x16x8xf32> to vector<16x8xf32>
    %cst_192 = arith.constant dense<0.000000e+00> : vector<16x128xf32>
    %377 = tpu.matmul %376, %374, %cst_192 {dimension_numbers = #tpu.dot_dimension_numbers<[1], [0], [0], [1], [0, 0, 1, 1], [], []>} : vector<16x8xf32>, vector<8x128xf32>, vector<16x128xf32> -> vector<16x128xf32>
    %c3_193 = arith.constant 3 : index
    %c0_194 = arith.constant 0 : index
    %c0_195 = arith.constant 0 : index
    %378 = vector.load %arg29[%c3_193, %c0_194, %c0_195] : memref<8x16x1xf32, #tpu.memory_space<vmem>>, vector<1x16x1xf32>
    %379 = vector.shape_cast %378 : vector<1x16x1xf32> to vector<16x1xf32>
    %380 = vector.broadcast %379 : vector<16x1xf32> to vector<16x128xf32>
    %381 = arith.addf %377, %380 : vector<16x128xf32>
    %382 = vector.extract_strided_slice %381 {offsets = [0, 0], sizes = [8, 128], strides = [1, 1]} : vector<16x128xf32> to vector<8x128xf32>
    %383 = arith.addf %318, %382 : vector<8x128xf32>
    %cst_196 = arith.constant 0.707106769 : f32
    %384 = vector.broadcast %cst_196 : f32 to vector<8x128xf32>
    %385 = arith.mulf %383, %384 : vector<8x128xf32>
    %386 = vector.extract_strided_slice %381 {offsets = [8, 0], sizes = [8, 128], strides = [1, 1]} : vector<16x128xf32> to vector<8x128xf32>
    %387 = arith.addf %320, %386 : vector<8x128xf32>
    %388 = vector.extract_strided_slice %27 {offsets = [32, 0], sizes = [8, 1], strides = [1, 1]} : vector<64x1xf32> to vector<8x1xf32>
    %389 = vector.broadcast %388 : vector<8x1xf32> to vector<8x128xf32>
    %390 = arith.addf %385, %389 : vector<8x128xf32>
    %cst_197 = arith.constant 0.000000e+00 : f32
    %391 = vector.broadcast %cst_197 : f32 to vector<8x1xf32>
    %c1_i32_198 = arith.constant 1 : i32
    %392 = vector.broadcast %c1_i32_198 : i32 to vector<1x128xi32>
    %393 = arith.cmpi sge, %108, %392 : vector<1x128xi32>
    %394 = vector.extract_strided_slice %390 {offsets = [0, 0], sizes = [8, 127], strides = [1, 1]} : vector<8x128xf32> to vector<8x127xf32>
    %395 = tpu.concatenate %391, %394 in 1 : vector<8x1xf32>, vector<8x127xf32> -> vector<8x128xf32>
    %cst_199 = arith.constant 0.000000e+00 : f32
    %396 = vector.shape_cast %393 : vector<1x128xi1> to vector<1x128xi1>
    %397 = vector.broadcast %396 : vector<1x128xi1> to vector<8x128xi1>
    %398 = vector.broadcast %cst_199 : f32 to vector<8x128xf32>
    %399 = arith.select %397, %395, %398 : vector<8x128xi1>, vector<8x128xf32>
    %c23_i32_200 = arith.constant 23 : i32
    %400 = vector.broadcast %c23_i32_200 : i32 to vector<1x128xi32>
    %401 = arith.cmpi slt, %108, %400 : vector<1x128xi32>
    %402 = vector.extract_strided_slice %390 {offsets = [0, 1], sizes = [8, 127], strides = [1, 1]} : vector<8x128xf32> to vector<8x127xf32>
    %403 = tpu.concatenate %402, %391 in 1 : vector<8x127xf32>, vector<8x1xf32> -> vector<8x128xf32>
    %cst_201 = arith.constant 0.000000e+00 : f32
    %404 = vector.shape_cast %401 : vector<1x128xi1> to vector<1x128xi1>
    %405 = vector.broadcast %404 : vector<1x128xi1> to vector<8x128xi1>
    %406 = vector.broadcast %cst_201 : f32 to vector<8x128xf32>
    %407 = arith.select %405, %403, %406 : vector<8x128xi1>, vector<8x128xf32>
    %c4_202 = arith.constant 4 : index
    %c0_203 = arith.constant 0 : index
    %c0_204 = arith.constant 0 : index
    %408 = vector.load %arg24[%c4_202, %c0_203, %c0_204] : memref<8x16x1xf32, #tpu.memory_space<vmem>>, vector<1x16x1xf32>
    %409 = vector.shape_cast %408 : vector<1x16x1xf32> to vector<16x1xf32>
    %410 = vector.broadcast %409 : vector<16x1xf32> to vector<16x128xf32>
    %411 = vector.broadcast %107 : vector<1x128xf32> to vector<16x128xf32>
    %412 = arith.mulf %410, %411 : vector<16x128xf32>
    %c4_205 = arith.constant 4 : index
    %c0_206 = arith.constant 0 : index
    %c0_207 = arith.constant 0 : index
    %413 = vector.load %arg25[%c4_205, %c0_206, %c0_207] : memref<8x16x1xf32, #tpu.memory_space<vmem>>, vector<1x16x1xf32>
    %414 = vector.shape_cast %413 : vector<1x16x1xf32> to vector<16x1xf32>
    %415 = vector.broadcast %414 : vector<16x1xf32> to vector<16x128xf32>
    %416 = arith.addf %412, %415 : vector<16x128xf32>
    %c12 = arith.constant 12 : index
    %c0_208 = arith.constant 0 : index
    %c0_209 = arith.constant 0 : index
    %417 = vector.load %arg26[%c12, %c0_208, %c0_209] : memref<24x16x8xf32, #tpu.memory_space<vmem>>, vector<1x16x8xf32>
    %418 = vector.shape_cast %417 : vector<1x16x8xf32> to vector<16x8xf32>
    %cst_210 = arith.constant dense<0.000000e+00> : vector<16x128xf32>
    %419 = tpu.matmul %418, %399, %cst_210 {dimension_numbers = #tpu.dot_dimension_numbers<[1], [0], [0], [1], [0, 0, 1, 1], [], []>} : vector<16x8xf32>, vector<8x128xf32>, vector<16x128xf32> -> vector<16x128xf32>
    %c13 = arith.constant 13 : index
    %c0_211 = arith.constant 0 : index
    %c0_212 = arith.constant 0 : index
    %420 = vector.load %arg26[%c13, %c0_211, %c0_212] : memref<24x16x8xf32, #tpu.memory_space<vmem>>, vector<1x16x8xf32>
    %421 = vector.shape_cast %420 : vector<1x16x8xf32> to vector<16x8xf32>
    %cst_213 = arith.constant dense<0.000000e+00> : vector<16x128xf32>
    %422 = tpu.matmul %421, %390, %cst_213 {dimension_numbers = #tpu.dot_dimension_numbers<[1], [0], [0], [1], [0, 0, 1, 1], [], []>} : vector<16x8xf32>, vector<8x128xf32>, vector<16x128xf32> -> vector<16x128xf32>
    %423 = arith.addf %419, %422 : vector<16x128xf32>
    %c14 = arith.constant 14 : index
    %c0_214 = arith.constant 0 : index
    %c0_215 = arith.constant 0 : index
    %424 = vector.load %arg26[%c14, %c0_214, %c0_215] : memref<24x16x8xf32, #tpu.memory_space<vmem>>, vector<1x16x8xf32>
    %425 = vector.shape_cast %424 : vector<1x16x8xf32> to vector<16x8xf32>
    %cst_216 = arith.constant dense<0.000000e+00> : vector<16x128xf32>
    %426 = tpu.matmul %425, %407, %cst_216 {dimension_numbers = #tpu.dot_dimension_numbers<[1], [0], [0], [1], [0, 0, 1, 1], [], []>} : vector<16x8xf32>, vector<8x128xf32>, vector<16x128xf32> -> vector<16x128xf32>
    %427 = arith.addf %423, %426 : vector<16x128xf32>
    %c4_217 = arith.constant 4 : index
    %c0_218 = arith.constant 0 : index
    %c0_219 = arith.constant 0 : index
    %428 = vector.load %arg27[%c4_217, %c0_218, %c0_219] : memref<8x16x1xf32, #tpu.memory_space<vmem>>, vector<1x16x1xf32>
    %429 = vector.shape_cast %428 : vector<1x16x1xf32> to vector<16x1xf32>
    %430 = vector.broadcast %429 : vector<16x1xf32> to vector<16x128xf32>
    %431 = arith.addf %427, %430 : vector<16x128xf32>
    %432 = arith.addf %431, %416 : vector<16x128xf32>
    %433 = vector.extract_strided_slice %432 {offsets = [0, 0], sizes = [8, 128], strides = [1, 1]} : vector<16x128xf32> to vector<8x128xf32>
    %434 = arith.negf %433 : vector<8x128xf32>
    %435 = math.exp %434 : vector<8x128xf32>
    %cst_220 = arith.constant 1.000000e+00 : f32
    %436 = vector.broadcast %cst_220 : f32 to vector<8x128xf32>
    %437 = arith.addf %436, %435 : vector<8x128xf32>
    %438 = arith.divf %436, %437 : vector<8x128xf32>
    %439 = vector.extract_strided_slice %432 {offsets = [8, 0], sizes = [8, 128], strides = [1, 1]} : vector<16x128xf32> to vector<8x128xf32>
    %440 = math.tanh %439 : vector<8x128xf32>
    %441 = arith.mulf %438, %440 : vector<8x128xf32>
    %c4_221 = arith.constant 4 : index
    %c0_222 = arith.constant 0 : index
    %c0_223 = arith.constant 0 : index
    %442 = vector.load %arg28[%c4_221, %c0_222, %c0_223] : memref<8x16x8xf32, #tpu.memory_space<vmem>>, vector<1x16x8xf32>
    %443 = vector.shape_cast %442 : vector<1x16x8xf32> to vector<16x8xf32>
    %cst_224 = arith.constant dense<0.000000e+00> : vector<16x128xf32>
    %444 = tpu.matmul %443, %441, %cst_224 {dimension_numbers = #tpu.dot_dimension_numbers<[1], [0], [0], [1], [0, 0, 1, 1], [], []>} : vector<16x8xf32>, vector<8x128xf32>, vector<16x128xf32> -> vector<16x128xf32>
    %c4_225 = arith.constant 4 : index
    %c0_226 = arith.constant 0 : index
    %c0_227 = arith.constant 0 : index
    %445 = vector.load %arg29[%c4_225, %c0_226, %c0_227] : memref<8x16x1xf32, #tpu.memory_space<vmem>>, vector<1x16x1xf32>
    %446 = vector.shape_cast %445 : vector<1x16x1xf32> to vector<16x1xf32>
    %447 = vector.broadcast %446 : vector<16x1xf32> to vector<16x128xf32>
    %448 = arith.addf %444, %447 : vector<16x128xf32>
    %449 = vector.extract_strided_slice %448 {offsets = [0, 0], sizes = [8, 128], strides = [1, 1]} : vector<16x128xf32> to vector<8x128xf32>
    %450 = arith.addf %385, %449 : vector<8x128xf32>
    %cst_228 = arith.constant 0.707106769 : f32
    %451 = vector.broadcast %cst_228 : f32 to vector<8x128xf32>
    %452 = arith.mulf %450, %451 : vector<8x128xf32>
    %453 = vector.extract_strided_slice %448 {offsets = [8, 0], sizes = [8, 128], strides = [1, 1]} : vector<16x128xf32> to vector<8x128xf32>
    %454 = arith.addf %387, %453 : vector<8x128xf32>
    %455 = vector.extract_strided_slice %27 {offsets = [40, 0], sizes = [8, 1], strides = [1, 1]} : vector<64x1xf32> to vector<8x1xf32>
    %456 = vector.broadcast %455 : vector<8x1xf32> to vector<8x128xf32>
    %457 = arith.addf %452, %456 : vector<8x128xf32>
    %cst_229 = arith.constant 0.000000e+00 : f32
    %458 = vector.broadcast %cst_229 : f32 to vector<8x2xf32>
    %c2_i32_230 = arith.constant 2 : i32
    %459 = vector.broadcast %c2_i32_230 : i32 to vector<1x128xi32>
    %460 = arith.cmpi sge, %108, %459 : vector<1x128xi32>
    %461 = vector.extract_strided_slice %457 {offsets = [0, 0], sizes = [8, 126], strides = [1, 1]} : vector<8x128xf32> to vector<8x126xf32>
    %462 = tpu.concatenate %458, %461 in 1 : vector<8x2xf32>, vector<8x126xf32> -> vector<8x128xf32>
    %cst_231 = arith.constant 0.000000e+00 : f32
    %463 = vector.shape_cast %460 : vector<1x128xi1> to vector<1x128xi1>
    %464 = vector.broadcast %463 : vector<1x128xi1> to vector<8x128xi1>
    %465 = vector.broadcast %cst_231 : f32 to vector<8x128xf32>
    %466 = arith.select %464, %462, %465 : vector<8x128xi1>, vector<8x128xf32>
    %c22_i32_232 = arith.constant 22 : i32
    %467 = vector.broadcast %c22_i32_232 : i32 to vector<1x128xi32>
    %468 = arith.cmpi slt, %108, %467 : vector<1x128xi32>
    %469 = vector.extract_strided_slice %457 {offsets = [0, 2], sizes = [8, 126], strides = [1, 1]} : vector<8x128xf32> to vector<8x126xf32>
    %470 = tpu.concatenate %469, %458 in 1 : vector<8x126xf32>, vector<8x2xf32> -> vector<8x128xf32>
    %cst_233 = arith.constant 0.000000e+00 : f32
    %471 = vector.shape_cast %468 : vector<1x128xi1> to vector<1x128xi1>
    %472 = vector.broadcast %471 : vector<1x128xi1> to vector<8x128xi1>
    %473 = vector.broadcast %cst_233 : f32 to vector<8x128xf32>
    %474 = arith.select %472, %470, %473 : vector<8x128xi1>, vector<8x128xf32>
    %c5_234 = arith.constant 5 : index
    %c0_235 = arith.constant 0 : index
    %c0_236 = arith.constant 0 : index
    %475 = vector.load %arg24[%c5_234, %c0_235, %c0_236] : memref<8x16x1xf32, #tpu.memory_space<vmem>>, vector<1x16x1xf32>
    %476 = vector.shape_cast %475 : vector<1x16x1xf32> to vector<16x1xf32>
    %477 = vector.broadcast %476 : vector<16x1xf32> to vector<16x128xf32>
    %478 = vector.broadcast %107 : vector<1x128xf32> to vector<16x128xf32>
    %479 = arith.mulf %477, %478 : vector<16x128xf32>
    %c5_237 = arith.constant 5 : index
    %c0_238 = arith.constant 0 : index
    %c0_239 = arith.constant 0 : index
    %480 = vector.load %arg25[%c5_237, %c0_238, %c0_239] : memref<8x16x1xf32, #tpu.memory_space<vmem>>, vector<1x16x1xf32>
    %481 = vector.shape_cast %480 : vector<1x16x1xf32> to vector<16x1xf32>
    %482 = vector.broadcast %481 : vector<16x1xf32> to vector<16x128xf32>
    %483 = arith.addf %479, %482 : vector<16x128xf32>
    %c15 = arith.constant 15 : index
    %c0_240 = arith.constant 0 : index
    %c0_241 = arith.constant 0 : index
    %484 = vector.load %arg26[%c15, %c0_240, %c0_241] : memref<24x16x8xf32, #tpu.memory_space<vmem>>, vector<1x16x8xf32>
    %485 = vector.shape_cast %484 : vector<1x16x8xf32> to vector<16x8xf32>
    %cst_242 = arith.constant dense<0.000000e+00> : vector<16x128xf32>
    %486 = tpu.matmul %485, %466, %cst_242 {dimension_numbers = #tpu.dot_dimension_numbers<[1], [0], [0], [1], [0, 0, 1, 1], [], []>} : vector<16x8xf32>, vector<8x128xf32>, vector<16x128xf32> -> vector<16x128xf32>
    %c16 = arith.constant 16 : index
    %c0_243 = arith.constant 0 : index
    %c0_244 = arith.constant 0 : index
    %487 = vector.load %arg26[%c16, %c0_243, %c0_244] : memref<24x16x8xf32, #tpu.memory_space<vmem>>, vector<1x16x8xf32>
    %488 = vector.shape_cast %487 : vector<1x16x8xf32> to vector<16x8xf32>
    %cst_245 = arith.constant dense<0.000000e+00> : vector<16x128xf32>
    %489 = tpu.matmul %488, %457, %cst_245 {dimension_numbers = #tpu.dot_dimension_numbers<[1], [0], [0], [1], [0, 0, 1, 1], [], []>} : vector<16x8xf32>, vector<8x128xf32>, vector<16x128xf32> -> vector<16x128xf32>
    %490 = arith.addf %486, %489 : vector<16x128xf32>
    %c17 = arith.constant 17 : index
    %c0_246 = arith.constant 0 : index
    %c0_247 = arith.constant 0 : index
    %491 = vector.load %arg26[%c17, %c0_246, %c0_247] : memref<24x16x8xf32, #tpu.memory_space<vmem>>, vector<1x16x8xf32>
    %492 = vector.shape_cast %491 : vector<1x16x8xf32> to vector<16x8xf32>
    %cst_248 = arith.constant dense<0.000000e+00> : vector<16x128xf32>
    %493 = tpu.matmul %492, %474, %cst_248 {dimension_numbers = #tpu.dot_dimension_numbers<[1], [0], [0], [1], [0, 0, 1, 1], [], []>} : vector<16x8xf32>, vector<8x128xf32>, vector<16x128xf32> -> vector<16x128xf32>
    %494 = arith.addf %490, %493 : vector<16x128xf32>
    %c5_249 = arith.constant 5 : index
    %c0_250 = arith.constant 0 : index
    %c0_251 = arith.constant 0 : index
    %495 = vector.load %arg27[%c5_249, %c0_250, %c0_251] : memref<8x16x1xf32, #tpu.memory_space<vmem>>, vector<1x16x1xf32>
    %496 = vector.shape_cast %495 : vector<1x16x1xf32> to vector<16x1xf32>
    %497 = vector.broadcast %496 : vector<16x1xf32> to vector<16x128xf32>
    %498 = arith.addf %494, %497 : vector<16x128xf32>
    %499 = arith.addf %498, %483 : vector<16x128xf32>
    %500 = vector.extract_strided_slice %499 {offsets = [0, 0], sizes = [8, 128], strides = [1, 1]} : vector<16x128xf32> to vector<8x128xf32>
    %501 = arith.negf %500 : vector<8x128xf32>
    %502 = math.exp %501 : vector<8x128xf32>
    %cst_252 = arith.constant 1.000000e+00 : f32
    %503 = vector.broadcast %cst_252 : f32 to vector<8x128xf32>
    %504 = arith.addf %503, %502 : vector<8x128xf32>
    %505 = arith.divf %503, %504 : vector<8x128xf32>
    %506 = vector.extract_strided_slice %499 {offsets = [8, 0], sizes = [8, 128], strides = [1, 1]} : vector<16x128xf32> to vector<8x128xf32>
    %507 = math.tanh %506 : vector<8x128xf32>
    %508 = arith.mulf %505, %507 : vector<8x128xf32>
    %c5_253 = arith.constant 5 : index
    %c0_254 = arith.constant 0 : index
    %c0_255 = arith.constant 0 : index
    %509 = vector.load %arg28[%c5_253, %c0_254, %c0_255] : memref<8x16x8xf32, #tpu.memory_space<vmem>>, vector<1x16x8xf32>
    %510 = vector.shape_cast %509 : vector<1x16x8xf32> to vector<16x8xf32>
    %cst_256 = arith.constant dense<0.000000e+00> : vector<16x128xf32>
    %511 = tpu.matmul %510, %508, %cst_256 {dimension_numbers = #tpu.dot_dimension_numbers<[1], [0], [0], [1], [0, 0, 1, 1], [], []>} : vector<16x8xf32>, vector<8x128xf32>, vector<16x128xf32> -> vector<16x128xf32>
    %c5_257 = arith.constant 5 : index
    %c0_258 = arith.constant 0 : index
    %c0_259 = arith.constant 0 : index
    %512 = vector.load %arg29[%c5_257, %c0_258, %c0_259] : memref<8x16x1xf32, #tpu.memory_space<vmem>>, vector<1x16x1xf32>
    %513 = vector.shape_cast %512 : vector<1x16x1xf32> to vector<16x1xf32>
    %514 = vector.broadcast %513 : vector<16x1xf32> to vector<16x128xf32>
    %515 = arith.addf %511, %514 : vector<16x128xf32>
    %516 = vector.extract_strided_slice %515 {offsets = [0, 0], sizes = [8, 128], strides = [1, 1]} : vector<16x128xf32> to vector<8x128xf32>
    %517 = arith.addf %452, %516 : vector<8x128xf32>
    %cst_260 = arith.constant 0.707106769 : f32
    %518 = vector.broadcast %cst_260 : f32 to vector<8x128xf32>
    %519 = arith.mulf %517, %518 : vector<8x128xf32>
    %520 = vector.extract_strided_slice %515 {offsets = [8, 0], sizes = [8, 128], strides = [1, 1]} : vector<16x128xf32> to vector<8x128xf32>
    %521 = arith.addf %454, %520 : vector<8x128xf32>
    %522 = vector.extract_strided_slice %27 {offsets = [48, 0], sizes = [8, 1], strides = [1, 1]} : vector<64x1xf32> to vector<8x1xf32>
    %523 = vector.broadcast %522 : vector<8x1xf32> to vector<8x128xf32>
    %524 = arith.addf %519, %523 : vector<8x128xf32>
    %cst_261 = arith.constant 0.000000e+00 : f32
    %525 = vector.broadcast %cst_261 : f32 to vector<8x1xf32>
    %c1_i32_262 = arith.constant 1 : i32
    %526 = vector.broadcast %c1_i32_262 : i32 to vector<1x128xi32>
    %527 = arith.cmpi sge, %108, %526 : vector<1x128xi32>
    %528 = vector.extract_strided_slice %524 {offsets = [0, 0], sizes = [8, 127], strides = [1, 1]} : vector<8x128xf32> to vector<8x127xf32>
    %529 = tpu.concatenate %525, %528 in 1 : vector<8x1xf32>, vector<8x127xf32> -> vector<8x128xf32>
    %cst_263 = arith.constant 0.000000e+00 : f32
    %530 = vector.shape_cast %527 : vector<1x128xi1> to vector<1x128xi1>
    %531 = vector.broadcast %530 : vector<1x128xi1> to vector<8x128xi1>
    %532 = vector.broadcast %cst_263 : f32 to vector<8x128xf32>
    %533 = arith.select %531, %529, %532 : vector<8x128xi1>, vector<8x128xf32>
    %c23_i32_264 = arith.constant 23 : i32
    %534 = vector.broadcast %c23_i32_264 : i32 to vector<1x128xi32>
    %535 = arith.cmpi slt, %108, %534 : vector<1x128xi32>
    %536 = vector.extract_strided_slice %524 {offsets = [0, 1], sizes = [8, 127], strides = [1, 1]} : vector<8x128xf32> to vector<8x127xf32>
    %537 = tpu.concatenate %536, %525 in 1 : vector<8x127xf32>, vector<8x1xf32> -> vector<8x128xf32>
    %cst_265 = arith.constant 0.000000e+00 : f32
    %538 = vector.shape_cast %535 : vector<1x128xi1> to vector<1x128xi1>
    %539 = vector.broadcast %538 : vector<1x128xi1> to vector<8x128xi1>
    %540 = vector.broadcast %cst_265 : f32 to vector<8x128xf32>
    %541 = arith.select %539, %537, %540 : vector<8x128xi1>, vector<8x128xf32>
    %c6_266 = arith.constant 6 : index
    %c0_267 = arith.constant 0 : index
    %c0_268 = arith.constant 0 : index
    %542 = vector.load %arg24[%c6_266, %c0_267, %c0_268] : memref<8x16x1xf32, #tpu.memory_space<vmem>>, vector<1x16x1xf32>
    %543 = vector.shape_cast %542 : vector<1x16x1xf32> to vector<16x1xf32>
    %544 = vector.broadcast %543 : vector<16x1xf32> to vector<16x128xf32>
    %545 = vector.broadcast %107 : vector<1x128xf32> to vector<16x128xf32>
    %546 = arith.mulf %544, %545 : vector<16x128xf32>
    %c6_269 = arith.constant 6 : index
    %c0_270 = arith.constant 0 : index
    %c0_271 = arith.constant 0 : index
    %547 = vector.load %arg25[%c6_269, %c0_270, %c0_271] : memref<8x16x1xf32, #tpu.memory_space<vmem>>, vector<1x16x1xf32>
    %548 = vector.shape_cast %547 : vector<1x16x1xf32> to vector<16x1xf32>
    %549 = vector.broadcast %548 : vector<16x1xf32> to vector<16x128xf32>
    %550 = arith.addf %546, %549 : vector<16x128xf32>
    %c18 = arith.constant 18 : index
    %c0_272 = arith.constant 0 : index
    %c0_273 = arith.constant 0 : index
    %551 = vector.load %arg26[%c18, %c0_272, %c0_273] : memref<24x16x8xf32, #tpu.memory_space<vmem>>, vector<1x16x8xf32>
    %552 = vector.shape_cast %551 : vector<1x16x8xf32> to vector<16x8xf32>
    %cst_274 = arith.constant dense<0.000000e+00> : vector<16x128xf32>
    %553 = tpu.matmul %552, %533, %cst_274 {dimension_numbers = #tpu.dot_dimension_numbers<[1], [0], [0], [1], [0, 0, 1, 1], [], []>} : vector<16x8xf32>, vector<8x128xf32>, vector<16x128xf32> -> vector<16x128xf32>
    %c19 = arith.constant 19 : index
    %c0_275 = arith.constant 0 : index
    %c0_276 = arith.constant 0 : index
    %554 = vector.load %arg26[%c19, %c0_275, %c0_276] : memref<24x16x8xf32, #tpu.memory_space<vmem>>, vector<1x16x8xf32>
    %555 = vector.shape_cast %554 : vector<1x16x8xf32> to vector<16x8xf32>
    %cst_277 = arith.constant dense<0.000000e+00> : vector<16x128xf32>
    %556 = tpu.matmul %555, %524, %cst_277 {dimension_numbers = #tpu.dot_dimension_numbers<[1], [0], [0], [1], [0, 0, 1, 1], [], []>} : vector<16x8xf32>, vector<8x128xf32>, vector<16x128xf32> -> vector<16x128xf32>
    %557 = arith.addf %553, %556 : vector<16x128xf32>
    %c20 = arith.constant 20 : index
    %c0_278 = arith.constant 0 : index
    %c0_279 = arith.constant 0 : index
    %558 = vector.load %arg26[%c20, %c0_278, %c0_279] : memref<24x16x8xf32, #tpu.memory_space<vmem>>, vector<1x16x8xf32>
    %559 = vector.shape_cast %558 : vector<1x16x8xf32> to vector<16x8xf32>
    %cst_280 = arith.constant dense<0.000000e+00> : vector<16x128xf32>
    %560 = tpu.matmul %559, %541, %cst_280 {dimension_numbers = #tpu.dot_dimension_numbers<[1], [0], [0], [1], [0, 0, 1, 1], [], []>} : vector<16x8xf32>, vector<8x128xf32>, vector<16x128xf32> -> vector<16x128xf32>
    %561 = arith.addf %557, %560 : vector<16x128xf32>
    %c6_281 = arith.constant 6 : index
    %c0_282 = arith.constant 0 : index
    %c0_283 = arith.constant 0 : index
    %562 = vector.load %arg27[%c6_281, %c0_282, %c0_283] : memref<8x16x1xf32, #tpu.memory_space<vmem>>, vector<1x16x1xf32>
    %563 = vector.shape_cast %562 : vector<1x16x1xf32> to vector<16x1xf32>
    %564 = vector.broadcast %563 : vector<16x1xf32> to vector<16x128xf32>
    %565 = arith.addf %561, %564 : vector<16x128xf32>
    %566 = arith.addf %565, %550 : vector<16x128xf32>
    %567 = vector.extract_strided_slice %566 {offsets = [0, 0], sizes = [8, 128], strides = [1, 1]} : vector<16x128xf32> to vector<8x128xf32>
    %568 = arith.negf %567 : vector<8x128xf32>
    %569 = math.exp %568 : vector<8x128xf32>
    %cst_284 = arith.constant 1.000000e+00 : f32
    %570 = vector.broadcast %cst_284 : f32 to vector<8x128xf32>
    %571 = arith.addf %570, %569 : vector<8x128xf32>
    %572 = arith.divf %570, %571 : vector<8x128xf32>
    %573 = vector.extract_strided_slice %566 {offsets = [8, 0], sizes = [8, 128], strides = [1, 1]} : vector<16x128xf32> to vector<8x128xf32>
    %574 = math.tanh %573 : vector<8x128xf32>
    %575 = arith.mulf %572, %574 : vector<8x128xf32>
    %c6_285 = arith.constant 6 : index
    %c0_286 = arith.constant 0 : index
    %c0_287 = arith.constant 0 : index
    %576 = vector.load %arg28[%c6_285, %c0_286, %c0_287] : memref<8x16x8xf32, #tpu.memory_space<vmem>>, vector<1x16x8xf32>
    %577 = vector.shape_cast %576 : vector<1x16x8xf32> to vector<16x8xf32>
    %cst_288 = arith.constant dense<0.000000e+00> : vector<16x128xf32>
    %578 = tpu.matmul %577, %575, %cst_288 {dimension_numbers = #tpu.dot_dimension_numbers<[1], [0], [0], [1], [0, 0, 1, 1], [], []>} : vector<16x8xf32>, vector<8x128xf32>, vector<16x128xf32> -> vector<16x128xf32>
    %c6_289 = arith.constant 6 : index
    %c0_290 = arith.constant 0 : index
    %c0_291 = arith.constant 0 : index
    %579 = vector.load %arg29[%c6_289, %c0_290, %c0_291] : memref<8x16x1xf32, #tpu.memory_space<vmem>>, vector<1x16x1xf32>
    %580 = vector.shape_cast %579 : vector<1x16x1xf32> to vector<16x1xf32>
    %581 = vector.broadcast %580 : vector<16x1xf32> to vector<16x128xf32>
    %582 = arith.addf %578, %581 : vector<16x128xf32>
    %583 = vector.extract_strided_slice %582 {offsets = [0, 0], sizes = [8, 128], strides = [1, 1]} : vector<16x128xf32> to vector<8x128xf32>
    %584 = arith.addf %519, %583 : vector<8x128xf32>
    %cst_292 = arith.constant 0.707106769 : f32
    %585 = vector.broadcast %cst_292 : f32 to vector<8x128xf32>
    %586 = arith.mulf %584, %585 : vector<8x128xf32>
    %587 = vector.extract_strided_slice %582 {offsets = [8, 0], sizes = [8, 128], strides = [1, 1]} : vector<16x128xf32> to vector<8x128xf32>
    %588 = arith.addf %521, %587 : vector<8x128xf32>
    %589 = vector.extract_strided_slice %27 {offsets = [56, 0], sizes = [8, 1], strides = [1, 1]} : vector<64x1xf32> to vector<8x1xf32>
    %590 = vector.broadcast %589 : vector<8x1xf32> to vector<8x128xf32>
    %591 = arith.addf %586, %590 : vector<8x128xf32>
    %cst_293 = arith.constant 0.000000e+00 : f32
    %592 = vector.broadcast %cst_293 : f32 to vector<8x2xf32>
    %c2_i32_294 = arith.constant 2 : i32
    %593 = vector.broadcast %c2_i32_294 : i32 to vector<1x128xi32>
    %594 = arith.cmpi sge, %108, %593 : vector<1x128xi32>
    %595 = vector.extract_strided_slice %591 {offsets = [0, 0], sizes = [8, 126], strides = [1, 1]} : vector<8x128xf32> to vector<8x126xf32>
    %596 = tpu.concatenate %592, %595 in 1 : vector<8x2xf32>, vector<8x126xf32> -> vector<8x128xf32>
    %cst_295 = arith.constant 0.000000e+00 : f32
    %597 = vector.shape_cast %594 : vector<1x128xi1> to vector<1x128xi1>
    %598 = vector.broadcast %597 : vector<1x128xi1> to vector<8x128xi1>
    %599 = vector.broadcast %cst_295 : f32 to vector<8x128xf32>
    %600 = arith.select %598, %596, %599 : vector<8x128xi1>, vector<8x128xf32>
    %c22_i32_296 = arith.constant 22 : i32
    %601 = vector.broadcast %c22_i32_296 : i32 to vector<1x128xi32>
    %602 = arith.cmpi slt, %108, %601 : vector<1x128xi32>
    %603 = vector.extract_strided_slice %591 {offsets = [0, 2], sizes = [8, 126], strides = [1, 1]} : vector<8x128xf32> to vector<8x126xf32>
    %604 = tpu.concatenate %603, %592 in 1 : vector<8x126xf32>, vector<8x2xf32> -> vector<8x128xf32>
    %cst_297 = arith.constant 0.000000e+00 : f32
    %605 = vector.shape_cast %602 : vector<1x128xi1> to vector<1x128xi1>
    %606 = vector.broadcast %605 : vector<1x128xi1> to vector<8x128xi1>
    %607 = vector.broadcast %cst_297 : f32 to vector<8x128xf32>
    %608 = arith.select %606, %604, %607 : vector<8x128xi1>, vector<8x128xf32>
    %c7_298 = arith.constant 7 : index
    %c0_299 = arith.constant 0 : index
    %c0_300 = arith.constant 0 : index
    %609 = vector.load %arg24[%c7_298, %c0_299, %c0_300] : memref<8x16x1xf32, #tpu.memory_space<vmem>>, vector<1x16x1xf32>
    %610 = vector.shape_cast %609 : vector<1x16x1xf32> to vector<16x1xf32>
    %611 = vector.broadcast %610 : vector<16x1xf32> to vector<16x128xf32>
    %612 = vector.broadcast %107 : vector<1x128xf32> to vector<16x128xf32>
    %613 = arith.mulf %611, %612 : vector<16x128xf32>
    %c7_301 = arith.constant 7 : index
    %c0_302 = arith.constant 0 : index
    %c0_303 = arith.constant 0 : index
    %614 = vector.load %arg25[%c7_301, %c0_302, %c0_303] : memref<8x16x1xf32, #tpu.memory_space<vmem>>, vector<1x16x1xf32>
    %615 = vector.shape_cast %614 : vector<1x16x1xf32> to vector<16x1xf32>
    %616 = vector.broadcast %615 : vector<16x1xf32> to vector<16x128xf32>
    %617 = arith.addf %613, %616 : vector<16x128xf32>
    %c21 = arith.constant 21 : index
    %c0_304 = arith.constant 0 : index
    %c0_305 = arith.constant 0 : index
    %618 = vector.load %arg26[%c21, %c0_304, %c0_305] : memref<24x16x8xf32, #tpu.memory_space<vmem>>, vector<1x16x8xf32>
    %619 = vector.shape_cast %618 : vector<1x16x8xf32> to vector<16x8xf32>
    %cst_306 = arith.constant dense<0.000000e+00> : vector<16x128xf32>
    %620 = tpu.matmul %619, %600, %cst_306 {dimension_numbers = #tpu.dot_dimension_numbers<[1], [0], [0], [1], [0, 0, 1, 1], [], []>} : vector<16x8xf32>, vector<8x128xf32>, vector<16x128xf32> -> vector<16x128xf32>
    %c22 = arith.constant 22 : index
    %c0_307 = arith.constant 0 : index
    %c0_308 = arith.constant 0 : index
    %621 = vector.load %arg26[%c22, %c0_307, %c0_308] : memref<24x16x8xf32, #tpu.memory_space<vmem>>, vector<1x16x8xf32>
    %622 = vector.shape_cast %621 : vector<1x16x8xf32> to vector<16x8xf32>
    %cst_309 = arith.constant dense<0.000000e+00> : vector<16x128xf32>
    %623 = tpu.matmul %622, %591, %cst_309 {dimension_numbers = #tpu.dot_dimension_numbers<[1], [0], [0], [1], [0, 0, 1, 1], [], []>} : vector<16x8xf32>, vector<8x128xf32>, vector<16x128xf32> -> vector<16x128xf32>
    %624 = arith.addf %620, %623 : vector<16x128xf32>
    %c23 = arith.constant 23 : index
    %c0_310 = arith.constant 0 : index
    %c0_311 = arith.constant 0 : index
    %625 = vector.load %arg26[%c23, %c0_310, %c0_311] : memref<24x16x8xf32, #tpu.memory_space<vmem>>, vector<1x16x8xf32>
    %626 = vector.shape_cast %625 : vector<1x16x8xf32> to vector<16x8xf32>
    %cst_312 = arith.constant dense<0.000000e+00> : vector<16x128xf32>
    %627 = tpu.matmul %626, %608, %cst_312 {dimension_numbers = #tpu.dot_dimension_numbers<[1], [0], [0], [1], [0, 0, 1, 1], [], []>} : vector<16x8xf32>, vector<8x128xf32>, vector<16x128xf32> -> vector<16x128xf32>
    %628 = arith.addf %624, %627 : vector<16x128xf32>
    %c7_313 = arith.constant 7 : index
    %c0_314 = arith.constant 0 : index
    %c0_315 = arith.constant 0 : index
    %629 = vector.load %arg27[%c7_313, %c0_314, %c0_315] : memref<8x16x1xf32, #tpu.memory_space<vmem>>, vector<1x16x1xf32>
    %630 = vector.shape_cast %629 : vector<1x16x1xf32> to vector<16x1xf32>
    %631 = vector.broadcast %630 : vector<16x1xf32> to vector<16x128xf32>
    %632 = arith.addf %628, %631 : vector<16x128xf32>
    %633 = arith.addf %632, %617 : vector<16x128xf32>
    %634 = vector.extract_strided_slice %633 {offsets = [0, 0], sizes = [8, 128], strides = [1, 1]} : vector<16x128xf32> to vector<8x128xf32>
    %635 = arith.negf %634 : vector<8x128xf32>
    %636 = math.exp %635 : vector<8x128xf32>
    %cst_316 = arith.constant 1.000000e+00 : f32
    %637 = vector.broadcast %cst_316 : f32 to vector<8x128xf32>
    %638 = arith.addf %637, %636 : vector<8x128xf32>
    %639 = arith.divf %637, %638 : vector<8x128xf32>
    %640 = vector.extract_strided_slice %633 {offsets = [8, 0], sizes = [8, 128], strides = [1, 1]} : vector<16x128xf32> to vector<8x128xf32>
    %641 = math.tanh %640 : vector<8x128xf32>
    %642 = arith.mulf %639, %641 : vector<8x128xf32>
    %c7_317 = arith.constant 7 : index
    %c0_318 = arith.constant 0 : index
    %c0_319 = arith.constant 0 : index
    %643 = vector.load %arg28[%c7_317, %c0_318, %c0_319] : memref<8x16x8xf32, #tpu.memory_space<vmem>>, vector<1x16x8xf32>
    %644 = vector.shape_cast %643 : vector<1x16x8xf32> to vector<16x8xf32>
    %cst_320 = arith.constant dense<0.000000e+00> : vector<16x128xf32>
    %645 = tpu.matmul %644, %642, %cst_320 {dimension_numbers = #tpu.dot_dimension_numbers<[1], [0], [0], [1], [0, 0, 1, 1], [], []>} : vector<16x8xf32>, vector<8x128xf32>, vector<16x128xf32> -> vector<16x128xf32>
    %c7_321 = arith.constant 7 : index
    %c0_322 = arith.constant 0 : index
    %c0_323 = arith.constant 0 : index
    %646 = vector.load %arg29[%c7_321, %c0_322, %c0_323] : memref<8x16x1xf32, #tpu.memory_space<vmem>>, vector<1x16x1xf32>
    %647 = vector.shape_cast %646 : vector<1x16x1xf32> to vector<16x1xf32>
    %648 = vector.broadcast %647 : vector<16x1xf32> to vector<16x128xf32>
    %649 = arith.addf %645, %648 : vector<16x128xf32>
    %650 = vector.extract_strided_slice %649 {offsets = [8, 0], sizes = [8, 128], strides = [1, 1]} : vector<16x128xf32> to vector<8x128xf32>
    %651 = arith.addf %588, %650 : vector<8x128xf32>
    %cst_324 = arith.constant 0.353553385 : f32
    %652 = vector.broadcast %cst_324 : f32 to vector<8x128xf32>
    %653 = arith.mulf %651, %652 : vector<8x128xf32>
    %c0_325 = arith.constant 0 : index
    %c0_326 = arith.constant 0 : index
    %654 = vector.load %arg30[%c0_325, %c0_326] : memref<8x8xf32, #tpu.memory_space<vmem>>, vector<8x8xf32>
    %cst_327 = arith.constant dense<0.000000e+00> : vector<8x128xf32>
    %655 = tpu.matmul %654, %653, %cst_327 {dimension_numbers = #tpu.dot_dimension_numbers<[1], [0], [0], [1], [0, 0, 1, 1], [], []>} : vector<8x8xf32>, vector<8x128xf32>, vector<8x128xf32> -> vector<8x128xf32>
    %c0_328 = arith.constant 0 : index
    %c0_329 = arith.constant 0 : index
    %656 = vector.load %arg31[%c0_328, %c0_329] : memref<8x1xf32, #tpu.memory_space<vmem>>, vector<8x1xf32>
    %657 = vector.broadcast %656 : vector<8x1xf32> to vector<8x128xf32>
    %658 = arith.addf %655, %657 : vector<8x128xf32>
    %cst_330 = arith.constant 0.000000e+00 : f32
    %659 = vector.broadcast %cst_330 : f32 to vector<8x128xf32>
    %660 = arith.maximumf %658, %659 : vector<8x128xf32>
    %c0_331 = arith.constant 0 : index
    %c0_332 = arith.constant 0 : index
    %661 = vector.load %arg32[%c0_331, %c0_332] : memref<1x8xf32, #tpu.memory_space<vmem>>, vector<1x8xf32>
    %cst_333 = arith.constant dense<0.000000e+00> : vector<1x128xf32>
    %662 = tpu.matmul %661, %660, %cst_333 {dimension_numbers = #tpu.dot_dimension_numbers<[1], [0], [0], [1], [0, 0, 1, 1], [], []>} : vector<1x8xf32>, vector<8x128xf32>, vector<1x128xf32> -> vector<1x128xf32>
    %c0_334 = arith.constant 0 : index
    %c0_335 = arith.constant 0 : index
    %663 = vector.load %arg33[%c0_334, %c0_335] : memref<1x1xf32, #tpu.memory_space<vmem>>, vector<1x1xf32>
    %664 = vector.broadcast %663 : vector<1x1xf32> to vector<1x128xf32>
    %665 = arith.addf %662, %664 : vector<1x128xf32>
    %c0_336 = arith.constant 0 : index
    %c0_337 = arith.constant 0 : index
    %666 = vector.load %arg34[%c0_336, %c0_337] : memref<1x128xf32, #tpu.memory_space<vmem>>, vector<1x128xf32>
    tpu.vector_store %arg34[%c0_336, %c0_337], %665 {strides = array<i32>} : memref<1x128xf32, #tpu.memory_space<vmem>>, vector<1x128xf32>,
    return
  }
}

</mosaic_0001>

<llo_original>
// kernel: tile.9
$region0: #{tile.9}
  %s0 = inlined_call_operand.vmem [shape: s32[2,24], index: 0, kind: input, shape index: {}]
  %s1 = inlined_call_operand.vmem [shape: s32[48], index: 1, kind: output, shape index: {}]
  $region1: #{tile.9} parent=0
    #allocation0 [shape = 'u8[4096]{0}', space=vmem, size = 0x1000, scoped, tag = 'scoped mem for output reshape']
    #allocation1 [shape = 'u8[4096]{0}', space=vmem, size = 0x1000, scoped, tag = 'scoped mem for input reshape']
    %s3 = sshll.u32 1, 2
    %s4 = ssub.s32 %s3, 1
    %v5 = vld [vmem:[%s0] sm:%s4]
    %6 = vst [vmem:[#allocation1] sm:%s4] %v5
    %v7 = vld [vmem:[#allocation1] sm:$0x1]
    %vm8 = vcmask 195584
    %9 = vst.msk [vmem:[#allocation0] sm:$0x1] %vm8, %v7
    %s10 = scalar_lea.vmem [#allocation1], 1
    %v11 = vld [vmem:[%s10] sm:$0x1]
    %12 = vrot.lane.b32.xlu0 %v11, 24
    %v13 = vpop.permute.xlu0 %12
    %vm14 = vcmask 392384
    %15 = vst.msk [vmem:[#allocation0] sm:$0x1] %vm14, %v13
    %s17 = sshll.u32 1, 1
    %s18 = ssub.s32 %s17, 1
    %v20 = vld [vmem:[#allocation0] sm:%s18]
    %s21 = sshll.u32 1, 1
    %s22 = ssub.s32 %s21, 1
    %23 = vst [vmem:[%s1] sm:%s22] %v20

// kernel: epsilon_theta_cond_forward.1
$region0: #{epsilon_theta_cond_forward.1}
  #allocation0 [shape = 'u32[]', space=smem, size = 0x4, offset = 0x4, fixed_abs, tag = 'smem constant byte address 0x4 - core index']
  #allocation1 [shape = 'u32[144,128]{1,0:T(1,128)}', space=vmem, size = 0x12000, scoped, tag = 'internal scratch']
  #allocation2 [shape = 'f32[1,1]{1,0:T(1,128)S(1)}', space=vmem, size = 0x200, scoped, tag = 'scoped memory for epsilon_theta_cond_forward.1']
  %s0 = inlined_call_operand.smem [shape: u32[35], index: -1, kind: input, shape index: {}]
  %s1 = sld [smem:[%s0]]
  %s2 = scalar_lea.smem %s0, 1
  %s3 = sld [smem:[%s2]]
  %s4 = scalar_lea.smem %s0, 2
  %s5 = sld [smem:[%s4]]
  %s6 = scalar_lea.smem %s0, 3
  %s7 = sld [smem:[%s6]]
  %s8 = scalar_lea.smem %s0, 4
  %s9 = sld [smem:[%s8]]
  %s10 = scalar_lea.smem %s0, 5
  %s11 = sld [smem:[%s10]]
  %s12 = scalar_lea.smem %s0, 6
  %s13 = sld [smem:[%s12]]
  %s14 = scalar_lea.smem %s0, 7
  %s15 = sld [smem:[%s14]]
  %s16 = scalar_lea.smem %s0, 8
  %s17 = sld [smem:[%s16]]
  %s18 = scalar_lea.smem %s0, 9
  %s19 = sld [smem:[%s18]]
  %s20 = scalar_lea.smem %s0, 10
  %s21 = sld [smem:[%s20]]
  %s22 = scalar_lea.smem %s0, 11
  %s23 = sld [smem:[%s22]]
  %s24 = scalar_lea.smem %s0, 12
  %s25 = sld [smem:[%s24]]
  %s26 = scalar_lea.smem %s0, 13
  %s27 = sld [smem:[%s26]]
  %s28 = scalar_lea.smem %s0, 14
  %s29 = sld [smem:[%s28]]
  %s30 = scalar_lea.smem %s0, 15
  %s31 = sld [smem:[%s30]]
  %s32 = scalar_lea.smem %s0, 16
  %s33 = sld [smem:[%s32]]
  %s34 = scalar_lea.smem %s0, 17
  %s35 = sld [smem:[%s34]]
  %s36 = scalar_lea.smem %s0, 18
  %s37 = sld [smem:[%s36]]
  %s38 = scalar_lea.smem %s0, 19
  %s39 = sld [smem:[%s38]]
  %s40 = scalar_lea.smem %s0, 20
  %s41 = sld [smem:[%s40]]
  %s42 = scalar_lea.smem %s0, 21
  %s43 = sld [smem:[%s42]]
  %s44 = scalar_lea.smem %s0, 22
  %s45 = sld [smem:[%s44]]
  %s46 = scalar_lea.smem %s0, 23
  %s47 = sld [smem:[%s46]]
  %s48 = scalar_lea.smem %s0, 24
  %s49 = sld [smem:[%s48]]
  %s50 = scalar_lea.smem %s0, 25
  %s51 = sld [smem:[%s50]]
  %s52 = scalar_lea.smem %s0, 26
  %s53 = sld [smem:[%s52]]
  %s54 = scalar_lea.smem %s0, 27
  %s55 = sld [smem:[%s54]]
  %s56 = scalar_lea.smem %s0, 28
  %s57 = sld [smem:[%s56]]
  %s58 = scalar_lea.smem %s0, 29
  %s59 = sld [smem:[%s58]]
  %s60 = scalar_lea.smem %s0, 30
  %s61 = sld [smem:[%s60]]
  %s62 = scalar_lea.smem %s0, 31
  %s63 = sld [smem:[%s62]]
  %s64 = scalar_lea.smem %s0, 32
  %s65 = sld [smem:[%s64]]
  %s66 = scalar_lea.smem %s0, 33
  %s67 = sld [smem:[%s66]]
  %s68 = scalar_lea.smem %s0, 34
  %s69 = sld [smem:[%s68]]
  %s70 = sld [smem:[#allocation0]]
  $region146: #{epsilon_theta_cond_forward.1} parent=0
    _
  %s72 = ssub.s32 1, %s70
  %s73 = scalar_select 0, %s72, %s70
  %v74 = vstv %s67
  %75 = vst [vmem:[#allocation2] sm:$0x1] %v74
  // Predicated region
  $region2: #{epsilon_theta_cond_forward.1} parent=0 // pred_check
    _
  $region3: #{epsilon_theta_cond_forward.1} parent=0 // pred_check_branch
    %77 = sbr.rel (0) target = $region5
  $region4: #{epsilon_theta_cond_forward.1} parent=0 // pred_region
    _
  $region5: #{epsilon_theta_cond_forward.1} parent=0 // pred_fallthru
    _
  // Predicated region
  $region6: #{epsilon_theta_cond_forward.1} parent=0 // pred_check
    _
  $region7: #{epsilon_theta_cond_forward.1} parent=0 // pred_check_branch
    %79 = sbr.rel (0) target = $region9
  $region8: #{epsilon_theta_cond_forward.1} parent=0 // pred_region
    _
  $region9: #{epsilon_theta_cond_forward.1} parent=0 // pred_fallthru
    _
  // Predicated region
  $region10: #{epsilon_theta_cond_forward.1} parent=0 // pred_check
    _
  $region11: #{epsilon_theta_cond_forward.1} parent=0 // pred_check_branch
    %81 = sbr.rel (0) target = $region13
  $region12: #{epsilon_theta_cond_forward.1} parent=0 // pred_region
    _
  $region13: #{epsilon_theta_cond_forward.1} parent=0 // pred_fallthru
    _
  // Predicated region
  $region14: #{epsilon_theta_cond_forward.1} parent=0 // pred_check
    _
  $region15: #{epsilon_theta_cond_forward.1} parent=0 // pred_check_branch
    %83 = sbr.rel (0) target = $region17
  $region16: #{epsilon_theta_cond_forward.1} parent=0 // pred_region
    _
  $region17: #{epsilon_theta_cond_forward.1} parent=0 // pred_fallthru
    _
  // Predicated region
  $region18: #{epsilon_theta_cond_forward.1} parent=0 // pred_check
    _
  $region19: #{epsilon_theta_cond_forward.1} parent=0 // pred_check_branch
    %85 = sbr.rel (0) target = $region21
  $region20: #{epsilon_theta_cond_forward.1} parent=0 // pred_region
    _
  $region21: #{epsilon_theta_cond_forward.1} parent=0 // pred_fallthru
    _
  // Predicated region
  $region22: #{epsilon_theta_cond_forward.1} parent=0 // pred_check
    _
  $region23: #{epsilon_theta_cond_forward.1} parent=0 // pred_check_branch
    %87 = sbr.rel (0) target = $region25
  $region24: #{epsilon_theta_cond_forward.1} parent=0 // pred_region
    _
  $region25: #{epsilon_theta_cond_forward.1} parent=0 // pred_fallthru
    _
  // Predicated region
  $region26: #{epsilon_theta_cond_forward.1} parent=0 // pred_check
    _
  $region27: #{epsilon_theta_cond_forward.1} parent=0 // pred_check_branch
    %89 = sbr.rel (0) target = $region29
  $region28: #{epsilon_theta_cond_forward.1} parent=0 // pred_region
    _
  $region29: #{epsilon_theta_cond_forward.1} parent=0 // pred_fallthru
    _
  // Predicated region
  $region30: #{epsilon_theta_cond_forward.1} parent=0 // pred_check
    _
  $region31: #{epsilon_theta_cond_forward.1} parent=0 // pred_check_branch
    %91 = sbr.rel (0) target = $region33
  $region32: #{epsilon_theta_cond_forward.1} parent=0 // pred_region
    _
  $region33: #{epsilon_theta_cond_forward.1} parent=0 // pred_fallthru
    _
  // Predicated region
  $region34: #{epsilon_theta_cond_forward.1} parent=0 // pred_check
    _
  $region35: #{epsilon_theta_cond_forward.1} parent=0 // pred_check_branch
    %93 = sbr.rel (0) target = $region37
  $region36: #{epsilon_theta_cond_forward.1} parent=0 // pred_region
    _
  $region37: #{epsilon_theta_cond_forward.1} parent=0 // pred_fallthru
    _
  // Predicated region
  $region38: #{epsilon_theta_cond_forward.1} parent=0 // pred_check
    _
  $region39: #{epsilon_theta_cond_forward.1} parent=0 // pred_check_branch
    %95 = sbr.rel (0) target = $region41
  $region40: #{epsilon_theta_cond_forward.1} parent=0 // pred_region
    _
  $region41: #{epsilon_theta_cond_forward.1} parent=0 // pred_fallthru
    _
  // Predicated region
  $region42: #{epsilon_theta_cond_forward.1} parent=0 // pred_check
    _
  $region43: #{epsilon_theta_cond_forward.1} parent=0 // pred_check_branch
    %97 = sbr.rel (0) target = $region45
  $region44: #{epsilon_theta_cond_forward.1} parent=0 // pred_region
    _
  $region45: #{epsilon_theta_cond_forward.1} parent=0 // pred_fallthru
    _
  // Predicated region
  $region46: #{epsilon_theta_cond_forward.1} parent=0 // pred_check
    _
  $region47: #{epsilon_theta_cond_forward.1} parent=0 // pred_check_branch
    %99 = sbr.rel (0) target = $region49
  $region48: #{epsilon_theta_cond_forward.1} parent=0 // pred_region
    _
  $region49: #{epsilon_theta_cond_forward.1} parent=0 // pred_fallthru
    _
  // Predicated region
  $region50: #{epsilon_theta_cond_forward.1} parent=0 // pred_check
    _
  $region51: #{epsilon_theta_cond_forward.1} parent=0 // pred_check_branch
    %101 = sbr.rel (0) target = $region53
  $region52: #{epsilon_theta_cond_forward.1} parent=0 // pred_region
    _
  $region53: #{epsilon_theta_cond_forward.1} parent=0 // pred_fallthru
    _
  // Predicated region
  $region54: #{epsilon_theta_cond_forward.1} parent=0 // pred_check
    _
  $region55: #{epsilon_theta_cond_forward.1} parent=0 // pred_check_branch
    %103 = sbr.rel (0) target = $region57
  $region56: #{epsilon_theta_cond_forward.1} parent=0 // pred_region
    _
  $region57: #{epsilon_theta_cond_forward.1} parent=0 // pred_fallthru
    _
  // Predicated region
  $region58: #{epsilon_theta_cond_forward.1} parent=0 // pred_check
    _
  $region59: #{epsilon_theta_cond_forward.1} parent=0 // pred_check_branch
    %105 = sbr.rel (0) target = $region61
  $region60: #{epsilon_theta_cond_forward.1} parent=0 // pred_region
    _
  $region61: #{epsilon_theta_cond_forward.1} parent=0 // pred_fallthru
    _
  // Predicated region
  $region62: #{epsilon_theta_cond_forward.1} parent=0 // pred_check
    _
  $region63: #{epsilon_theta_cond_forward.1} parent=0 // pred_check_branch
    %107 = sbr.rel (0) target = $region65
  $region64: #{epsilon_theta_cond_forward.1} parent=0 // pred_region
    _
  $region65: #{epsilon_theta_cond_forward.1} parent=0 // pred_fallthru
    _
  // Predicated region
  $region66: #{epsilon_theta_cond_forward.1} parent=0 // pred_check
    _
  $region67: #{epsilon_theta_cond_forward.1} parent=0 // pred_check_branch
    %109 = sbr.rel (0) target = $region69
  $region68: #{epsilon_theta_cond_forward.1} parent=0 // pred_region
    _
  $region69: #{epsilon_theta_cond_forward.1} parent=0 // pred_fallthru
    _
  // Predicated region
  $region70: #{epsilon_theta_cond_forward.1} parent=0 // pred_check
    _
  $region71: #{epsilon_theta_cond_forward.1} parent=0 // pred_check_branch
    %111 = sbr.rel (0) target = $region73
  $region72: #{epsilon_theta_cond_forward.1} parent=0 // pred_region
    _
  $region73: #{epsilon_theta_cond_forward.1} parent=0 // pred_fallthru
    _
  // Predicated region
  $region74: #{epsilon_theta_cond_forward.1} parent=0 // pred_check
    _
  $region75: #{epsilon_theta_cond_forward.1} parent=0 // pred_check_branch
    %113 = sbr.rel (0) target = $region77
  $region76: #{epsilon_theta_cond_forward.1} parent=0 // pred_region
    _
  $region77: #{epsilon_theta_cond_forward.1} parent=0 // pred_fallthru
    _
  // Predicated region
  $region78: #{epsilon_theta_cond_forward.1} parent=0 // pred_check
    _
  $region79: #{epsilon_theta_cond_forward.1} parent=0 // pred_check_branch
    %115 = sbr.rel (0) target = $region81
  $region80: #{epsilon_theta_cond_forward.1} parent=0 // pred_region
    _
  $region81: #{epsilon_theta_cond_forward.1} parent=0 // pred_fallthru
    _
  // Predicated region
  $region82: #{epsilon_theta_cond_forward.1} parent=0 // pred_check
    _
  $region83: #{epsilon_theta_cond_forward.1} parent=0 // pred_check_branch
    %117 = sbr.rel (0) target = $region85
  $region84: #{epsilon_theta_cond_forward.1} parent=0 // pred_region
    _
  $region85: #{epsilon_theta_cond_forward.1} parent=0 // pred_fallthru
    _
  // Predicated region
  $region86: #{epsilon_theta_cond_forward.1} parent=0 // pred_check
    _
  $region87: #{epsilon_theta_cond_forward.1} parent=0 // pred_check_branch
    %119 = sbr.rel (0) target = $region89
  $region88: #{epsilon_theta_cond_forward.1} parent=0 // pred_region
    _
  $region89: #{epsilon_theta_cond_forward.1} parent=0 // pred_fallthru
    _
  // Predicated region
  $region90: #{epsilon_theta_cond_forward.1} parent=0 // pred_check
    _
  $region91: #{epsilon_theta_cond_forward.1} parent=0 // pred_check_branch
    %121 = sbr.rel (0) target = $region93
  $region92: #{epsilon_theta_cond_forward.1} parent=0 // pred_region
    _
  $region93: #{epsilon_theta_cond_forward.1} parent=0 // pred_fallthru
    _
  // Predicated region
  $region94: #{epsilon_theta_cond_forward.1} parent=0 // pred_check
    _
  $region95: #{epsilon_theta_cond_forward.1} parent=0 // pred_check_branch
    %123 = sbr.rel (0) target = $region97
  $region96: #{epsilon_theta_cond_forward.1} parent=0 // pred_region
    _
  $region97: #{epsilon_theta_cond_forward.1} parent=0 // pred_fallthru
    _
  // Predicated region
  $region98: #{epsilon_theta_cond_forward.1} parent=0 // pred_check
    _
  $region99: #{epsilon_theta_cond_forward.1} parent=0 // pred_check_branch
    %125 = sbr.rel (0) target = $region101
  $region100: #{epsilon_theta_cond_forward.1} parent=0 // pred_region
    _
  $region101: #{epsilon_theta_cond_forward.1} parent=0 // pred_fallthru
    _
  // Predicated region
  $region102: #{epsilon_theta_cond_forward.1} parent=0 // pred_check
    _
  $region103: #{epsilon_theta_cond_forward.1} parent=0 // pred_check_branch
    %127 = sbr.rel (0) target = $region105
  $region104: #{epsilon_theta_cond_forward.1} parent=0 // pred_region
    _
  $region105: #{epsilon_theta_cond_forward.1} parent=0 // pred_fallthru
    _
  // Predicated region
  $region106: #{epsilon_theta_cond_forward.1} parent=0 // pred_check
    _
  $region107: #{epsilon_theta_cond_forward.1} parent=0 // pred_check_branch
    %129 = sbr.rel (0) target = $region109
  $region108: #{epsilon_theta_cond_forward.1} parent=0 // pred_region
    _
  $region109: #{epsilon_theta_cond_forward.1} parent=0 // pred_fallthru
    _
  // Predicated region
  $region110: #{epsilon_theta_cond_forward.1} parent=0 // pred_check
    _
  $region111: #{epsilon_theta_cond_forward.1} parent=0 // pred_check_branch
    %131 = sbr.rel (0) target = $region113
  $region112: #{epsilon_theta_cond_forward.1} parent=0 // pred_region
    _
  $region113: #{epsilon_theta_cond_forward.1} parent=0 // pred_fallthru
    _
  // Predicated region
  $region114: #{epsilon_theta_cond_forward.1} parent=0 // pred_check
    _
  $region115: #{epsilon_theta_cond_forward.1} parent=0 // pred_check_branch
    %133 = sbr.rel (0) target = $region117
  $region116: #{epsilon_theta_cond_forward.1} parent=0 // pred_region
    _
  $region117: #{epsilon_theta_cond_forward.1} parent=0 // pred_fallthru
    _
  // Predicated region
  $region118: #{epsilon_theta_cond_forward.1} parent=0 // pred_check
    _
  $region119: #{epsilon_theta_cond_forward.1} parent=0 // pred_check_branch
    %135 = sbr.rel (0) target = $region121
  $region120: #{epsilon_theta_cond_forward.1} parent=0 // pred_region
    _
  $region121: #{epsilon_theta_cond_forward.1} parent=0 // pred_fallthru
    _
  // Predicated region
  $region122: #{epsilon_theta_cond_forward.1} parent=0 // pred_check
    _
  $region123: #{epsilon_theta_cond_forward.1} parent=0 // pred_check_branch
    %137 = sbr.rel (0) target = $region125
  $region124: #{epsilon_theta_cond_forward.1} parent=0 // pred_region
    _
  $region125: #{epsilon_theta_cond_forward.1} parent=0 // pred_fallthru
    _
  // Predicated region
  $region126: #{epsilon_theta_cond_forward.1} parent=0 // pred_check
    _
  $region127: #{epsilon_theta_cond_forward.1} parent=0 // pred_check_branch
    %139 = sbr.rel (0) target = $region129
  $region128: #{epsilon_theta_cond_forward.1} parent=0 // pred_region
    _
  $region129: #{epsilon_theta_cond_forward.1} parent=0 // pred_fallthru
    _
  // Predicated region
  $region130: #{epsilon_theta_cond_forward.1} parent=0 // pred_check
    _
  $region131: #{epsilon_theta_cond_forward.1} parent=0 // pred_check_branch
    %141 = sbr.rel (0) target = $region133
  $region132: #{epsilon_theta_cond_forward.1} parent=0 // pred_region
    _
  $region133: #{epsilon_theta_cond_forward.1} parent=0 // pred_fallthru
    _
  // Predicated region
  $region134: #{epsilon_theta_cond_forward.1} parent=0 // pred_check
    _
  $region135: #{epsilon_theta_cond_forward.1} parent=0 // pred_check_branch
    %143 = sbr.rel (0) target = $region137
  $region136: #{epsilon_theta_cond_forward.1} parent=0 // pred_region
    _
  $region137: #{epsilon_theta_cond_forward.1} parent=0 // pred_fallthru
    _
  %v144 = vld [vmem:[%s3] sm:$0x1]
  %v145 = vld [vmem:[%s9] sm:$0xff]
  %v146 = vld [vmem:[%s9 + $0x8] sm:$0xff]
  %v147 = vld [vmem:[%s9 + $0x10] sm:$0xff]
  %v148 = vld [vmem:[%s9 + $0x18] sm:$0xff]
  %v149 = vld [vmem:[%s9 + $0x20] sm:$0xff]
  %v150 = vld [vmem:[%s9 + $0x28] sm:$0xff]
  %v151 = vld [vmem:[%s9 + $0x30] sm:$0xff]
  %v152 = vld [vmem:[%s9 + $0x38] sm:$0xff]
  %v153 = vld [vmem:[%s11] sm:$0x1]
  %vm154 = vcmask 523264
  %v156 = vsel %vm154, %v144, 0
  %158 = vmatprep.subr.mxu0 0.0
  %159 = vmatpush1.msra.mxu0 0.0
  %160 = vmatprep.subr.mxu0 0.0
  %161 = vmatpush1.msra.mxu0 0.0
  %162 = vmatprep.subr.mxu0 0.0
  %163 = vmatpush1.msra.mxu0 0.0
  %164 = vmatprep.subr.mxu0 0.0
  %165 = vmatpush1.msra.mxu0 0.0
  %166 = vmatprep.subr.mxu0 0.0
  %167 = vmatpush1.msra.mxu0 0.0
  %168 = vmatprep.subr.mxu0 0.0
  %169 = vmatpush1.msra.mxu0 0.0
  %170 = vmatprep.subr.mxu0 0.0
  %171 = vmatpush1.msra.mxu0 0.0
  %172 = vmatprep.subr.mxu0 0.0
  %173 = vmatpush1.msra.mxu0 0.0
  %174 = vmatprep.subr.mxu0 0.0
  %175 = vmatpush1.msra.mxu0 %v152
  %176 = vmatprep.subr.mxu0 0.0
  %177 = vmatpush1.msra.mxu0 %v151
  %178 = vmatprep.subr.mxu0 0.0
  %179 = vmatpush1.msra.mxu0 %v150
  %180 = vmatprep.subr.mxu0 0.0
  %181 = vmatpush1.msra.mxu0 %v149
  %182 = vmatprep.subr.mxu0 0.0
  %183 = vmatpush1.msra.mxu0 %v148
  %184 = vmatprep.subr.mxu0 0.0
  %185 = vmatpush1.msra.mxu0 %v147
  %186 = vmatprep.subr.mxu0 0.0
  %187 = vmatpush1.msra.mxu0 %v146
  %188 = vmatprep.subr.mxu0 0.0
  %189 = vmatpush1.msra.mxu0 %v145
  %190 = vmatprep.subr.mxu0 0.0
  %191 = vmatpush2.msra.mxu0 0.0
  %192 = vmatprep.subr.mxu0 0.0
  %193 = vmatpush2.msra.mxu0 0.0
  %194 = vmatprep.subr.mxu0 0.0
  %195 = vmatpush2.msra.mxu0 0.0
  %196 = vmatprep.subr.mxu0 0.0
  %197 = vmatpush2.msra.mxu0 0.0
  %198 = vmatprep.subr.mxu0 0.0
  %199 = vmatpush2.msra.mxu0 0.0
  %200 = vmatprep.subr.mxu0 0.0
  %201 = vmatpush2.msra.mxu0 0.0
  %202 = vmatprep.subr.mxu0 0.0
  %203 = vmatpush2.msra.mxu0 0.0
  %204 = vmatprep.subr.mxu0 0.0
  %205 = vmatpush2.msra.mxu0 0.0
  %206 = vmatprep.subr.mxu0 0.0
  %207 = vmatpush2.msra.mxu0 0.0
  %208 = vmatprep.subr.mxu0 0.0
  %209 = vmatpush2.msra.mxu0 0.0
  %210 = vmatprep.subr.mxu0 0.0
  %211 = vmatpush2.msra.mxu0 0.0
  %212 = vmatprep.subr.mxu0 0.0
  %213 = vmatpush2.msra.mxu0 0.0
  %214 = vmatprep.subr.mxu0 0.0
  %215 = vmatpush2.msra.mxu0 0.0
  %216 = vmatprep.subr.mxu0 0.0
  %217 = vmatpush2.msra.mxu0 0.0
  %218 = vmatprep.subr.mxu0 0.0
  %219 = vmatpush2.msra.mxu0 0.0
  %220 = vmatprep.subr.mxu0 0.0
  %221 = vmatpush2.msra.mxu0 0.0
  %222 = vmatprep.mubr.f32.mxu0 0.0
  %223 = vmatmul.mubr.f32.gmra.mxu0 %v156
  %v224 = vpop.f32.mrf.mxu0
  %v225 = vadd.f32 %v153, %v224
  %v226 = vpop.f32.mrf.mxu0
  %227 = vdwg.mxu0
  %v228 = vxor.u32 %v225, 2147483648
  %v229 = vmul.f32 %v228, 1.442695
  %v230 = vpow.pop %v229
  %v231 = vadd.f32 %v230, 1.0
  %v232 = vrcp.pop %v231
  %v233 = vmul.f32 1.0, %v232
  %v234 = vmul.f32 %v225, %v233
  %v235 = vld [vmem:[%s13] sm:$0xff]
  %v236 = vld [vmem:[%s13 + $0x8] sm:$0xff]
  %v237 = vld [vmem:[%s13 + $0x10] sm:$0xff]
  %v238 = vld [vmem:[%s13 + $0x18] sm:$0xff]
  %v239 = vld [vmem:[%s13 + $0x20] sm:$0xff]
  %v240 = vld [vmem:[%s13 + $0x28] sm:$0xff]
  %v241 = vld [vmem:[%s13 + $0x30] sm:$0xff]
  %v242 = vld [vmem:[%s13 + $0x38] sm:$0xff]
  %v243 = vld [vmem:[%s15] sm:$0x1]
  %v245 = vsel %vm154, %v234, 0
  %247 = vmatprep.subr.mxu0 0.0
  %248 = vmatpush1.msra.mxu0 0.0
  %249 = vmatprep.subr.mxu0 0.0
  %250 = vmatpush1.msra.mxu0 0.0
  %251 = vmatprep.subr.mxu0 0.0
  %252 = vmatpush1.msra.mxu0 0.0
  %253 = vmatprep.subr.mxu0 0.0
  %254 = vmatpush1.msra.mxu0 0.0
  %255 = vmatprep.subr.mxu0 0.0
  %256 = vmatpush1.msra.mxu0 0.0
  %257 = vmatprep.subr.mxu0 0.0
  %258 = vmatpush1.msra.mxu0 0.0
  %259 = vmatprep.subr.mxu0 0.0
  %260 = vmatpush1.msra.mxu0 0.0
  %261 = vmatprep.subr.mxu0 0.0
  %262 = vmatpush1.msra.mxu0 0.0
  %263 = vmatprep.subr.mxu0 0.0
  %264 = vmatpush1.msra.mxu0 %v242
  %265 = vmatprep.subr.mxu0 0.0
  %266 = vmatpush1.msra.mxu0 %v241
  %267 = vmatprep.subr.mxu0 0.0
  %268 = vmatpush1.msra.mxu0 %v240
  %269 = vmatprep.subr.mxu0 0.0
  %270 = vmatpush1.msra.mxu0 %v239
  %271 = vmatprep.subr.mxu0 0.0
  %272 = vmatpush1.msra.mxu0 %v238
  %273 = vmatprep.subr.mxu0 0.0
  %274 = vmatpush1.msra.mxu0 %v237
  %275 = vmatprep.subr.mxu0 0.0
  %276 = vmatpush1.msra.mxu0 %v236
  %277 = vmatprep.subr.mxu0 0.0
  %278 = vmatpush1.msra.mxu0 %v235
  %279 = vmatprep.subr.mxu0 0.0
  %280 = vmatpush2.msra.mxu0 0.0
  %281 = vmatprep.subr.mxu0 0.0
  %282 = vmatpush2.msra.mxu0 0.0
  %283 = vmatprep.subr.mxu0 0.0
  %284 = vmatpush2.msra.mxu0 0.0
  %285 = vmatprep.subr.mxu0 0.0
  %286 = vmatpush2.msra.mxu0 0.0
  %287 = vmatprep.subr.mxu0 0.0
  %288 = vmatpush2.msra.mxu0 0.0
  %289 = vmatprep.subr.mxu0 0.0
  %290 = vmatpush2.msra.mxu0 0.0
  %291 = vmatprep.subr.mxu0 0.0
  %292 = vmatpush2.msra.mxu0 0.0
  %293 = vmatprep.subr.mxu0 0.0
  %294 = vmatpush2.msra.mxu0 0.0
  %295 = vmatprep.subr.mxu0 0.0
  %296 = vmatpush2.msra.mxu0 0.0
  %297 = vmatprep.subr.mxu0 0.0
  %298 = vmatpush2.msra.mxu0 0.0
  %299 = vmatprep.subr.mxu0 0.0
  %300 = vmatpush2.msra.mxu0 0.0
  %301 = vmatprep.subr.mxu0 0.0
  %302 = vmatpush2.msra.mxu0 0.0
  %303 = vmatprep.subr.mxu0 0.0
  %304 = vmatpush2.msra.mxu0 0.0
  %305 = vmatprep.subr.mxu0 0.0
  %306 = vmatpush2.msra.mxu0 0.0
  %307 = vmatprep.subr.mxu0 0.0
  %308 = vmatpush2.msra.mxu0 0.0
  %309 = vmatprep.subr.mxu0 0.0
  %310 = vmatpush2.msra.mxu0 0.0
  %311 = vmatprep.mubr.f32.mxu0 0.0
  %312 = vmatmul.mubr.f32.gmra.mxu0 %v245
  %v313 = vpop.f32.mrf.mxu0
  %v314 = vadd.f32 %v243, %v313
  %v315 = vpop.f32.mrf.mxu0
  %316 = vdwg.mxu0
  %v317 = vxor.u32 %v314, 2147483648
  %v318 = vmul.f32 %v317, 1.442695
  %v319 = vpow.pop %v318
  %v320 = vadd.f32 %v319, 1.0
  %v321 = vrcp.pop %v320
  %v322 = vmul.f32 1.0, %v321
  %v323 = vmul.f32 %v314, %v322
  %v324 = vld [vmem:[%s17] sm:$0xff]
  %v325 = vld [vmem:[%s17 + $0x8] sm:$0xff]
  %v326 = vld [vmem:[%s17 + $0x10] sm:$0xff]
  %v327 = vld [vmem:[%s17 + $0x18] sm:$0xff]
  %v328 = vld [vmem:[%s17 + $0x20] sm:$0xff]
  %v329 = vld [vmem:[%s17 + $0x28] sm:$0xff]
  %v330 = vld [vmem:[%s17 + $0x30] sm:$0xff]
  %v331 = vld [vmem:[%s17 + $0x38] sm:$0xff]
  %v332 = vlaneseq
  %v333 = vshrl.u32 %v332, 7
  %v334 = vsub.s32 0, %v333
  %v335 = vrot.slane %v323, %v334
  %v336 = vmul.f32 %v324, %v335
  %v337 = vmul.f32 %v325, %v335
  %v338 = vmul.f32 %v326, %v335
  %v339 = vmul.f32 %v327, %v335
  %v340 = vmul.f32 %v328, %v335
  %v341 = vmul.f32 %v329, %v335
  %v342 = vmul.f32 %v330, %v335
  %v343 = vmul.f32 %v331, %v335
  %v344 = vsel %vm154, %v336, 0.0
  %345 = vadd.xlane.f32.xlu0 %v344
  %v346 = vpop.xlane.xlu0 %345
  %v347 = vsel %vm154, %v337, 0.0
  %348 = vadd.xlane.f32.xlu0 %v347
  %v349 = vpop.xlane.xlu0 %348
  %v350 = vsel %vm154, %v338, 0.0
  %351 = vadd.xlane.f32.xlu0 %v350
  %v352 = vpop.xlane.xlu0 %351
  %v353 = vsel %vm154, %v339, 0.0
  %354 = vadd.xlane.f32.xlu0 %v353
  %v355 = vpop.xlane.xlu0 %354
  %v356 = vsel %vm154, %v340, 0.0
  %357 = vadd.xlane.f32.xlu0 %v356
  %v358 = vpop.xlane.xlu0 %357
  %v359 = vsel %vm154, %v341, 0.0
  %360 = vadd.xlane.f32.xlu0 %v359
  %v361 = vpop.xlane.xlu0 %360
  %v362 = vsel %vm154, %v342, 0.0
  %363 = vadd.xlane.f32.xlu0 %v362
  %v364 = vpop.xlane.xlu0 %363
  %v365 = vsel %vm154, %v343, 0.0
  %366 = vadd.xlane.f32.xlu0 %v365
  %v367 = vpop.xlane.xlu0 %366
  %v368 = vld [vmem:[%s19] sm:$0xff]
  %v369 = vld [vmem:[%s19 + $0x8] sm:$0xff]
  %v370 = vld [vmem:[%s19 + $0x10] sm:$0xff]
  %v371 = vld [vmem:[%s19 + $0x18] sm:$0xff]
  %v372 = vld [vmem:[%s19 + $0x20] sm:$0xff]
  %v373 = vld [vmem:[%s19 + $0x28] sm:$0xff]
  %v374 = vld [vmem:[%s19 + $0x30] sm:$0xff]
  %v375 = vld [vmem:[%s19 + $0x38] sm:$0xff]
  %v376 = vadd.f32 %v346, %v368
  %v377 = vadd.f32 %v349, %v369
  %v378 = vadd.f32 %v352, %v370
  %v379 = vadd.f32 %v355, %v371
  %v380 = vadd.f32 %v358, %v372
  %v381 = vadd.f32 %v361, %v373
  %v382 = vadd.f32 %v364, %v374
  %v383 = vadd.f32 %v367, %v375
  %v384 = vld [vmem:[%s5] sm:$0x3]
  %v385 = vld [vmem:[%s21] sm:$0xff]
  %v386 = vld [vmem:[%s21 + $0x8] sm:$0xff]
  %v387 = vld [vmem:[%s21 + $0x10] sm:$0xff]
  %v388 = vld [vmem:[%s21 + $0x18] sm:$0xff]
  %v389 = vld [vmem:[%s21 + $0x20] sm:$0xff]
  %v390 = vld [vmem:[%s21 + $0x28] sm:$0xff]
  %v391 = vld [vmem:[%s21 + $0x30] sm:$0xff]
  %v392 = vld [vmem:[%s21 + $0x38] sm:$0xff]
  %v393 = vld [vmem:[%s21 + $0x40] sm:$0xff]
  %v394 = vld [vmem:[%s21 + $0x48] sm:$0xff]
  %v395 = vld [vmem:[%s21 + $0x50] sm:$0xff]
  %v396 = vld [vmem:[%s21 + $0x58] sm:$0xff]
  %v397 = vld [vmem:[%s23] sm:$0x3]
  %v399 = vlaneseq
  %v400 = vshrl.u32 %v399, 7
  %v401 = vsub.s32 0, %v400
  %v402 = vrot.slane %v397, %v401
  %v403 = vlaneseq
  %v404 = vshrl.u32 %v403, 7
  %v405 = vsub.s32 1, %v404
  %v406 = vrot.slane %v397, %v405
  %vm409 = vcmask 392192
  %v411 = vsel %vm409, %v384, 0
  %413 = vmatprep.subr.mxu0 0.0
  %414 = vmatpush1.msra.mxu0 0.0
  %415 = vmatprep.subr.mxu0 0.0
  %416 = vmatpush1.msra.mxu0 0.0
  %417 = vmatprep.subr.mxu0 0.0
  %418 = vmatpush1.msra.mxu0 0.0
  %419 = vmatprep.subr.mxu0 0.0
  %420 = vmatpush1.msra.mxu0 0.0
  %421 = vmatprep.subr.mxu0 0.0
  %422 = vmatpush1.msra.mxu0 0.0
  %423 = vmatprep.subr.mxu0 0.0
  %424 = vmatpush1.msra.mxu0 0.0
  %425 = vmatprep.subr.mxu0 0.0
  %426 = vmatpush1.msra.mxu0 0.0
  %427 = vmatprep.subr.mxu0 0.0
  %428 = vmatpush1.msra.mxu0 0.0
  %429 = vmatprep.subr.mxu0 0.0
  %430 = vmatpush1.msra.mxu0 0.0
  %431 = vmatprep.subr.mxu0 0.0
  %432 = vmatpush1.msra.mxu0 0.0
  %433 = vmatprep.subr.mxu0 %v396
  %434 = vmatpush1.msra.mxu0 %v395
  %435 = vmatprep.subr.mxu0 %v394
  %436 = vmatpush1.msra.mxu0 %v393
  %437 = vmatprep.subr.mxu0 %v392
  %438 = vmatpush1.msra.mxu0 %v391
  %439 = vmatprep.subr.mxu0 %v390
  %440 = vmatpush1.msra.mxu0 %v389
  %441 = vmatprep.subr.mxu0 %v388
  %442 = vmatpush1.msra.mxu0 %v387
  %443 = vmatprep.subr.mxu0 %v386
  %444 = vmatpush1.msra.mxu0 %v385
  %445 = vmatprep.subr.mxu0 0.0
  %446 = vmatpush2.msra.mxu0 0.0
  %447 = vmatprep.subr.mxu0 0.0
  %448 = vmatpush2.msra.mxu0 0.0
  %449 = vmatprep.subr.mxu0 0.0
  %450 = vmatpush2.msra.mxu0 0.0
  %451 = vmatprep.subr.mxu0 0.0
  %452 = vmatpush2.msra.mxu0 0.0
  %453 = vmatprep.subr.mxu0 0.0
  %454 = vmatpush2.msra.mxu0 0.0
  %455 = vmatprep.subr.mxu0 0.0
  %456 = vmatpush2.msra.mxu0 0.0
  %457 = vmatprep.subr.mxu0 0.0
  %458 = vmatpush2.msra.mxu0 0.0
  %459 = vmatprep.subr.mxu0 0.0
  %460 = vmatpush2.msra.mxu0 0.0
  %461 = vmatprep.subr.mxu0 0.0
  %462 = vmatpush2.msra.mxu0 0.0
  %463 = vmatprep.subr.mxu0 0.0
  %464 = vmatpush2.msra.mxu0 0.0
  %465 = vmatprep.subr.mxu0 0.0
  %466 = vmatpush2.msra.mxu0 0.0
  %467 = vmatprep.subr.mxu0 0.0
  %468 = vmatpush2.msra.mxu0 0.0
  %469 = vmatprep.subr.mxu0 0.0
  %470 = vmatpush2.msra.mxu0 0.0
  %471 = vmatprep.subr.mxu0 0.0
  %472 = vmatpush2.msra.mxu0 0.0
  %473 = vmatprep.subr.mxu0 0.0
  %474 = vmatpush2.msra.mxu0 0.0
  %475 = vmatprep.subr.mxu0 0.0
  %476 = vmatpush2.msra.mxu0 0.0
  %477 = vmatprep.mubr.f32.mxu0 0.0
  %478 = vmatmul.mubr.f32.gmra.mxu0 %v411
  %v479 = vpop.f32.mrf.mxu0
  %v480 = vadd.f32 %v402, %v479
  %v481 = vpop.f32.mrf.mxu0
  %v482 = vadd.f32 %v406, %v481
  %483 = vdwg.mxu0
  %v484 = vld [vmem:[%s25] sm:$0x3]
  %v485 = vld [vmem:[%s27] sm:$0x3]
  %vm486 = vcmask 1041408
  %v487 = vsel %vm486, %v480, 0.0
  %v488 = vsel %vm486, %v482, 0.0
  %v489 = vadd.f32 %v487, %v488
  %490 = vadd.xlane.f32.xlu0 %v489
  %v491 = vpop.xlane.xlu0 %490
  %v492 = vrcp.pop 256.0
  %v493 = vmul.f32 %v491, %v492
  %v494 = vsub.f32 %v480, %v493
  %v495 = vsub.f32 %v482, %v493
  %v496 = vmul.f32 %v494, %v494
  %v497 = vmul.f32 %v495, %v495
  %v498 = vsel %vm486, %v496, 0.0
  %v499 = vsel %vm486, %v497, 0.0
  %v500 = vadd.f32 %v498, %v499
  %501 = vadd.xlane.f32.xlu0 %v500
  %v502 = vpop.xlane.xlu0 %501
  %v503 = vmul.f32 %v502, %v492
  %v504 = vadd.f32 %v503, 1e-05
  %v505 = vrsqrt.pop %v504
  %v506 = vmul.f32 %v494, %v505
  %v507 = vmul.f32 %v495, %v505
  %v509 = vlaneseq
  %v510 = vshrl.u32 %v509, 7
  %v511 = vsub.s32 0, %v510
  %v512 = vrot.slane %v484, %v511
  %v513 = vlaneseq
  %v514 = vshrl.u32 %v513, 7
  %v515 = vsub.s32 1, %v514
  %v516 = vrot.slane %v484, %v515
  %v519 = vmul.f32 %v506, %v512
  %v520 = vmul.f32 %v507, %v516
  %v522 = vlaneseq
  %v523 = vshrl.u32 %v522, 7
  %v524 = vsub.s32 0, %v523
  %v525 = vrot.slane %v485, %v524
  %v526 = vlaneseq
  %v527 = vshrl.u32 %v526, 7
  %v528 = vsub.s32 1, %v527
  %v529 = vrot.slane %v485, %v528
  %v532 = vadd.f32 %v519, %v525
  %v533 = vadd.f32 %v520, %v529
  %vm534 = vcmp.ge.f32.partialorder %v532, 0.0
  %vm535 = vcmp.ge.f32.partialorder %v533, 0.0
  %v536 = vmul.f32 %v532, 0.4
  %v537 = vmul.f32 %v533, 0.4
  %v538 = vsel %vm534, %v532, %v536
  %v539 = vsel %vm535, %v533, %v537
  %v540 = vld [vmem:[%s29] sm:$0xff]
  %v541 = vld [vmem:[%s29 + $0x8] sm:$0xff]
  %v542 = vld [vmem:[%s29 + $0x10] sm:$0xff]
  %v543 = vld [vmem:[%s29 + $0x18] sm:$0xff]
  %v544 = vld [vmem:[%s29 + $0x20] sm:$0xff]
  %v545 = vld [vmem:[%s29 + $0x28] sm:$0xff]
  %v546 = vld [vmem:[%s29 + $0x30] sm:$0xff]
  %v547 = vld [vmem:[%s29 + $0x38] sm:$0xff]
  %v548 = vld [vmem:[%s29 + $0x40] sm:$0xff]
  %v549 = vld [vmem:[%s29 + $0x48] sm:$0xff]
  %v550 = vld [vmem:[%s29 + $0x50] sm:$0xff]
  %v551 = vld [vmem:[%s29 + $0x58] sm:$0xff]
  %v552 = vld [vmem:[%s29 + $0x60] sm:$0xff]
  %v553 = vld [vmem:[%s29 + $0x68] sm:$0xff]
  %v554 = vld [vmem:[%s29 + $0x70] sm:$0xff]
  %v555 = vld [vmem:[%s29 + $0x78] sm:$0xff]
  %v556 = vld [vmem:[%s29 + $0x80] sm:$0xff]
  %v557 = vld [vmem:[%s29 + $0x88] sm:$0xff]
  %v558 = vld [vmem:[%s29 + $0x90] sm:$0xff]
  %v559 = vld [vmem:[%s29 + $0x98] sm:$0xff]
  %v560 = vld [vmem:[%s29 + $0xa0] sm:$0xff]
  %v561 = vld [vmem:[%s29 + $0xa8] sm:$0xff]
  %v562 = vld [vmem:[%s29 + $0xb0] sm:$0xff]
  %v563 = vld [vmem:[%s29 + $0xb8] sm:$0xff]
  %v564 = vld [vmem:[%s29 + $0xc0] sm:$0xff]
  %v565 = vld [vmem:[%s29 + $0xc8] sm:$0xff]
  %v566 = vld [vmem:[%s29 + $0xd0] sm:$0xff]
  %v567 = vld [vmem:[%s29 + $0xd8] sm:$0xff]
  %v568 = vld [vmem:[%s29 + $0xe0] sm:$0xff]
  %v569 = vld [vmem:[%s29 + $0xe8] sm:$0xff]
  %v570 = vld [vmem:[%s29 + $0xf0] sm:$0xff]
  %v571 = vld [vmem:[%s29 + $0xf8] sm:$0xff]
  %v572 = vld [vmem:[%s29 + $0x100] sm:$0xff]
  %v573 = vld [vmem:[%s29 + $0x108] sm:$0xff]
  %v574 = vld [vmem:[%s29 + $0x110] sm:$0xff]
  %v575 = vld [vmem:[%s29 + $0x118] sm:$0xff]
  %v576 = vld [vmem:[%s29 + $0x120] sm:$0xff]
  %v577 = vld [vmem:[%s29 + $0x128] sm:$0xff]
  %v578 = vld [vmem:[%s29 + $0x130] sm:$0xff]
  %v579 = vld [vmem:[%s29 + $0x138] sm:$0xff]
  %v580 = vld [vmem:[%s29 + $0x140] sm:$0xff]
  %v581 = vld [vmem:[%s29 + $0x148] sm:$0xff]
  %v582 = vld [vmem:[%s29 + $0x150] sm:$0xff]
  %v583 = vld [vmem:[%s29 + $0x158] sm:$0xff]
  %v584 = vld [vmem:[%s29 + $0x160] sm:$0xff]
  %v585 = vld [vmem:[%s29 + $0x168] sm:$0xff]
  %v586 = vld [vmem:[%s29 + $0x170] sm:$0xff]
  %v587 = vld [vmem:[%s29 + $0x178] sm:$0xff]
  %v588 = vld [vmem:[%s29 + $0x180] sm:$0xff]
  %v589 = vld [vmem:[%s29 + $0x188] sm:$0xff]
  %v590 = vld [vmem:[%s29 + $0x190] sm:$0xff]
  %v591 = vld [vmem:[%s29 + $0x198] sm:$0xff]
  %v592 = vld [vmem:[%s29 + $0x1a0] sm:$0xff]
  %v593 = vld [vmem:[%s29 + $0x1a8] sm:$0xff]
  %v594 = vld [vmem:[%s29 + $0x1b0] sm:$0xff]
  %v595 = vld [vmem:[%s29 + $0x1b8] sm:$0xff]
  %v596 = vld [vmem:[%s29 + $0x1c0] sm:$0xff]
  %v597 = vld [vmem:[%s29 + $0x1c8] sm:$0xff]
  %v598 = vld [vmem:[%s29 + $0x1d0] sm:$0xff]
  %v599 = vld [vmem:[%s29 + $0x1d8] sm:$0xff]
  %v600 = vld [vmem:[%s29 + $0x1e0] sm:$0xff]
  %v601 = vld [vmem:[%s29 + $0x1e8] sm:$0xff]
  %v602 = vld [vmem:[%s29 + $0x1f0] sm:$0xff]
  %v603 = vld [vmem:[%s29 + $0x1f8] sm:$0xff]
  %v604 = vld [vmem:[%s31] sm:$0x3]
  %v606 = vlaneseq
  %v607 = vshrl.u32 %v606, 7
  %v608 = vsub.s32 0, %v607
  %v609 = vrot.slane %v604, %v608
  %v610 = vlaneseq
  %v611 = vshrl.u32 %v610, 7
  %v612 = vsub.s32 1, %v611
  %v613 = vrot.slane %v604, %v612
  %616 = vmatprep.subr.mxu0 %v571
  %617 = vmatpush1.msra.mxu0 %v570
  %618 = vmatprep.subr.mxu0 %v569
  %619 = vmatpush1.msra.mxu0 %v568
  %620 = vmatprep.subr.mxu0 %v567
  %621 = vmatpush1.msra.mxu0 %v566
  %622 = vmatprep.subr.mxu0 %v565
  %623 = vmatpush1.msra.mxu0 %v564
  %624 = vmatprep.subr.mxu0 %v563
  %625 = vmatpush1.msra.mxu0 %v562
  %626 = vmatprep.subr.mxu0 %v561
  %627 = vmatpush1.msra.mxu0 %v560
  %628 = vmatprep.subr.mxu0 %v559
  %629 = vmatpush1.msra.mxu0 %v558
  %630 = vmatprep.subr.mxu0 %v557
  %631 = vmatpush1.msra.mxu0 %v556
  %632 = vmatprep.subr.mxu0 %v555
  %633 = vmatpush1.msra.mxu0 %v554
  %634 = vmatprep.subr.mxu0 %v553
  %635 = vmatpush1.msra.mxu0 %v552
  %636 = vmatprep.subr.mxu0 %v551
  %637 = vmatpush1.msra.mxu0 %v550
  %638 = vmatprep.subr.mxu0 %v549
  %639 = vmatpush1.msra.mxu0 %v548
  %640 = vmatprep.subr.mxu0 %v547
  %641 = vmatpush1.msra.mxu0 %v546
  %642 = vmatprep.subr.mxu0 %v545
  %643 = vmatpush1.msra.mxu0 %v544
  %644 = vmatprep.subr.mxu0 %v543
  %645 = vmatpush1.msra.mxu0 %v542
  %646 = vmatprep.subr.mxu0 %v541
  %647 = vmatpush1.msra.mxu0 %v540
  %648 = vmatprep.subr.mxu0 %v603
  %649 = vmatpush2.msra.mxu0 %v602
  %650 = vmatprep.subr.mxu0 %v601
  %651 = vmatpush2.msra.mxu0 %v600
  %652 = vmatprep.subr.mxu0 %v599
  %653 = vmatpush2.msra.mxu0 %v598
  %654 = vmatprep.subr.mxu0 %v597
  %655 = vmatpush2.msra.mxu0 %v596
  %656 = vmatprep.subr.mxu0 %v595
  %657 = vmatpush2.msra.mxu0 %v594
  %658 = vmatprep.subr.mxu0 %v593
  %659 = vmatpush2.msra.mxu0 %v592
  %660 = vmatprep.subr.mxu0 %v591
  %661 = vmatpush2.msra.mxu0 %v590
  %662 = vmatprep.subr.mxu0 %v589
  %663 = vmatpush2.msra.mxu0 %v588
  %664 = vmatprep.subr.mxu0 %v587
  %665 = vmatpush2.msra.mxu0 %v586
  %666 = vmatprep.subr.mxu0 %v585
  %667 = vmatpush2.msra.mxu0 %v584
  %668 = vmatprep.subr.mxu0 %v583
  %669 = vmatpush2.msra.mxu0 %v582
  %670 = vmatprep.subr.mxu0 %v581
  %671 = vmatpush2.msra.mxu0 %v580
  %672 = vmatprep.subr.mxu0 %v579
  %673 = vmatpush2.msra.mxu0 %v578
  %674 = vmatprep.subr.mxu0 %v577
  %675 = vmatpush2.msra.mxu0 %v576
  %676 = vmatprep.subr.mxu0 %v575
  %677 = vmatpush2.msra.mxu0 %v574
  %678 = vmatprep.subr.mxu0 %v573
  %679 = vmatpush2.msra.mxu0 %v572
  %680 = vmatprep.mubr.f32.mxu0 %v539
  %681 = vmatmul.mubr.f32.gmra.mxu0 %v538
  %v682 = vpop.f32.mrf.mxu0
  %v683 = vadd.f32 %v609, %v682
  %v684 = vpop.f32.mrf.mxu0
  %v685 = vadd.f32 %v613, %v684
  %686 = vdwg.mxu0
  %v687 = vld [vmem:[%s33] sm:$0xff]
  %v688 = vld [vmem:[%s33 + $0x8] sm:$0xff]
  %v689 = vld [vmem:[%s33 + $0x10] sm:$0xff]
  %v690 = vld [vmem:[%s33 + $0x18] sm:$0xff]
  %v691 = vld [vmem:[%s33 + $0x20] sm:$0xff]
  %v692 = vld [vmem:[%s33 + $0x28] sm:$0xff]
  %v693 = vld [vmem:[%s33 + $0x30] sm:$0xff]
  %v694 = vld [vmem:[%s33 + $0x38] sm:$0xff]
  %v695 = vld [vmem:[%s33 + $0x40] sm:$0xff]
  %v696 = vld [vmem:[%s33 + $0x48] sm:$0xff]
  %v697 = vld [vmem:[%s33 + $0x50] sm:$0xff]
  %v698 = vld [vmem:[%s33 + $0x58] sm:$0xff]
  %v699 = vld [vmem:[%s33 + $0x60] sm:$0xff]
  %v700 = vld [vmem:[%s33 + $0x68] sm:$0xff]
  %v701 = vld [vmem:[%s33 + $0x70] sm:$0xff]
  %v702 = vld [vmem:[%s33 + $0x78] sm:$0xff]
  %v703 = vld [vmem:[%s33 + $0x80] sm:$0xff]
  %v704 = vld [vmem:[%s33 + $0x88] sm:$0xff]
  %v705 = vld [vmem:[%s33 + $0x90] sm:$0xff]
  %v706 = vld [vmem:[%s33 + $0x98] sm:$0xff]
  %v707 = vld [vmem:[%s33 + $0xa0] sm:$0xff]
  %v708 = vld [vmem:[%s33 + $0xa8] sm:$0xff]
  %v709 = vld [vmem:[%s33 + $0xb0] sm:$0xff]
  %v710 = vld [vmem:[%s33 + $0xb8] sm:$0xff]
  %v711 = vld [vmem:[%s33 + $0xc0] sm:$0xff]
  %v712 = vld [vmem:[%s33 + $0xc8] sm:$0xff]
  %v713 = vld [vmem:[%s33 + $0xd0] sm:$0xff]
  %v714 = vld [vmem:[%s33 + $0xd8] sm:$0xff]
  %v715 = vld [vmem:[%s33 + $0xe0] sm:$0xff]
  %v716 = vld [vmem:[%s33 + $0xe8] sm:$0xff]
  %v717 = vld [vmem:[%s33 + $0xf0] sm:$0xff]
  %v718 = vld [vmem:[%s33 + $0xf8] sm:$0xff]
  %v719 = vld [vmem:[%s33 + $0x100] sm:$0xff]
  %v720 = vld [vmem:[%s33 + $0x108] sm:$0xff]
  %v721 = vld [vmem:[%s33 + $0x110] sm:$0xff]
  %v722 = vld [vmem:[%s33 + $0x118] sm:$0xff]
  %v723 = vld [vmem:[%s33 + $0x120] sm:$0xff]
  %v724 = vld [vmem:[%s33 + $0x128] sm:$0xff]
  %v725 = vld [vmem:[%s33 + $0x130] sm:$0xff]
  %v726 = vld [vmem:[%s33 + $0x138] sm:$0xff]
  %v727 = vld [vmem:[%s33 + $0x140] sm:$0xff]
  %v728 = vld [vmem:[%s33 + $0x148] sm:$0xff]
  %v729 = vld [vmem:[%s33 + $0x150] sm:$0xff]
  %v730 = vld [vmem:[%s33 + $0x158] sm:$0xff]
  %v731 = vld [vmem:[%s33 + $0x160] sm:$0xff]
  %v732 = vld [vmem:[%s33 + $0x168] sm:$0xff]
  %v733 = vld [vmem:[%s33 + $0x170] sm:$0xff]
  %v734 = vld [vmem:[%s33 + $0x178] sm:$0xff]
  %v735 = vld [vmem:[%s33 + $0x180] sm:$0xff]
  %v736 = vld [vmem:[%s33 + $0x188] sm:$0xff]
  %v737 = vld [vmem:[%s33 + $0x190] sm:$0xff]
  %v738 = vld [vmem:[%s33 + $0x198] sm:$0xff]
  %v739 = vld [vmem:[%s33 + $0x1a0] sm:$0xff]
  %v740 = vld [vmem:[%s33 + $0x1a8] sm:$0xff]
  %v741 = vld [vmem:[%s33 + $0x1b0] sm:$0xff]
  %v742 = vld [vmem:[%s33 + $0x1b8] sm:$0xff]
  %v743 = vld [vmem:[%s33 + $0x1c0] sm:$0xff]
  %v744 = vld [vmem:[%s33 + $0x1c8] sm:$0xff]
  %v745 = vld [vmem:[%s33 + $0x1d0] sm:$0xff]
  %v746 = vld [vmem:[%s33 + $0x1d8] sm:$0xff]
  %v747 = vld [vmem:[%s33 + $0x1e0] sm:$0xff]
  %v748 = vld [vmem:[%s33 + $0x1e8] sm:$0xff]
  %v749 = vld [vmem:[%s33 + $0x1f0] sm:$0xff]
  %v750 = vld [vmem:[%s33 + $0x1f8] sm:$0xff]
  %v751 = vld [vmem:[%s35] sm:$0x3]
  %v753 = vlaneseq
  %v754 = vshrl.u32 %v753, 7
  %v755 = vsub.s32 0, %v754
  %v756 = vrot.slane %v751, %v755
  %v757 = vlaneseq
  %v758 = vshrl.u32 %v757, 7
  %v759 = vsub.s32 1, %v758
  %v760 = vrot.slane %v751, %v759
  %763 = vmatprep.subr.mxu0 %v718
  %764 = vmatpush1.msra.mxu0 %v717
  %765 = vmatprep.subr.mxu0 %v716
  %766 = vmatpush1.msra.mxu0 %v715
  %767 = vmatprep.subr.mxu0 %v714
  %768 = vmatpush1.msra.mxu0 %v713
  %769 = vmatprep.subr.mxu0 %v712
  %770 = vmatpush1.msra.mxu0 %v711
  %771 = vmatprep.subr.mxu0 %v710
  %772 = vmatpush1.msra.mxu0 %v709
  %773 = vmatprep.subr.mxu0 %v708
  %774 = vmatpush1.msra.mxu0 %v707
  %775 = vmatprep.subr.mxu0 %v706
  %776 = vmatpush1.msra.mxu0 %v705
  %777 = vmatprep.subr.mxu0 %v704
  %778 = vmatpush1.msra.mxu0 %v703
  %779 = vmatprep.subr.mxu0 %v702
  %780 = vmatpush1.msra.mxu0 %v701
  %781 = vmatprep.subr.mxu0 %v700
  %782 = vmatpush1.msra.mxu0 %v699
  %783 = vmatprep.subr.mxu0 %v698
  %784 = vmatpush1.msra.mxu0 %v697
  %785 = vmatprep.subr.mxu0 %v696
  %786 = vmatpush1.msra.mxu0 %v695
  %787 = vmatprep.subr.mxu0 %v694
  %788 = vmatpush1.msra.mxu0 %v693
  %789 = vmatprep.subr.mxu0 %v692
  %790 = vmatpush1.msra.mxu0 %v691
  %791 = vmatprep.subr.mxu0 %v690
  %792 = vmatpush1.msra.mxu0 %v689
  %793 = vmatprep.subr.mxu0 %v688
  %794 = vmatpush1.msra.mxu0 %v687
  %795 = vmatprep.subr.mxu0 %v750
  %796 = vmatpush2.msra.mxu0 %v749
  %797 = vmatprep.subr.mxu0 %v748
  %798 = vmatpush2.msra.mxu0 %v747
  %799 = vmatprep.subr.mxu0 %v746
  %800 = vmatpush2.msra.mxu0 %v745
  %801 = vmatprep.subr.mxu0 %v744
  %802 = vmatpush2.msra.mxu0 %v743
  %803 = vmatprep.subr.mxu0 %v742
  %804 = vmatpush2.msra.mxu0 %v741
  %805 = vmatprep.subr.mxu0 %v740
  %806 = vmatpush2.msra.mxu0 %v739
  %807 = vmatprep.subr.mxu0 %v738
  %808 = vmatpush2.msra.mxu0 %v737
  %809 = vmatprep.subr.mxu0 %v736
  %810 = vmatpush2.msra.mxu0 %v735
  %811 = vmatprep.subr.mxu0 %v734
  %812 = vmatpush2.msra.mxu0 %v733
  %813 = vmatprep.subr.mxu0 %v732
  %814 = vmatpush2.msra.mxu0 %v731
  %815 = vmatprep.subr.mxu0 %v730
  %816 = vmatpush2.msra.mxu0 %v729
  %817 = vmatprep.subr.mxu0 %v728
  %818 = vmatpush2.msra.mxu0 %v727
  %819 = vmatprep.subr.mxu0 %v726
  %820 = vmatpush2.msra.mxu0 %v725
  %821 = vmatprep.subr.mxu0 %v724
  %822 = vmatpush2.msra.mxu0 %v723
  %823 = vmatprep.subr.mxu0 %v722
  %824 = vmatpush2.msra.mxu0 %v721
  %825 = vmatprep.subr.mxu0 %v720
  %826 = vmatpush2.msra.mxu0 %v719
  %827 = vmatprep.mubr.f32.mxu0 %v685
  %828 = vmatmul.mubr.f32.gmra.mxu0 %v683
  %v829 = vpop.f32.mrf.mxu0
  %v830 = vadd.f32 %v756, %v829
  %v831 = vpop.f32.mrf.mxu0
  %v832 = vadd.f32 %v760, %v831
  %833 = vdwg.mxu0
  %v834 = vadd.f32 %v830, %v538
  %v835 = vadd.f32 %v832, %v539
  %v836 = vld [vmem:[%s37] sm:$0x3]
  %v837 = vld [vmem:[%s39] sm:$0x3]
  %v838 = vsel %vm486, %v834, 0.0
  %v839 = vsel %vm486, %v835, 0.0
  %v840 = vadd.f32 %v838, %v839
  %841 = vadd.xlane.f32.xlu0 %v840
  %v842 = vpop.xlane.xlu0 %841
  %v843 = vmul.f32 %v842, %v492
  %v844 = vsub.f32 %v834, %v843
  %v845 = vsub.f32 %v835, %v843
  %v846 = vmul.f32 %v844, %v844
  %v847 = vmul.f32 %v845, %v845
  %v848 = vsel %vm486, %v846, 0.0
  %v849 = vsel %vm486, %v847, 0.0
  %v850 = vadd.f32 %v848, %v849
  %851 = vadd.xlane.f32.xlu0 %v850
  %v852 = vpop.xlane.xlu0 %851
  %v853 = vmul.f32 %v852, %v492
  %v854 = vadd.f32 %v853, 1e-05
  %v855 = vrsqrt.pop %v854
  %v856 = vmul.f32 %v844, %v855
  %v857 = vmul.f32 %v845, %v855
  %v859 = vlaneseq
  %v860 = vshrl.u32 %v859, 7
  %v861 = vsub.s32 0, %v860
  %v862 = vrot.slane %v836, %v861
  %v863 = vlaneseq
  %v864 = vshrl.u32 %v863, 7
  %v865 = vsub.s32 1, %v864
  %v866 = vrot.slane %v836, %v865
  %v869 = vmul.f32 %v856, %v862
  %v870 = vmul.f32 %v857, %v866
  %v872 = vlaneseq
  %v873 = vshrl.u32 %v872, 7
  %v874 = vsub.s32 0, %v873
  %v875 = vrot.slane %v837, %v874
  %v876 = vlaneseq
  %v877 = vshrl.u32 %v876, 7
  %v878 = vsub.s32 1, %v877
  %v879 = vrot.slane %v837, %v878
  %v882 = vadd.f32 %v869, %v875
  %v883 = vadd.f32 %v870, %v879
  %v884 = vld [vmem:[%s41] sm:$0xff]
  %v885 = vld [vmem:[%s41 + $0x8] sm:$0xff]
  %v886 = vld [vmem:[%s41 + $0x10] sm:$0xff]
  %v887 = vld [vmem:[%s41 + $0x18] sm:$0xff]
  %v888 = vld [vmem:[%s41 + $0x20] sm:$0xff]
  %v889 = vld [vmem:[%s41 + $0x28] sm:$0xff]
  %v890 = vld [vmem:[%s41 + $0x30] sm:$0xff]
  %v891 = vld [vmem:[%s41 + $0x38] sm:$0xff]
  %v892 = vld [vmem:[%s41 + $0x40] sm:$0xff]
  %v893 = vld [vmem:[%s41 + $0x48] sm:$0xff]
  %v894 = vld [vmem:[%s41 + $0x50] sm:$0xff]
  %v895 = vld [vmem:[%s41 + $0x58] sm:$0xff]
  %v896 = vld [vmem:[%s41 + $0x60] sm:$0xff]
  %v897 = vld [vmem:[%s41 + $0x68] sm:$0xff]
  %v898 = vld [vmem:[%s41 + $0x70] sm:$0xff]
  %v899 = vld [vmem:[%s41 + $0x78] sm:$0xff]
  %v900 = vld [vmem:[%s41 + $0x80] sm:$0xff]
  %v901 = vld [vmem:[%s41 + $0x88] sm:$0xff]
  %v902 = vld [vmem:[%s41 + $0x90] sm:$0xff]
  %v903 = vld [vmem:[%s41 + $0x98] sm:$0xff]
  %v904 = vld [vmem:[%s41 + $0xa0] sm:$0xff]
  %v905 = vld [vmem:[%s41 + $0xa8] sm:$0xff]
  %v906 = vld [vmem:[%s41 + $0xb0] sm:$0xff]
  %v907 = vld [vmem:[%s41 + $0xb8] sm:$0xff]
  %v908 = vld [vmem:[%s41 + $0xc0] sm:$0xff]
  %v909 = vld [vmem:[%s41 + $0xc8] sm:$0xff]
  %v910 = vld [vmem:[%s41 + $0xd0] sm:$0xff]
  %v911 = vld [vmem:[%s41 + $0xd8] sm:$0xff]
  %v912 = vld [vmem:[%s41 + $0xe0] sm:$0xff]
  %v913 = vld [vmem:[%s41 + $0xe8] sm:$0xff]
  %v914 = vld [vmem:[%s41 + $0xf0] sm:$0xff]
  %v915 = vld [vmem:[%s41 + $0xf8] sm:$0xff]
  %v916 = vld [vmem:[%s43] sm:$0x1]
  %v918 = vlaneseq
  %v919 = vshrl.u32 %v918, 7
  %v920 = vsub.s32 0, %v919
  %v921 = vrot.slane %v916, %v920
  %923 = vmatprep.subr.mxu0 0.0
  %924 = vmatpush1.msra.mxu0 %v899
  %925 = vmatprep.subr.mxu0 0.0
  %926 = vmatpush1.msra.mxu0 %v898
  %927 = vmatprep.subr.mxu0 0.0
  %928 = vmatpush1.msra.mxu0 %v897
  %929 = vmatprep.subr.mxu0 0.0
  %930 = vmatpush1.msra.mxu0 %v896
  %931 = vmatprep.subr.mxu0 0.0
  %932 = vmatpush1.msra.mxu0 %v895
  %933 = vmatprep.subr.mxu0 0.0
  %934 = vmatpush1.msra.mxu0 %v894
  %935 = vmatprep.subr.mxu0 0.0
  %936 = vmatpush1.msra.mxu0 %v893
  %937 = vmatprep.subr.mxu0 0.0
  %938 = vmatpush1.msra.mxu0 %v892
  %939 = vmatprep.subr.mxu0 0.0
  %940 = vmatpush1.msra.mxu0 %v891
  %941 = vmatprep.subr.mxu0 0.0
  %942 = vmatpush1.msra.mxu0 %v890
  %943 = vmatprep.subr.mxu0 0.0
  %944 = vmatpush1.msra.mxu0 %v889
  %945 = vmatprep.subr.mxu0 0.0
  %946 = vmatpush1.msra.mxu0 %v888
  %947 = vmatprep.subr.mxu0 0.0
  %948 = vmatpush1.msra.mxu0 %v887
  %949 = vmatprep.subr.mxu0 0.0
  %950 = vmatpush1.msra.mxu0 %v886
  %951 = vmatprep.subr.mxu0 0.0
  %952 = vmatpush1.msra.mxu0 %v885
  %953 = vmatprep.subr.mxu0 0.0
  %954 = vmatpush1.msra.mxu0 %v884
  %955 = vmatprep.subr.mxu0 0.0
  %956 = vmatpush2.msra.mxu0 %v915
  %957 = vmatprep.subr.mxu0 0.0
  %958 = vmatpush2.msra.mxu0 %v914
  %959 = vmatprep.subr.mxu0 0.0
  %960 = vmatpush2.msra.mxu0 %v913
  %961 = vmatprep.subr.mxu0 0.0
  %962 = vmatpush2.msra.mxu0 %v912
  %963 = vmatprep.subr.mxu0 0.0
  %964 = vmatpush2.msra.mxu0 %v911
  %965 = vmatprep.subr.mxu0 0.0
  %966 = vmatpush2.msra.mxu0 %v910
  %967 = vmatprep.subr.mxu0 0.0
  %968 = vmatpush2.msra.mxu0 %v909
  %969 = vmatprep.subr.mxu0 0.0
  %970 = vmatpush2.msra.mxu0 %v908
  %971 = vmatprep.subr.mxu0 0.0
  %972 = vmatpush2.msra.mxu0 %v907
  %973 = vmatprep.subr.mxu0 0.0
  %974 = vmatpush2.msra.mxu0 %v906
  %975 = vmatprep.subr.mxu0 0.0
  %976 = vmatpush2.msra.mxu0 %v905
  %977 = vmatprep.subr.mxu0 0.0
  %978 = vmatpush2.msra.mxu0 %v904
  %979 = vmatprep.subr.mxu0 0.0
  %980 = vmatpush2.msra.mxu0 %v903
  %981 = vmatprep.subr.mxu0 0.0
  %982 = vmatpush2.msra.mxu0 %v902
  %983 = vmatprep.subr.mxu0 0.0
  %984 = vmatpush2.msra.mxu0 %v901
  %985 = vmatprep.subr.mxu0 0.0
  %986 = vmatpush2.msra.mxu0 %v900
  %987 = vmatprep.mubr.f32.mxu0 %v883
  %988 = vmatmul.mubr.f32.gmra.mxu0 %v882
  %v989 = vpop.f32.mrf.mxu0
  %v990 = vadd.f32 %v921, %v989
  %v991 = vpop.f32.mrf.mxu0
  %992 = vdwg.mxu0
  %vm993 = vcmp.ge.f32.partialorder %v990, 0.0
  %v994 = vmul.f32 %v990, 0.4
  %v995 = vsel %vm993, %v990, %v994
  %v997 = vrot.slane %v995, 1
  %998 = vrot.lane.b32.xlu0 %v997, 24
  %v999 = vpop.permute.xlu0 %998
  %vm1001 = vcmask 195584
  %v1002 = vsel %vm1001, %v995, %v999
  %v1003 = vsel %vm409, %v1002, 0.0
  %v1004 = vld [vmem:[%s1] sm:$0x1]
  %v1005 = vld [vmem:[%s7] sm:$0x1]
  %v1006 = vld [vmem:[%s45] sm:$0xff]
  %1008 = vset.pattern.permute.xlu0 0
  %1009 = vperm.xlu0 %1008, %v1006
  %v1010 = vpop.permute.xlu0 %1009
  %v1013 = vlaneseq
  %v1014 = vshrl.u32 %v1013, 7
  %v1015 = vsub.s32 0, %v1014
  %v1016 = vrot.slane %v1005, %v1015
  %v1018 = vmul.f32 %v1010, %v1016
  %v1019 = vld [vmem:[%s47] sm:$0xff]
  %1021 = vset.pattern.permute.xlu0 0
  %1022 = vperm.xlu0 %1021, %v1019
  %v1023 = vpop.permute.xlu0 %1022
  %v1025 = vadd.f32 %v1018, %v1023
  %v1026 = vmax.f32 %v1025, 0.0
  %1028 = vset.pattern.permute.xlu0 0
  %1029 = vperm.xlu0 %1028, %v376
  %v1030 = vpop.permute.xlu0 %1029
  %v1032 = vadd.f32 %v1026, %v1030
  %vm1033 = vcmp.ge.s32.totalorder %v1004, 1
  %1035 = vrot.lane.b32.xlu0 %v1032, 1
  %v1036 = vpop.permute.xlu0 %1035
  %vm1038 = vcmask 7168
  %v1039 = vsel %vm1038, 0.0, %v1036
  %v1040 = vsel %vm1033, 1, 0
  %v1041 = vlaneseq
  %v1042 = vshrl.u32 %v1041, 7
  %v1043 = vsub.s32 0, %v1042
  %v1044 = vrot.slane %v1040, %v1043
  %vm1045 = vcmp.eq.s32.totalorder %v1044, 1
  %v1046 = vsel %vm1045, %v1039, 0.0
  %vm1047 = vcmp.lt.s32.totalorder %v1004, 23
  %1048 = vrot.lane.b32.xlu0 %v1032, 127
  %v1049 = vpop.permute.xlu0 %1048
  %vm1051 = vcmask 1039360
  %v1052 = vsel %vm1051, %v1049, 0.0
  %v1053 = vsel %vm1047, 1, 0
  %v1054 = vlaneseq
  %v1055 = vshrl.u32 %v1054, 7
  %v1056 = vsub.s32 0, %v1055
  %v1057 = vrot.slane %v1053, %v1056
  %vm1058 = vcmp.eq.s32.totalorder %v1057, 1
  %v1059 = vsel %vm1058, %v1052, 0.0
  %v1060 = vld [vmem:[%s49] sm:$0xff]
  %v1061 = vld [vmem:[%s49 + $0x8] sm:$0xff]
  %1063 = vset.pattern.permute.xlu0 0
  %1064 = vperm.xlu0 %1063, %v1060
  %v1065 = vpop.permute.xlu0 %1064
  %1068 = vset.pattern.permute.xlu0 0
  %1069 = vperm.xlu0 %1068, %v1061
  %v1070 = vpop.permute.xlu0 %1069
  %v1072 = vlaneseq
  %v1073 = vshrl.u32 %v1072, 7
  %v1074 = vsub.s32 0, %v1073
  %v1075 = vrot.slane %v1003, %v1074
  %v1076 = vmul.f32 %v1065, %v1075
  %v1077 = vmul.f32 %v1070, %v1075
  %v1078 = vld [vmem:[%s51] sm:$0xff]
  %v1079 = vld [vmem:[%s51 + $0x8] sm:$0xff]
  %1081 = vset.pattern.permute.xlu0 0
  %1082 = vperm.xlu0 %1081, %v1078
  %v1083 = vpop.permute.xlu0 %1082
  %1086 = vset.pattern.permute.xlu0 0
  %1087 = vperm.xlu0 %1086, %v1079
  %v1088 = vpop.permute.xlu0 %1087
  %v1090 = vadd.f32 %v1076, %v1083
  %v1091 = vadd.f32 %v1077, %v1088
  %v1092 = vld [vmem:[%s53] sm:$0xff]
  %v1093 = vld [vmem:[%s53 + $0x8] sm:$0xff]
  %s1094 = scalar_lea.vmem %s53, 16
  %v1095 = vld [vmem:[%s1094] sm:$0xff]
  %v1096 = vld [vmem:[%s1094 + $0x8] sm:$0xff]
  %vm1097 = vcmask 64512
  %v1099 = vsel %vm1097, %v1095, 0
  %v1102 = vsel %vm1097, %v1096, 0
  %1104 = vmatprep.subr.mxu0 0.0
  %1105 = vmatpush1.msra.mxu0 0.0
  %1106 = vmatprep.subr.mxu0 0.0
  %1107 = vmatpush1.msra.mxu0 0.0
  %1108 = vmatprep.subr.mxu0 0.0
  %1109 = vmatpush1.msra.mxu0 0.0
  %1110 = vmatprep.subr.mxu0 0.0
  %1111 = vmatpush1.msra.mxu0 0.0
  %1112 = vmatprep.subr.mxu0 0.0
  %1113 = vmatpush1.msra.mxu0 0.0
  %1114 = vmatprep.subr.mxu0 0.0
  %1115 = vmatpush1.msra.mxu0 0.0
  %1116 = vmatprep.subr.mxu0 0.0
  %1117 = vmatpush1.msra.mxu0 0.0
  %1118 = vmatprep.subr.mxu0 0.0
  %1119 = vmatpush1.msra.mxu0 0.0
  %1120 = vmatprep.subr.mxu0 0.0
  %1121 = vmatpush1.msra.mxu0 0.0
  %1122 = vmatprep.subr.mxu0 0.0
  %1123 = vmatpush1.msra.mxu0 0.0
  %1124 = vmatprep.subr.mxu0 0.0
  %1125 = vmatpush1.msra.mxu0 0.0
  %1126 = vmatprep.subr.mxu0 0.0
  %1127 = vmatpush1.msra.mxu0 0.0
  %1128 = vmatprep.subr.mxu0 0.0
  %1129 = vmatpush1.msra.mxu0 0.0
  %1130 = vmatprep.subr.mxu0 0.0
  %1131 = vmatpush1.msra.mxu0 0.0
  %1132 = vmatprep.subr.mxu0 0.0
  %1133 = vmatpush1.msra.mxu0 0.0
  %1134 = vmatprep.subr.mxu0 0.0
  %1135 = vmatpush1.msra.mxu0 %v1032
  %1136 = vmatprep.subr.mxu0 0.0
  %1137 = vmatpush2.msra.mxu0 0.0
  %1138 = vmatprep.subr.mxu0 0.0
  %1139 = vmatpush2.msra.mxu0 0.0
  %1140 = vmatprep.subr.mxu0 0.0
  %1141 = vmatpush2.msra.mxu0 0.0
  %1142 = vmatprep.subr.mxu0 0.0
  %1143 = vmatpush2.msra.mxu0 0.0
  %1144 = vmatprep.subr.mxu0 0.0
  %1145 = vmatpush2.msra.mxu0 0.0
  %1146 = vmatprep.subr.mxu0 0.0
  %1147 = vmatpush2.msra.mxu0 0.0
  %1148 = vmatprep.subr.mxu0 0.0
  %1149 = vmatpush2.msra.mxu0 0.0
  %1150 = vmatprep.subr.mxu0 0.0
  %1151 = vmatpush2.msra.mxu0 0.0
  %1152 = vmatprep.subr.mxu0 0.0
  %1153 = vmatpush2.msra.mxu0 0.0
  %1154 = vmatprep.subr.mxu0 0.0
  %1155 = vmatpush2.msra.mxu0 0.0
  %1156 = vmatprep.subr.mxu0 0.0
  %1157 = vmatpush2.msra.mxu0 0.0
  %1158 = vmatprep.subr.mxu0 0.0
  %1159 = vmatpush2.msra.mxu0 0.0
  %1160 = vmatprep.subr.mxu0 0.0
  %1161 = vmatpush2.msra.mxu0 0.0
  %1162 = vmatprep.subr.mxu0 0.0
  %1163 = vmatpush2.msra.mxu0 0.0
  %1164 = vmatprep.subr.mxu0 0.0
  %1165 = vmatpush2.msra.mxu0 0.0
  %1166 = vmatprep.subr.mxu0 0.0
  %1167 = vmatpush2.msra.mxu0 0.0
  %1168 = vmatprep.mubr.f32.mxu0 0.0
  %1169 = vmatmul.mubr.f32.gmra.mxu0 %v1099
  %v1170 = vpop.f32.mrf.mxu0
  %v1171 = vadd.f32 0.0, %v1170
  %v1172 = vpop.f32.mrf.mxu0
  %1173 = vmatprep.mubr.f32.mxu0 0.0
  %1174 = vmatmul.mubr.f32.gmra.mxu0 %v1102
  %v1175 = vpop.f32.mrf.mxu0
  %v1176 = vadd.f32 0.0, %v1175
  %v1177 = vpop.f32.mrf.mxu0
  %1178 = vdwg.mxu0
  %v1180 = vsel %vm1097, %v1092, 0
  %v1183 = vsel %vm1097, %v1093, 0
  %1185 = vmatprep.subr.mxu0 0.0
  %1186 = vmatpush1.msra.mxu0 0.0
  %1187 = vmatprep.subr.mxu0 0.0
  %1188 = vmatpush1.msra.mxu0 0.0
  %1189 = vmatprep.subr.mxu0 0.0
  %1190 = vmatpush1.msra.mxu0 0.0
  %1191 = vmatprep.subr.mxu0 0.0
  %1192 = vmatpush1.msra.mxu0 0.0
  %1193 = vmatprep.subr.mxu0 0.0
  %1194 = vmatpush1.msra.mxu0 0.0
  %1195 = vmatprep.subr.mxu0 0.0
  %1196 = vmatpush1.msra.mxu0 0.0
  %1197 = vmatprep.subr.mxu0 0.0
  %1198 = vmatpush1.msra.mxu0 0.0
  %1199 = vmatprep.subr.mxu0 0.0
  %1200 = vmatpush1.msra.mxu0 0.0
  %1201 = vmatprep.subr.mxu0 0.0
  %1202 = vmatpush1.msra.mxu0 0.0
  %1203 = vmatprep.subr.mxu0 0.0
  %1204 = vmatpush1.msra.mxu0 0.0
  %1205 = vmatprep.subr.mxu0 0.0
  %1206 = vmatpush1.msra.mxu0 0.0
  %1207 = vmatprep.subr.mxu0 0.0
  %1208 = vmatpush1.msra.mxu0 0.0
  %1209 = vmatprep.subr.mxu0 0.0
  %1210 = vmatpush1.msra.mxu0 0.0
  %1211 = vmatprep.subr.mxu0 0.0
  %1212 = vmatpush1.msra.mxu0 0.0
  %1213 = vmatprep.subr.mxu0 0.0
  %1214 = vmatpush1.msra.mxu0 0.0
  %1215 = vmatprep.subr.mxu0 0.0
  %1216 = vmatpush1.msra.mxu0 %v1046
  %1217 = vmatprep.subr.mxu0 0.0
  %1218 = vmatpush2.msra.mxu0 0.0
  %1219 = vmatprep.subr.mxu0 0.0
  %1220 = vmatpush2.msra.mxu0 0.0
  %1221 = vmatprep.subr.mxu0 0.0
  %1222 = vmatpush2.msra.mxu0 0.0
  %1223 = vmatprep.subr.mxu0 0.0
  %1224 = vmatpush2.msra.mxu0 0.0
  %1225 = vmatprep.subr.mxu0 0.0
  %1226 = vmatpush2.msra.mxu0 0.0
  %1227 = vmatprep.subr.mxu0 0.0
  %1228 = vmatpush2.msra.mxu0 0.0
  %1229 = vmatprep.subr.mxu0 0.0
  %1230 = vmatpush2.msra.mxu0 0.0
  %1231 = vmatprep.subr.mxu0 0.0
  %1232 = vmatpush2.msra.mxu0 0.0
  %1233 = vmatprep.subr.mxu0 0.0
  %1234 = vmatpush2.msra.mxu0 0.0
  %1235 = vmatprep.subr.mxu0 0.0
  %1236 = vmatpush2.msra.mxu0 0.0
  %1237 = vmatprep.subr.mxu0 0.0
  %1238 = vmatpush2.msra.mxu0 0.0
  %1239 = vmatprep.subr.mxu0 0.0
  %1240 = vmatpush2.msra.mxu0 0.0
  %1241 = vmatprep.subr.mxu0 0.0
  %1242 = vmatpush2.msra.mxu0 0.0
  %1243 = vmatprep.subr.mxu0 0.0
  %1244 = vmatpush2.msra.mxu0 0.0
  %1245 = vmatprep.subr.mxu0 0.0
  %1246 = vmatpush2.msra.mxu0 0.0
  %1247 = vmatprep.subr.mxu0 0.0
  %1248 = vmatpush2.msra.mxu0 0.0
  %1249 = vmatprep.mubr.f32.mxu0 0.0
  %1250 = vmatmul.mubr.f32.gmra.mxu0 %v1180
  %v1251 = vpop.f32.mrf.mxu0
  %v1252 = vadd.f32 %v1171, %v1251
  %v1253 = vpop.f32.mrf.mxu0
  %1254 = vmatprep.mubr.f32.mxu0 0.0
  %1255 = vmatmul.mubr.f32.gmra.mxu0 %v1183
  %v1256 = vpop.f32.mrf.mxu0
  %v1257 = vadd.f32 %v1176, %v1256
  %v1258 = vpop.f32.mrf.mxu0
  %1259 = vdwg.mxu0
  %s1260 = scalar_lea.vmem %s53, 32
  %v1261 = vld [vmem:[%s1260] sm:$0xff]
  %v1262 = vld [vmem:[%s1260 + $0x8] sm:$0xff]
  %v1264 = vsel %vm1097, %v1261, 0
  %v1267 = vsel %vm1097, %v1262, 0
  %1269 = vmatprep.subr.mxu0 0.0
  %1270 = vmatpush1.msra.mxu0 0.0
  %1271 = vmatprep.subr.mxu0 0.0
  %1272 = vmatpush1.msra.mxu0 0.0
  %1273 = vmatprep.subr.mxu0 0.0
  %1274 = vmatpush1.msra.mxu0 0.0
  %1275 = vmatprep.subr.mxu0 0.0
  %1276 = vmatpush1.msra.mxu0 0.0
  %1277 = vmatprep.subr.mxu0 0.0
  %1278 = vmatpush1.msra.mxu0 0.0
  %1279 = vmatprep.subr.mxu0 0.0
  %1280 = vmatpush1.msra.mxu0 0.0
  %1281 = vmatprep.subr.mxu0 0.0
  %1282 = vmatpush1.msra.mxu0 0.0
  %1283 = vmatprep.subr.mxu0 0.0
  %1284 = vmatpush1.msra.mxu0 0.0
  %1285 = vmatprep.subr.mxu0 0.0
  %1286 = vmatpush1.msra.mxu0 0.0
  %1287 = vmatprep.subr.mxu0 0.0
  %1288 = vmatpush1.msra.mxu0 0.0
  %1289 = vmatprep.subr.mxu0 0.0
  %1290 = vmatpush1.msra.mxu0 0.0
  %1291 = vmatprep.subr.mxu0 0.0
  %1292 = vmatpush1.msra.mxu0 0.0
  %1293 = vmatprep.subr.mxu0 0.0
  %1294 = vmatpush1.msra.mxu0 0.0
  %1295 = vmatprep.subr.mxu0 0.0
  %1296 = vmatpush1.msra.mxu0 0.0
  %1297 = vmatprep.subr.mxu0 0.0
  %1298 = vmatpush1.msra.mxu0 0.0
  %1299 = vmatprep.subr.mxu0 0.0
  %1300 = vmatpush1.msra.mxu0 %v1059
  %1301 = vmatprep.subr.mxu0 0.0
  %1302 = vmatpush2.msra.mxu0 0.0
  %1303 = vmatprep.subr.mxu0 0.0
  %1304 = vmatpush2.msra.mxu0 0.0
  %1305 = vmatprep.subr.mxu0 0.0
  %1306 = vmatpush2.msra.mxu0 0.0
  %1307 = vmatprep.subr.mxu0 0.0
  %1308 = vmatpush2.msra.mxu0 0.0
  %1309 = vmatprep.subr.mxu0 0.0
  %1310 = vmatpush2.msra.mxu0 0.0
  %1311 = vmatprep.subr.mxu0 0.0
  %1312 = vmatpush2.msra.mxu0 0.0
  %1313 = vmatprep.subr.mxu0 0.0
  %1314 = vmatpush2.msra.mxu0 0.0
  %1315 = vmatprep.subr.mxu0 0.0
  %1316 = vmatpush2.msra.mxu0 0.0
  %1317 = vmatprep.subr.mxu0 0.0
  %1318 = vmatpush2.msra.mxu0 0.0
  %1319 = vmatprep.subr.mxu0 0.0
  %1320 = vmatpush2.msra.mxu0 0.0
  %1321 = vmatprep.subr.mxu0 0.0
  %1322 = vmatpush2.msra.mxu0 0.0
  %1323 = vmatprep.subr.mxu0 0.0
  %1324 = vmatpush2.msra.mxu0 0.0
  %1325 = vmatprep.subr.mxu0 0.0
  %1326 = vmatpush2.msra.mxu0 0.0
  %1327 = vmatprep.subr.mxu0 0.0
  %1328 = vmatpush2.msra.mxu0 0.0
  %1329 = vmatprep.subr.mxu0 0.0
  %1330 = vmatpush2.msra.mxu0 0.0
  %1331 = vmatprep.subr.mxu0 0.0
  %1332 = vmatpush2.msra.mxu0 0.0
  %1333 = vmatprep.mubr.f32.mxu0 0.0
  %1334 = vmatmul.mubr.f32.gmra.mxu0 %v1264
  %v1335 = vpop.f32.mrf.mxu0
  %v1336 = vadd.f32 0.0, %v1335
  %v1337 = vpop.f32.mrf.mxu0
  %1338 = vmatprep.mubr.f32.mxu0 0.0
  %1339 = vmatmul.mubr.f32.gmra.mxu0 %v1267
  %v1340 = vpop.f32.mrf.mxu0
  %v1341 = vadd.f32 0.0, %v1340
  %v1342 = vpop.f32.mrf.mxu0
  %1343 = vdwg.mxu0
  %v1344 = vadd.f32 %v1252, %v1336
  %v1345 = vadd.f32 %v1257, %v1341
  %v1346 = vld [vmem:[%s55] sm:$0xff]
  %v1347 = vld [vmem:[%s55 + $0x8] sm:$0xff]
  %1349 = vset.pattern.permute.xlu0 0
  %1350 = vperm.xlu0 %1349, %v1346
  %v1351 = vpop.permute.xlu0 %1350
  %1354 = vset.pattern.permute.xlu0 0
  %1355 = vperm.xlu0 %1354, %v1347
  %v1356 = vpop.permute.xlu0 %1355
  %v1358 = vadd.f32 %v1344, %v1351
  %v1359 = vadd.f32 %v1345, %v1356
  %v1360 = vadd.f32 %v1358, %v1090
  %v1361 = vadd.f32 %v1359, %v1091
  %v1362 = vxor.u32 %v1360, 2147483648
  %v1363 = vmul.f32 %v1362, 1.442695
  %v1364 = vpow.pop %v1363
  %v1365 = vadd.f32 %v1364, 1.0
  %v1366 = vrcp.pop %v1365
  %v1367 = vmul.f32 1.0, %v1366
  %v1368 = vtanh.pop %v1361
  %v1369 = vmul.f32 %v1367, %v1368
  %v1370 = vld [vmem:[%s57] sm:$0xff]
  %v1371 = vld [vmem:[%s57 + $0x8] sm:$0xff]
  %v1372 = vld [vmem:[%s59] sm:$0xff]
  %v1373 = vld [vmem:[%s59 + $0x8] sm:$0xff]
  %1375 = vset.pattern.permute.xlu0 0
  %1376 = vperm.xlu0 %1375, %v1372
  %v1377 = vpop.permute.xlu0 %1376
  %1380 = vset.pattern.permute.xlu0 0
  %1381 = vperm.xlu0 %1380, %v1373
  %v1382 = vpop.permute.xlu0 %1381
  %v1385 = vsel %vm1097, %v1370, 0
  %v1388 = vsel %vm1097, %v1371, 0
  %1390 = vmatprep.subr.mxu0 0.0
  %1391 = vmatpush1.msra.mxu0 0.0
  %1392 = vmatprep.subr.mxu0 0.0
  %1393 = vmatpush1.msra.mxu0 0.0
  %1394 = vmatprep.subr.mxu0 0.0
  %1395 = vmatpush1.msra.mxu0 0.0
  %1396 = vmatprep.subr.mxu0 0.0
  %1397 = vmatpush1.msra.mxu0 0.0
  %1398 = vmatprep.subr.mxu0 0.0
  %1399 = vmatpush1.msra.mxu0 0.0
  %1400 = vmatprep.subr.mxu0 0.0
  %1401 = vmatpush1.msra.mxu0 0.0
  %1402 = vmatprep.subr.mxu0 0.0
  %1403 = vmatpush1.msra.mxu0 0.0
  %1404 = vmatprep.subr.mxu0 0.0
  %1405 = vmatpush1.msra.mxu0 0.0
  %1406 = vmatprep.subr.mxu0 0.0
  %1407 = vmatpush1.msra.mxu0 0.0
  %1408 = vmatprep.subr.mxu0 0.0
  %1409 = vmatpush1.msra.mxu0 0.0
  %1410 = vmatprep.subr.mxu0 0.0
  %1411 = vmatpush1.msra.mxu0 0.0
  %1412 = vmatprep.subr.mxu0 0.0
  %1413 = vmatpush1.msra.mxu0 0.0
  %1414 = vmatprep.subr.mxu0 0.0
  %1415 = vmatpush1.msra.mxu0 0.0
  %1416 = vmatprep.subr.mxu0 0.0
  %1417 = vmatpush1.msra.mxu0 0.0
  %1418 = vmatprep.subr.mxu0 0.0
  %1419 = vmatpush1.msra.mxu0 0.0
  %1420 = vmatprep.subr.mxu0 0.0
  %1421 = vmatpush1.msra.mxu0 %v1369
  %1422 = vmatprep.subr.mxu0 0.0
  %1423 = vmatpush2.msra.mxu0 0.0
  %1424 = vmatprep.subr.mxu0 0.0
  %1425 = vmatpush2.msra.mxu0 0.0
  %1426 = vmatprep.subr.mxu0 0.0
  %1427 = vmatpush2.msra.mxu0 0.0
  %1428 = vmatprep.subr.mxu0 0.0
  %1429 = vmatpush2.msra.mxu0 0.0
  %1430 = vmatprep.subr.mxu0 0.0
  %1431 = vmatpush2.msra.mxu0 0.0
  %1432 = vmatprep.subr.mxu0 0.0
  %1433 = vmatpush2.msra.mxu0 0.0
  %1434 = vmatprep.subr.mxu0 0.0
  %1435 = vmatpush2.msra.mxu0 0.0
  %1436 = vmatprep.subr.mxu0 0.0
  %1437 = vmatpush2.msra.mxu0 0.0
  %1438 = vmatprep.subr.mxu0 0.0
  %1439 = vmatpush2.msra.mxu0 0.0
  %1440 = vmatprep.subr.mxu0 0.0
  %1441 = vmatpush2.msra.mxu0 0.0
  %1442 = vmatprep.subr.mxu0 0.0
  %1443 = vmatpush2.msra.mxu0 0.0
  %1444 = vmatprep.subr.mxu0 0.0
  %1445 = vmatpush2.msra.mxu0 0.0
  %1446 = vmatprep.subr.mxu0 0.0
  %1447 = vmatpush2.msra.mxu0 0.0
  %1448 = vmatprep.subr.mxu0 0.0
  %1449 = vmatpush2.msra.mxu0 0.0
  %1450 = vmatprep.subr.mxu0 0.0
  %1451 = vmatpush2.msra.mxu0 0.0
  %1452 = vmatprep.subr.mxu0 0.0
  %1453 = vmatpush2.msra.mxu0 0.0
  %1454 = vmatprep.mubr.f32.mxu0 0.0
  %1455 = vmatmul.mubr.f32.gmra.mxu0 %v1385
  %v1456 = vpop.f32.mrf.mxu0
  %v1457 = vadd.f32 %v1377, %v1456
  %v1458 = vpop.f32.mrf.mxu0
  %1459 = vmatprep.mubr.f32.mxu0 0.0
  %1460 = vmatmul.mubr.f32.gmra.mxu0 %v1388
  %v1461 = vpop.f32.mrf.mxu0
  %v1462 = vadd.f32 %v1382, %v1461
  %v1463 = vpop.f32.mrf.mxu0
  %1464 = vdwg.mxu0
  %v1465 = vadd.f32 %v1026, %v1457
  %v1466 = vmul.f32 %v1465, 0.70710677
  %v1467 = vadd.f32 %v1462, 0.0
  %1469 = vset.pattern.permute.xlu0 0
  %1470 = vperm.xlu0 %1469, %v377
  %v1471 = vpop.permute.xlu0 %1470
  %v1473 = vadd.f32 %v1466, %v1471
  %vm1474 = vcmp.ge.s32.totalorder %v1004, 2
  %1476 = vrot.lane.b32.xlu0 %v1473, 2
  %v1477 = vpop.permute.xlu0 %1476
  %vm1479 = vcmask 15360
  %v1480 = vsel %vm1479, 0.0, %v1477
  %v1481 = vsel %vm1474, 1, 0
  %v1482 = vlaneseq
  %v1483 = vshrl.u32 %v1482, 7
  %v1484 = vsub.s32 0, %v1483
  %v1485 = vrot.slane %v1481, %v1484
  %vm1486 = vcmp.eq.s32.totalorder %v1485, 1
  %v1487 = vsel %vm1486, %v1480, 0.0
  %vm1488 = vcmp.lt.s32.totalorder %v1004, 22
  %1489 = vrot.lane.b32.xlu0 %v1473, 126
  %v1490 = vpop.permute.xlu0 %1489
  %vm1492 = vcmask 1031168
  %v1493 = vsel %vm1492, %v1490, 0.0
  %v1494 = vsel %vm1488, 1, 0
  %v1495 = vlaneseq
  %v1496 = vshrl.u32 %v1495, 7
  %v1497 = vsub.s32 0, %v1496
  %v1498 = vrot.slane %v1494, %v1497
  %vm1499 = vcmp.eq.s32.totalorder %v1498, 1
  %v1500 = vsel %vm1499, %v1493, 0.0
  %s1501 = scalar_lea.vmem %s49, 16
  %v1502 = vld [vmem:[%s1501] sm:$0xff]
  %v1503 = vld [vmem:[%s1501 + $0x8] sm:$0xff]
  %1505 = vset.pattern.permute.xlu0 0
  %1506 = vperm.xlu0 %1505, %v1502
  %v1507 = vpop.permute.xlu0 %1506
  %1510 = vset.pattern.permute.xlu0 0
  %1511 = vperm.xlu0 %1510, %v1503
  %v1512 = vpop.permute.xlu0 %1511
  %v1514 = vmul.f32 %v1507, %v1075
  %v1515 = vmul.f32 %v1512, %v1075
  %s1516 = scalar_lea.vmem %s51, 16
  %v1517 = vld [vmem:[%s1516] sm:$0xff]
  %v1518 = vld [vmem:[%s1516 + $0x8] sm:$0xff]
  %1520 = vset.pattern.permute.xlu0 0
  %1521 = vperm.xlu0 %1520, %v1517
  %v1522 = vpop.permute.xlu0 %1521
  %1525 = vset.pattern.permute.xlu0 0
  %1526 = vperm.xlu0 %1525, %v1518
  %v1527 = vpop.permute.xlu0 %1526
  %v1529 = vadd.f32 %v1514, %v1522
  %v1530 = vadd.f32 %v1515, %v1527
  %s1531 = scalar_lea.vmem %s53, 48
  %v1532 = vld [vmem:[%s1531] sm:$0xff]
  %v1533 = vld [vmem:[%s1531 + $0x8] sm:$0xff]
  %s1534 = scalar_lea.vmem %s53, 64
  %v1535 = vld [vmem:[%s1534] sm:$0xff]
  %v1536 = vld [vmem:[%s1534 + $0x8] sm:$0xff]
  %v1538 = vsel %vm1097, %v1535, 0
  %v1541 = vsel %vm1097, %v1536, 0
  %1543 = vmatprep.subr.mxu0 0.0
  %1544 = vmatpush1.msra.mxu0 0.0
  %1545 = vmatprep.subr.mxu0 0.0
  %1546 = vmatpush1.msra.mxu0 0.0
  %1547 = vmatprep.subr.mxu0 0.0
  %1548 = vmatpush1.msra.mxu0 0.0
  %1549 = vmatprep.subr.mxu0 0.0
  %1550 = vmatpush1.msra.mxu0 0.0
  %1551 = vmatprep.subr.mxu0 0.0
  %1552 = vmatpush1.msra.mxu0 0.0
  %1553 = vmatprep.subr.mxu0 0.0
  %1554 = vmatpush1.msra.mxu0 0.0
  %1555 = vmatprep.subr.mxu0 0.0
  %1556 = vmatpush1.msra.mxu0 0.0
  %1557 = vmatprep.subr.mxu0 0.0
  %1558 = vmatpush1.msra.mxu0 0.0
  %1559 = vmatprep.subr.mxu0 0.0
  %1560 = vmatpush1.msra.mxu0 0.0
  %1561 = vmatprep.subr.mxu0 0.0
  %1562 = vmatpush1.msra.mxu0 0.0
  %1563 = vmatprep.subr.mxu0 0.0
  %1564 = vmatpush1.msra.mxu0 0.0
  %1565 = vmatprep.subr.mxu0 0.0
  %1566 = vmatpush1.msra.mxu0 0.0
  %1567 = vmatprep.subr.mxu0 0.0
  %1568 = vmatpush1.msra.mxu0 0.0
  %1569 = vmatprep.subr.mxu0 0.0
  %1570 = vmatpush1.msra.mxu0 0.0
  %1571 = vmatprep.subr.mxu0 0.0
  %1572 = vmatpush1.msra.mxu0 0.0
  %1573 = vmatprep.subr.mxu0 0.0
  %1574 = vmatpush1.msra.mxu0 %v1473
  %1575 = vmatprep.subr.mxu0 0.0
  %1576 = vmatpush2.msra.mxu0 0.0
  %1577 = vmatprep.subr.mxu0 0.0
  %1578 = vmatpush2.msra.mxu0 0.0
  %1579 = vmatprep.subr.mxu0 0.0
  %1580 = vmatpush2.msra.mxu0 0.0
  %1581 = vmatprep.subr.mxu0 0.0
  %1582 = vmatpush2.msra.mxu0 0.0
  %1583 = vmatprep.subr.mxu0 0.0
  %1584 = vmatpush2.msra.mxu0 0.0
  %1585 = vmatprep.subr.mxu0 0.0
  %1586 = vmatpush2.msra.mxu0 0.0
  %1587 = vmatprep.subr.mxu0 0.0
  %1588 = vmatpush2.msra.mxu0 0.0
  %1589 = vmatprep.subr.mxu0 0.0
  %1590 = vmatpush2.msra.mxu0 0.0
  %1591 = vmatprep.subr.mxu0 0.0
  %1592 = vmatpush2.msra.mxu0 0.0
  %1593 = vmatprep.subr.mxu0 0.0
  %1594 = vmatpush2.msra.mxu0 0.0
  %1595 = vmatprep.subr.mxu0 0.0
  %1596 = vmatpush2.msra.mxu0 0.0
  %1597 = vmatprep.subr.mxu0 0.0
  %1598 = vmatpush2.msra.mxu0 0.0
  %1599 = vmatprep.subr.mxu0 0.0
  %1600 = vmatpush2.msra.mxu0 0.0
  %1601 = vmatprep.subr.mxu0 0.0
  %1602 = vmatpush2.msra.mxu0 0.0
  %1603 = vmatprep.subr.mxu0 0.0
  %1604 = vmatpush2.msra.mxu0 0.0
  %1605 = vmatprep.subr.mxu0 0.0
  %1606 = vmatpush2.msra.mxu0 0.0
  %1607 = vmatprep.mubr.f32.mxu0 0.0
  %1608 = vmatmul.mubr.f32.gmra.mxu0 %v1538
  %v1609 = vpop.f32.mrf.mxu0
  %v1610 = vadd.f32 0.0, %v1609
  %v1611 = vpop.f32.mrf.mxu0
  %1612 = vmatprep.mubr.f32.mxu0 0.0
  %1613 = vmatmul.mubr.f32.gmra.mxu0 %v1541
  %v1614 = vpop.f32.mrf.mxu0
  %v1615 = vadd.f32 0.0, %v1614
  %v1616 = vpop.f32.mrf.mxu0
  %1617 = vdwg.mxu0
  %v1619 = vsel %vm1097, %v1532, 0
  %v1622 = vsel %vm1097, %v1533, 0
  %1624 = vmatprep.subr.mxu0 0.0
  %1625 = vmatpush1.msra.mxu0 0.0
  %1626 = vmatprep.subr.mxu0 0.0
  %1627 = vmatpush1.msra.mxu0 0.0
  %1628 = vmatprep.subr.mxu0 0.0
  %1629 = vmatpush1.msra.mxu0 0.0
  %1630 = vmatprep.subr.mxu0 0.0
  %1631 = vmatpush1.msra.mxu0 0.0
  %1632 = vmatprep.subr.mxu0 0.0
  %1633 = vmatpush1.msra.mxu0 0.0
  %1634 = vmatprep.subr.mxu0 0.0
  %1635 = vmatpush1.msra.mxu0 0.0
  %1636 = vmatprep.subr.mxu0 0.0
  %1637 = vmatpush1.msra.mxu0 0.0
  %1638 = vmatprep.subr.mxu0 0.0
  %1639 = vmatpush1.msra.mxu0 0.0
  %1640 = vmatprep.subr.mxu0 0.0
  %1641 = vmatpush1.msra.mxu0 0.0
  %1642 = vmatprep.subr.mxu0 0.0
  %1643 = vmatpush1.msra.mxu0 0.0
  %1644 = vmatprep.subr.mxu0 0.0
  %1645 = vmatpush1.msra.mxu0 0.0
  %1646 = vmatprep.subr.mxu0 0.0
  %1647 = vmatpush1.msra.mxu0 0.0
  %1648 = vmatprep.subr.mxu0 0.0
  %1649 = vmatpush1.msra.mxu0 0.0
  %1650 = vmatprep.subr.mxu0 0.0
  %1651 = vmatpush1.msra.mxu0 0.0
  %1652 = vmatprep.subr.mxu0 0.0
  %1653 = vmatpush1.msra.mxu0 0.0
  %1654 = vmatprep.subr.mxu0 0.0
  %1655 = vmatpush1.msra.mxu0 %v1487
  %1656 = vmatprep.subr.mxu0 0.0
  %1657 = vmatpush2.msra.mxu0 0.0
  %1658 = vmatprep.subr.mxu0 0.0
  %1659 = vmatpush2.msra.mxu0 0.0
  %1660 = vmatprep.subr.mxu0 0.0
  %1661 = vmatpush2.msra.mxu0 0.0
  %1662 = vmatprep.subr.mxu0 0.0
  %1663 = vmatpush2.msra.mxu0 0.0
  %1664 = vmatprep.subr.mxu0 0.0
  %1665 = vmatpush2.msra.mxu0 0.0
  %1666 = vmatprep.subr.mxu0 0.0
  %1667 = vmatpush2.msra.mxu0 0.0
  %1668 = vmatprep.subr.mxu0 0.0
  %1669 = vmatpush2.msra.mxu0 0.0
  %1670 = vmatprep.subr.mxu0 0.0
  %1671 = vmatpush2.msra.mxu0 0.0
  %1672 = vmatprep.subr.mxu0 0.0
  %1673 = vmatpush2.msra.mxu0 0.0
  %1674 = vmatprep.subr.mxu0 0.0
  %1675 = vmatpush2.msra.mxu0 0.0
  %1676 = vmatprep.subr.mxu0 0.0
  %1677 = vmatpush2.msra.mxu0 0.0
  %1678 = vmatprep.subr.mxu0 0.0
  %1679 = vmatpush2.msra.mxu0 0.0
  %1680 = vmatprep.subr.mxu0 0.0
  %1681 = vmatpush2.msra.mxu0 0.0
  %1682 = vmatprep.subr.mxu0 0.0
  %1683 = vmatpush2.msra.mxu0 0.0
  %1684 = vmatprep.subr.mxu0 0.0
  %1685 = vmatpush2.msra.mxu0 0.0
  %1686 = vmatprep.subr.mxu0 0.0
  %1687 = vmatpush2.msra.mxu0 0.0
  %1688 = vmatprep.mubr.f32.mxu0 0.0
  %1689 = vmatmul.mubr.f32.gmra.mxu0 %v1619
  %v1690 = vpop.f32.mrf.mxu0
  %v1691 = vadd.f32 %v1610, %v1690
  %v1692 = vpop.f32.mrf.mxu0
  %1693 = vmatprep.mubr.f32.mxu0 0.0
  %1694 = vmatmul.mubr.f32.gmra.mxu0 %v1622
  %v1695 = vpop.f32.mrf.mxu0
  %v1696 = vadd.f32 %v1615, %v1695
  %v1697 = vpop.f32.mrf.mxu0
  %1698 = vdwg.mxu0
  %s1699 = scalar_lea.vmem %s53, 80
  %v1700 = vld [vmem:[%s1699] sm:$0xff]
  %v1701 = vld [vmem:[%s1699 + $0x8] sm:$0xff]
  %v1703 = vsel %vm1097, %v1700, 0
  %v1706 = vsel %vm1097, %v1701, 0
  %1708 = vmatprep.subr.mxu0 0.0
  %1709 = vmatpush1.msra.mxu0 0.0
  %1710 = vmatprep.subr.mxu0 0.0
  %1711 = vmatpush1.msra.mxu0 0.0
  %1712 = vmatprep.subr.mxu0 0.0
  %1713 = vmatpush1.msra.mxu0 0.0
  %1714 = vmatprep.subr.mxu0 0.0
  %1715 = vmatpush1.msra.mxu0 0.0
  %1716 = vmatprep.subr.mxu0 0.0
  %1717 = vmatpush1.msra.mxu0 0.0
  %1718 = vmatprep.subr.mxu0 0.0
  %1719 = vmatpush1.msra.mxu0 0.0
  %1720 = vmatprep.subr.mxu0 0.0
  %1721 = vmatpush1.msra.mxu0 0.0
  %1722 = vmatprep.subr.mxu0 0.0
  %1723 = vmatpush1.msra.mxu0 0.0
  %1724 = vmatprep.subr.mxu0 0.0
  %1725 = vmatpush1.msra.mxu0 0.0
  %1726 = vmatprep.subr.mxu0 0.0
  %1727 = vmatpush1.msra.mxu0 0.0
  %1728 = vmatprep.subr.mxu0 0.0
  %1729 = vmatpush1.msra.mxu0 0.0
  %1730 = vmatprep.subr.mxu0 0.0
  %1731 = vmatpush1.msra.mxu0 0.0
  %1732 = vmatprep.subr.mxu0 0.0
  %1733 = vmatpush1.msra.mxu0 0.0
  %1734 = vmatprep.subr.mxu0 0.0
  %1735 = vmatpush1.msra.mxu0 0.0
  %1736 = vmatprep.subr.mxu0 0.0
  %1737 = vmatpush1.msra.mxu0 0.0
  %1738 = vmatprep.subr.mxu0 0.0
  %1739 = vmatpush1.msra.mxu0 %v1500
  %1740 = vmatprep.subr.mxu0 0.0
  %1741 = vmatpush2.msra.mxu0 0.0
  %1742 = vmatprep.subr.mxu0 0.0
  %1743 = vmatpush2.msra.mxu0 0.0
  %1744 = vmatprep.subr.mxu0 0.0
  %1745 = vmatpush2.msra.mxu0 0.0
  %1746 = vmatprep.subr.mxu0 0.0
  %1747 = vmatpush2.msra.mxu0 0.0
  %1748 = vmatprep.subr.mxu0 0.0
  %1749 = vmatpush2.msra.mxu0 0.0
  %1750 = vmatprep.subr.mxu0 0.0
  %1751 = vmatpush2.msra.mxu0 0.0
  %1752 = vmatprep.subr.mxu0 0.0
  %1753 = vmatpush2.msra.mxu0 0.0
  %1754 = vmatprep.subr.mxu0 0.0
  %1755 = vmatpush2.msra.mxu0 0.0
  %1756 = vmatprep.subr.mxu0 0.0
  %1757 = vmatpush2.msra.mxu0 0.0
  %1758 = vmatprep.subr.mxu0 0.0
  %1759 = vmatpush2.msra.mxu0 0.0
  %1760 = vmatprep.subr.mxu0 0.0
  %1761 = vmatpush2.msra.mxu0 0.0
  %1762 = vmatprep.subr.mxu0 0.0
  %1763 = vmatpush2.msra.mxu0 0.0
  %1764 = vmatprep.subr.mxu0 0.0
  %1765 = vmatpush2.msra.mxu0 0.0
  %1766 = vmatprep.subr.mxu0 0.0
  %1767 = vmatpush2.msra.mxu0 0.0
  %1768 = vmatprep.subr.mxu0 0.0
  %1769 = vmatpush2.msra.mxu0 0.0
  %1770 = vmatprep.subr.mxu0 0.0
  %1771 = vmatpush2.msra.mxu0 0.0
  %1772 = vmatprep.mubr.f32.mxu0 0.0
  %1773 = vmatmul.mubr.f32.gmra.mxu0 %v1703
  %v1774 = vpop.f32.mrf.mxu0
  %v1775 = vadd.f32 0.0, %v1774
  %v1776 = vpop.f32.mrf.mxu0
  %1777 = vmatprep.mubr.f32.mxu0 0.0
  %1778 = vmatmul.mubr.f32.gmra.mxu0 %v1706
  %v1779 = vpop.f32.mrf.mxu0
  %v1780 = vadd.f32 0.0, %v1779
  %v1781 = vpop.f32.mrf.mxu0
  %1782 = vdwg.mxu0
  %v1783 = vadd.f32 %v1691, %v1775
  %v1784 = vadd.f32 %v1696, %v1780
  %s1785 = scalar_lea.vmem %s55, 16
  %v1786 = vld [vmem:[%s1785] sm:$0xff]
  %v1787 = vld [vmem:[%s1785 + $0x8] sm:$0xff]
  %1789 = vset.pattern.permute.xlu0 0
  %1790 = vperm.xlu0 %1789, %v1786
  %v1791 = vpop.permute.xlu0 %1790
  %1794 = vset.pattern.permute.xlu0 0
  %1795 = vperm.xlu0 %1794, %v1787
  %v1796 = vpop.permute.xlu0 %1795
  %v1798 = vadd.f32 %v1783, %v1791
  %v1799 = vadd.f32 %v1784, %v1796
  %v1800 = vadd.f32 %v1798, %v1529
  %v1801 = vadd.f32 %v1799, %v1530
  %v1802 = vxor.u32 %v1800, 2147483648
  %v1803 = vmul.f32 %v1802, 1.442695
  %v1804 = vpow.pop %v1803
  %v1805 = vadd.f32 %v1804, 1.0
  %v1806 = vrcp.pop %v1805
  %v1807 = vmul.f32 1.0, %v1806
  %v1808 = vtanh.pop %v1801
  %v1809 = vmul.f32 %v1807, %v1808
  %s1810 = scalar_lea.vmem %s57, 16
  %v1811 = vld [vmem:[%s1810] sm:$0xff]
  %v1812 = vld [vmem:[%s1810 + $0x8] sm:$0xff]
  %s1813 = scalar_lea.vmem %s59, 16
  %v1814 = vld [vmem:[%s1813] sm:$0xff]
  %v1815 = vld [vmem:[%s1813 + $0x8] sm:$0xff]
  %1817 = vset.pattern.permute.xlu0 0
  %1818 = vperm.xlu0 %1817, %v1814
  %v1819 = vpop.permute.xlu0 %1818
  %1822 = vset.pattern.permute.xlu0 0
  %1823 = vperm.xlu0 %1822, %v1815
  %v1824 = vpop.permute.xlu0 %1823
  %v1827 = vsel %vm1097, %v1811, 0
  %v1830 = vsel %vm1097, %v1812, 0
  %1832 = vmatprep.subr.mxu0 0.0
  %1833 = vmatpush1.msra.mxu0 0.0
  %1834 = vmatprep.subr.mxu0 0.0
  %1835 = vmatpush1.msra.mxu0 0.0
  %1836 = vmatprep.subr.mxu0 0.0
  %1837 = vmatpush1.msra.mxu0 0.0
  %1838 = vmatprep.subr.mxu0 0.0
  %1839 = vmatpush1.msra.mxu0 0.0
  %1840 = vmatprep.subr.mxu0 0.0
  %1841 = vmatpush1.msra.mxu0 0.0
  %1842 = vmatprep.subr.mxu0 0.0
  %1843 = vmatpush1.msra.mxu0 0.0
  %1844 = vmatprep.subr.mxu0 0.0
  %1845 = vmatpush1.msra.mxu0 0.0
  %1846 = vmatprep.subr.mxu0 0.0
  %1847 = vmatpush1.msra.mxu0 0.0
  %1848 = vmatprep.subr.mxu0 0.0
  %1849 = vmatpush1.msra.mxu0 0.0
  %1850 = vmatprep.subr.mxu0 0.0
  %1851 = vmatpush1.msra.mxu0 0.0
  %1852 = vmatprep.subr.mxu0 0.0
  %1853 = vmatpush1.msra.mxu0 0.0
  %1854 = vmatprep.subr.mxu0 0.0
  %1855 = vmatpush1.msra.mxu0 0.0
  %1856 = vmatprep.subr.mxu0 0.0
  %1857 = vmatpush1.msra.mxu0 0.0
  %1858 = vmatprep.subr.mxu0 0.0
  %1859 = vmatpush1.msra.mxu0 0.0
  %1860 = vmatprep.subr.mxu0 0.0
  %1861 = vmatpush1.msra.mxu0 0.0
  %1862 = vmatprep.subr.mxu0 0.0
  %1863 = vmatpush1.msra.mxu0 %v1809
  %1864 = vmatprep.subr.mxu0 0.0
  %1865 = vmatpush2.msra.mxu0 0.0
  %1866 = vmatprep.subr.mxu0 0.0
  %1867 = vmatpush2.msra.mxu0 0.0
  %1868 = vmatprep.subr.mxu0 0.0
  %1869 = vmatpush2.msra.mxu0 0.0
  %1870 = vmatprep.subr.mxu0 0.0
  %1871 = vmatpush2.msra.mxu0 0.0
  %1872 = vmatprep.subr.mxu0 0.0
  %1873 = vmatpush2.msra.mxu0 0.0
  %1874 = vmatprep.subr.mxu0 0.0
  %1875 = vmatpush2.msra.mxu0 0.0
  %1876 = vmatprep.subr.mxu0 0.0
  %1877 = vmatpush2.msra.mxu0 0.0
  %1878 = vmatprep.subr.mxu0 0.0
  %1879 = vmatpush2.msra.mxu0 0.0
  %1880 = vmatprep.subr.mxu0 0.0
  %1881 = vmatpush2.msra.mxu0 0.0
  %1882 = vmatprep.subr.mxu0 0.0
  %1883 = vmatpush2.msra.mxu0 0.0
  %1884 = vmatprep.subr.mxu0 0.0
  %1885 = vmatpush2.msra.mxu0 0.0
  %1886 = vmatprep.subr.mxu0 0.0
  %1887 = vmatpush2.msra.mxu0 0.0
  %1888 = vmatprep.subr.mxu0 0.0
  %1889 = vmatpush2.msra.mxu0 0.0
  %1890 = vmatprep.subr.mxu0 0.0
  %1891 = vmatpush2.msra.mxu0 0.0
  %1892 = vmatprep.subr.mxu0 0.0
  %1893 = vmatpush2.msra.mxu0 0.0
  %1894 = vmatprep.subr.mxu0 0.0
  %1895 = vmatpush2.msra.mxu0 0.0
  %1896 = vmatprep.mubr.f32.mxu0 0.0
  %1897 = vmatmul.mubr.f32.gmra.mxu0 %v1827
  %v1898 = vpop.f32.mrf.mxu0
  %v1899 = vadd.f32 %v1819, %v1898
  %v1900 = vpop.f32.mrf.mxu0
  %1901 = vmatprep.mubr.f32.mxu0 0.0
  %1902 = vmatmul.mubr.f32.gmra.mxu0 %v1830
  %v1903 = vpop.f32.mrf.mxu0
  %v1904 = vadd.f32 %v1824, %v1903
  %v1905 = vpop.f32.mrf.mxu0
  %1906 = vdwg.mxu0
  %v1907 = vadd.f32 %v1466, %v1899
  %v1908 = vmul.f32 %v1907, 0.70710677
  %v1909 = vadd.f32 %v1467, %v1904
  %1911 = vset.pattern.permute.xlu0 0
  %1912 = vperm.xlu0 %1911, %v378
  %v1913 = vpop.permute.xlu0 %1912
  %v1915 = vadd.f32 %v1908, %v1913
  %1917 = vrot.lane.b32.xlu0 %v1915, 1
  %v1918 = vpop.permute.xlu0 %1917
  %v1920 = vsel %vm1038, 0.0, %v1918
  %v1921 = vsel %vm1045, %v1920, 0.0
  %1922 = vrot.lane.b32.xlu0 %v1915, 127
  %v1923 = vpop.permute.xlu0 %1922
  %v1925 = vsel %vm1051, %v1923, 0.0
  %v1926 = vsel %vm1058, %v1925, 0.0
  %s1927 = scalar_lea.vmem %s49, 32
  %v1928 = vld [vmem:[%s1927] sm:$0xff]
  %v1929 = vld [vmem:[%s1927 + $0x8] sm:$0xff]
  %1931 = vset.pattern.permute.xlu0 0
  %1932 = vperm.xlu0 %1931, %v1928
  %v1933 = vpop.permute.xlu0 %1932
  %1936 = vset.pattern.permute.xlu0 0
  %1937 = vperm.xlu0 %1936, %v1929
  %v1938 = vpop.permute.xlu0 %1937
  %v1940 = vmul.f32 %v1933, %v1075
  %v1941 = vmul.f32 %v1938, %v1075
  %s1942 = scalar_lea.vmem %s51, 32
  %v1943 = vld [vmem:[%s1942] sm:$0xff]
  %v1944 = vld [vmem:[%s1942 + $0x8] sm:$0xff]
  %1946 = vset.pattern.permute.xlu0 0
  %1947 = vperm.xlu0 %1946, %v1943
  %v1948 = vpop.permute.xlu0 %1947
  %1951 = vset.pattern.permute.xlu0 0
  %1952 = vperm.xlu0 %1951, %v1944
  %v1953 = vpop.permute.xlu0 %1952
  %v1955 = vadd.f32 %v1940, %v1948
  %v1956 = vadd.f32 %v1941, %v1953
  %s1957 = scalar_lea.vmem %s53, 96
  %v1958 = vld [vmem:[%s1957] sm:$0xff]
  %v1959 = vld [vmem:[%s1957 + $0x8] sm:$0xff]
  %s1960 = scalar_lea.vmem %s53, 112
  %v1961 = vld [vmem:[%s1960] sm:$0xff]
  %v1962 = vld [vmem:[%s1960 + $0x8] sm:$0xff]
  %v1964 = vsel %vm1097, %v1961, 0
  %v1967 = vsel %vm1097, %v1962, 0
  %1969 = vmatprep.subr.mxu0 0.0
  %1970 = vmatpush1.msra.mxu0 0.0
  %1971 = vmatprep.subr.mxu0 0.0
  %1972 = vmatpush1.msra.mxu0 0.0
  %1973 = vmatprep.subr.mxu0 0.0
  %1974 = vmatpush1.msra.mxu0 0.0
  %1975 = vmatprep.subr.mxu0 0.0
  %1976 = vmatpush1.msra.mxu0 0.0
  %1977 = vmatprep.subr.mxu0 0.0
  %1978 = vmatpush1.msra.mxu0 0.0
  %1979 = vmatprep.subr.mxu0 0.0
  %1980 = vmatpush1.msra.mxu0 0.0
  %1981 = vmatprep.subr.mxu0 0.0
  %1982 = vmatpush1.msra.mxu0 0.0
  %1983 = vmatprep.subr.mxu0 0.0
  %1984 = vmatpush1.msra.mxu0 0.0
  %1985 = vmatprep.subr.mxu0 0.0
  %1986 = vmatpush1.msra.mxu0 0.0
  %1987 = vmatprep.subr.mxu0 0.0
  %1988 = vmatpush1.msra.mxu0 0.0
  %1989 = vmatprep.subr.mxu0 0.0
  %1990 = vmatpush1.msra.mxu0 0.0
  %1991 = vmatprep.subr.mxu0 0.0
  %1992 = vmatpush1.msra.mxu0 0.0
  %1993 = vmatprep.subr.mxu0 0.0
  %1994 = vmatpush1.msra.mxu0 0.0
  %1995 = vmatprep.subr.mxu0 0.0
  %1996 = vmatpush1.msra.mxu0 0.0
  %1997 = vmatprep.subr.mxu0 0.0
  %1998 = vmatpush1.msra.mxu0 0.0
  %1999 = vmatprep.subr.mxu0 0.0
  %2000 = vmatpush1.msra.mxu0 %v1915
  %2001 = vmatprep.subr.mxu0 0.0
  %2002 = vmatpush2.msra.mxu0 0.0
  %2003 = vmatprep.subr.mxu0 0.0
  %2004 = vmatpush2.msra.mxu0 0.0
  %2005 = vmatprep.subr.mxu0 0.0
  %2006 = vmatpush2.msra.mxu0 0.0
  %2007 = vmatprep.subr.mxu0 0.0
  %2008 = vmatpush2.msra.mxu0 0.0
  %2009 = vmatprep.subr.mxu0 0.0
  %2010 = vmatpush2.msra.mxu0 0.0
  %2011 = vmatprep.subr.mxu0 0.0
  %2012 = vmatpush2.msra.mxu0 0.0
  %2013 = vmatprep.subr.mxu0 0.0
  %2014 = vmatpush2.msra.mxu0 0.0
  %2015 = vmatprep.subr.mxu0 0.0
  %2016 = vmatpush2.msra.mxu0 0.0
  %2017 = vmatprep.subr.mxu0 0.0
  %2018 = vmatpush2.msra.mxu0 0.0
  %2019 = vmatprep.subr.mxu0 0.0
  %2020 = vmatpush2.msra.mxu0 0.0
  %2021 = vmatprep.subr.mxu0 0.0
  %2022 = vmatpush2.msra.mxu0 0.0
  %2023 = vmatprep.subr.mxu0 0.0
  %2024 = vmatpush2.msra.mxu0 0.0
  %2025 = vmatprep.subr.mxu0 0.0
  %2026 = vmatpush2.msra.mxu0 0.0
  %2027 = vmatprep.subr.mxu0 0.0
  %2028 = vmatpush2.msra.mxu0 0.0
  %2029 = vmatprep.subr.mxu0 0.0
  %2030 = vmatpush2.msra.mxu0 0.0
  %2031 = vmatprep.subr.mxu0 0.0
  %2032 = vmatpush2.msra.mxu0 0.0
  %2033 = vmatprep.mubr.f32.mxu0 0.0
  %2034 = vmatmul.mubr.f32.gmra.mxu0 %v1964
  %v2035 = vpop.f32.mrf.mxu0
  %v2036 = vadd.f32 0.0, %v2035
  %v2037 = vpop.f32.mrf.mxu0
  %2038 = vmatprep.mubr.f32.mxu0 0.0
  %2039 = vmatmul.mubr.f32.gmra.mxu0 %v1967
  %v2040 = vpop.f32.mrf.mxu0
  %v2041 = vadd.f32 0.0, %v2040
  %v2042 = vpop.f32.mrf.mxu0
  %2043 = vdwg.mxu0
  %v2045 = vsel %vm1097, %v1958, 0
  %v2048 = vsel %vm1097, %v1959, 0
  %2050 = vmatprep.subr.mxu0 0.0
  %2051 = vmatpush1.msra.mxu0 0.0
  %2052 = vmatprep.subr.mxu0 0.0
  %2053 = vmatpush1.msra.mxu0 0.0
  %2054 = vmatprep.subr.mxu0 0.0
  %2055 = vmatpush1.msra.mxu0 0.0
  %2056 = vmatprep.subr.mxu0 0.0
  %2057 = vmatpush1.msra.mxu0 0.0
  %2058 = vmatprep.subr.mxu0 0.0
  %2059 = vmatpush1.msra.mxu0 0.0
  %2060 = vmatprep.subr.mxu0 0.0
  %2061 = vmatpush1.msra.mxu0 0.0
  %2062 = vmatprep.subr.mxu0 0.0
  %2063 = vmatpush1.msra.mxu0 0.0
  %2064 = vmatprep.subr.mxu0 0.0
  %2065 = vmatpush1.msra.mxu0 0.0
  %2066 = vmatprep.subr.mxu0 0.0
  %2067 = vmatpush1.msra.mxu0 0.0
  %2068 = vmatprep.subr.mxu0 0.0
  %2069 = vmatpush1.msra.mxu0 0.0
  %2070 = vmatprep.subr.mxu0 0.0
  %2071 = vmatpush1.msra.mxu0 0.0
  %2072 = vmatprep.subr.mxu0 0.0
  %2073 = vmatpush1.msra.mxu0 0.0
  %2074 = vmatprep.subr.mxu0 0.0
  %2075 = vmatpush1.msra.mxu0 0.0
  %2076 = vmatprep.subr.mxu0 0.0
  %2077 = vmatpush1.msra.mxu0 0.0
  %2078 = vmatprep.subr.mxu0 0.0
  %2079 = vmatpush1.msra.mxu0 0.0
  %2080 = vmatprep.subr.mxu0 0.0
  %2081 = vmatpush1.msra.mxu0 %v1921
  %2082 = vmatprep.subr.mxu0 0.0
  %2083 = vmatpush2.msra.mxu0 0.0
  %2084 = vmatprep.subr.mxu0 0.0
  %2085 = vmatpush2.msra.mxu0 0.0
  %2086 = vmatprep.subr.mxu0 0.0
  %2087 = vmatpush2.msra.mxu0 0.0
  %2088 = vmatprep.subr.mxu0 0.0
  %2089 = vmatpush2.msra.mxu0 0.0
  %2090 = vmatprep.subr.mxu0 0.0
  %2091 = vmatpush2.msra.mxu0 0.0
  %2092 = vmatprep.subr.mxu0 0.0
  %2093 = vmatpush2.msra.mxu0 0.0
  %2094 = vmatprep.subr.mxu0 0.0
  %2095 = vmatpush2.msra.mxu0 0.0
  %2096 = vmatprep.subr.mxu0 0.0
  %2097 = vmatpush2.msra.mxu0 0.0
  %2098 = vmatprep.subr.mxu0 0.0
  %2099 = vmatpush2.msra.mxu0 0.0
  %2100 = vmatprep.subr.mxu0 0.0
  %2101 = vmatpush2.msra.mxu0 0.0
  %2102 = vmatprep.subr.mxu0 0.0
  %2103 = vmatpush2.msra.mxu0 0.0
  %2104 = vmatprep.subr.mxu0 0.0
  %2105 = vmatpush2.msra.mxu0 0.0
  %2106 = vmatprep.subr.mxu0 0.0
  %2107 = vmatpush2.msra.mxu0 0.0
  %2108 = vmatprep.subr.mxu0 0.0
  %2109 = vmatpush2.msra.mxu0 0.0
  %2110 = vmatprep.subr.mxu0 0.0
  %2111 = vmatpush2.msra.mxu0 0.0
  %2112 = vmatprep.subr.mxu0 0.0
  %2113 = vmatpush2.msra.mxu0 0.0
  %2114 = vmatprep.mubr.f32.mxu0 0.0
  %2115 = vmatmul.mubr.f32.gmra.mxu0 %v2045
  %v2116 = vpop.f32.mrf.mxu0
  %v2117 = vadd.f32 %v2036, %v2116
  %v2118 = vpop.f32.mrf.mxu0
  %2119 = vmatprep.mubr.f32.mxu0 0.0
  %2120 = vmatmul.mubr.f32.gmra.mxu0 %v2048
  %v2121 = vpop.f32.mrf.mxu0
  %v2122 = vadd.f32 %v2041, %v2121
  %v2123 = vpop.f32.mrf.mxu0
  %2124 = vdwg.mxu0
  %s2125 = scalar_lea.vmem %s53, 128
  %v2126 = vld [vmem:[%s2125] sm:$0xff]
  %v2127 = vld [vmem:[%s2125 + $0x8] sm:$0xff]
  %v2129 = vsel %vm1097, %v2126, 0
  %v2132 = vsel %vm1097, %v2127, 0
  %2134 = vmatprep.subr.mxu0 0.0
  %2135 = vmatpush1.msra.mxu0 0.0
  %2136 = vmatprep.subr.mxu0 0.0
  %2137 = vmatpush1.msra.mxu0 0.0
  %2138 = vmatprep.subr.mxu0 0.0
  %2139 = vmatpush1.msra.mxu0 0.0
  %2140 = vmatprep.subr.mxu0 0.0
  %2141 = vmatpush1.msra.mxu0 0.0
  %2142 = vmatprep.subr.mxu0 0.0
  %2143 = vmatpush1.msra.mxu0 0.0
  %2144 = vmatprep.subr.mxu0 0.0
  %2145 = vmatpush1.msra.mxu0 0.0
  %2146 = vmatprep.subr.mxu0 0.0
  %2147 = vmatpush1.msra.mxu0 0.0
  %2148 = vmatprep.subr.mxu0 0.0
  %2149 = vmatpush1.msra.mxu0 0.0
  %2150 = vmatprep.subr.mxu0 0.0
  %2151 = vmatpush1.msra.mxu0 0.0
  %2152 = vmatprep.subr.mxu0 0.0
  %2153 = vmatpush1.msra.mxu0 0.0
  %2154 = vmatprep.subr.mxu0 0.0
  %2155 = vmatpush1.msra.mxu0 0.0
  %2156 = vmatprep.subr.mxu0 0.0
  %2157 = vmatpush1.msra.mxu0 0.0
  %2158 = vmatprep.subr.mxu0 0.0
  %2159 = vmatpush1.msra.mxu0 0.0
  %2160 = vmatprep.subr.mxu0 0.0
  %2161 = vmatpush1.msra.mxu0 0.0
  %2162 = vmatprep.subr.mxu0 0.0
  %2163 = vmatpush1.msra.mxu0 0.0
  %2164 = vmatprep.subr.mxu0 0.0
  %2165 = vmatpush1.msra.mxu0 %v1926
  %2166 = vmatprep.subr.mxu0 0.0
  %2167 = vmatpush2.msra.mxu0 0.0
  %2168 = vmatprep.subr.mxu0 0.0
  %2169 = vmatpush2.msra.mxu0 0.0
  %2170 = vmatprep.subr.mxu0 0.0
  %2171 = vmatpush2.msra.mxu0 0.0
  %2172 = vmatprep.subr.mxu0 0.0
  %2173 = vmatpush2.msra.mxu0 0.0
  %2174 = vmatprep.subr.mxu0 0.0
  %2175 = vmatpush2.msra.mxu0 0.0
  %2176 = vmatprep.subr.mxu0 0.0
  %2177 = vmatpush2.msra.mxu0 0.0
  %2178 = vmatprep.subr.mxu0 0.0
  %2179 = vmatpush2.msra.mxu0 0.0
  %2180 = vmatprep.subr.mxu0 0.0
  %2181 = vmatpush2.msra.mxu0 0.0
  %2182 = vmatprep.subr.mxu0 0.0
  %2183 = vmatpush2.msra.mxu0 0.0
  %2184 = vmatprep.subr.mxu0 0.0
  %2185 = vmatpush2.msra.mxu0 0.0
  %2186 = vmatprep.subr.mxu0 0.0
  %2187 = vmatpush2.msra.mxu0 0.0
  %2188 = vmatprep.subr.mxu0 0.0
  %2189 = vmatpush2.msra.mxu0 0.0
  %2190 = vmatprep.subr.mxu0 0.0
  %2191 = vmatpush2.msra.mxu0 0.0
  %2192 = vmatprep.subr.mxu0 0.0
  %2193 = vmatpush2.msra.mxu0 0.0
  %2194 = vmatprep.subr.mxu0 0.0
  %2195 = vmatpush2.msra.mxu0 0.0
  %2196 = vmatprep.subr.mxu0 0.0
  %2197 = vmatpush2.msra.mxu0 0.0
  %2198 = vmatprep.mubr.f32.mxu0 0.0
  %2199 = vmatmul.mubr.f32.gmra.mxu0 %v2129
  %v2200 = vpop.f32.mrf.mxu0
  %v2201 = vadd.f32 0.0, %v2200
  %v2202 = vpop.f32.mrf.mxu0
  %2203 = vmatprep.mubr.f32.mxu0 0.0
  %2204 = vmatmul.mubr.f32.gmra.mxu0 %v2132
  %v2205 = vpop.f32.mrf.mxu0
  %v2206 = vadd.f32 0.0, %v2205
  %v2207 = vpop.f32.mrf.mxu0
  %2208 = vdwg.mxu0
  %v2209 = vadd.f32 %v2117, %v2201
  %v2210 = vadd.f32 %v2122, %v2206
  %s2211 = scalar_lea.vmem %s55, 32
  %v2212 = vld [vmem:[%s2211] sm:$0xff]
  %v2213 = vld [vmem:[%s2211 + $0x8] sm:$0xff]
  %2215 = vset.pattern.permute.xlu0 0
  %2216 = vperm.xlu0 %2215, %v2212
  %v2217 = vpop.permute.xlu0 %2216
  %2220 = vset.pattern.permute.xlu0 0
  %2221 = vperm.xlu0 %2220, %v2213
  %v2222 = vpop.permute.xlu0 %2221
  %v2224 = vadd.f32 %v2209, %v2217
  %v2225 = vadd.f32 %v2210, %v2222
  %v2226 = vadd.f32 %v2224, %v1955
  %v2227 = vadd.f32 %v2225, %v1956
  %v2228 = vxor.u32 %v2226, 2147483648
  %v2229 = vmul.f32 %v2228, 1.442695
  %v2230 = vpow.pop %v2229
  %v2231 = vadd.f32 %v2230, 1.0
  %v2232 = vrcp.pop %v2231
  %v2233 = vmul.f32 1.0, %v2232
  %v2234 = vtanh.pop %v2227
  %v2235 = vmul.f32 %v2233, %v2234
  %s2236 = scalar_lea.vmem %s57, 32
  %v2237 = vld [vmem:[%s2236] sm:$0xff]
  %v2238 = vld [vmem:[%s2236 + $0x8] sm:$0xff]
  %s2239 = scalar_lea.vmem %s59, 32
  %v2240 = vld [vmem:[%s2239] sm:$0xff]
  %v2241 = vld [vmem:[%s2239 + $0x8] sm:$0xff]
  %2243 = vset.pattern.permute.xlu0 0
  %2244 = vperm.xlu0 %2243, %v2240
  %v2245 = vpop.permute.xlu0 %2244
  %2248 = vset.pattern.permute.xlu0 0
  %2249 = vperm.xlu0 %2248, %v2241
  %v2250 = vpop.permute.xlu0 %2249
  %v2253 = vsel %vm1097, %v2237, 0
  %v2256 = vsel %vm1097, %v2238, 0
  %2258 = vmatprep.subr.mxu0 0.0
  %2259 = vmatpush1.msra.mxu0 0.0
  %2260 = vmatprep.subr.mxu0 0.0
  %2261 = vmatpush1.msra.mxu0 0.0
  %2262 = vmatprep.subr.mxu0 0.0
  %2263 = vmatpush1.msra.mxu0 0.0
  %2264 = vmatprep.subr.mxu0 0.0
  %2265 = vmatpush1.msra.mxu0 0.0
  %2266 = vmatprep.subr.mxu0 0.0
  %2267 = vmatpush1.msra.mxu0 0.0
  %2268 = vmatprep.subr.mxu0 0.0
  %2269 = vmatpush1.msra.mxu0 0.0
  %2270 = vmatprep.subr.mxu0 0.0
  %2271 = vmatpush1.msra.mxu0 0.0
  %2272 = vmatprep.subr.mxu0 0.0
  %2273 = vmatpush1.msra.mxu0 0.0
  %2274 = vmatprep.subr.mxu0 0.0
  %2275 = vmatpush1.msra.mxu0 0.0
  %2276 = vmatprep.subr.mxu0 0.0
  %2277 = vmatpush1.msra.mxu0 0.0
  %2278 = vmatprep.subr.mxu0 0.0
  %2279 = vmatpush1.msra.mxu0 0.0
  %2280 = vmatprep.subr.mxu0 0.0
  %2281 = vmatpush1.msra.mxu0 0.0
  %2282 = vmatprep.subr.mxu0 0.0
  %2283 = vmatpush1.msra.mxu0 0.0
  %2284 = vmatprep.subr.mxu0 0.0
  %2285 = vmatpush1.msra.mxu0 0.0
  %2286 = vmatprep.subr.mxu0 0.0
  %2287 = vmatpush1.msra.mxu0 0.0
  %2288 = vmatprep.subr.mxu0 0.0
  %2289 = vmatpush1.msra.mxu0 %v2235
  %2290 = vmatprep.subr.mxu0 0.0
  %2291 = vmatpush2.msra.mxu0 0.0
  %2292 = vmatprep.subr.mxu0 0.0
  %2293 = vmatpush2.msra.mxu0 0.0
  %2294 = vmatprep.subr.mxu0 0.0
  %2295 = vmatpush2.msra.mxu0 0.0
  %2296 = vmatprep.subr.mxu0 0.0
  %2297 = vmatpush2.msra.mxu0 0.0
  %2298 = vmatprep.subr.mxu0 0.0
  %2299 = vmatpush2.msra.mxu0 0.0
  %2300 = vmatprep.subr.mxu0 0.0
  %2301 = vmatpush2.msra.mxu0 0.0
  %2302 = vmatprep.subr.mxu0 0.0
  %2303 = vmatpush2.msra.mxu0 0.0
  %2304 = vmatprep.subr.mxu0 0.0
  %2305 = vmatpush2.msra.mxu0 0.0
  %2306 = vmatprep.subr.mxu0 0.0
  %2307 = vmatpush2.msra.mxu0 0.0
  %2308 = vmatprep.subr.mxu0 0.0
  %2309 = vmatpush2.msra.mxu0 0.0
  %2310 = vmatprep.subr.mxu0 0.0
  %2311 = vmatpush2.msra.mxu0 0.0
  %2312 = vmatprep.subr.mxu0 0.0
  %2313 = vmatpush2.msra.mxu0 0.0
  %2314 = vmatprep.subr.mxu0 0.0
  %2315 = vmatpush2.msra.mxu0 0.0
  %2316 = vmatprep.subr.mxu0 0.0
  %2317 = vmatpush2.msra.mxu0 0.0
  %2318 = vmatprep.subr.mxu0 0.0
  %2319 = vmatpush2.msra.mxu0 0.0
  %2320 = vmatprep.subr.mxu0 0.0
  %2321 = vmatpush2.msra.mxu0 0.0
  %2322 = vmatprep.mubr.f32.mxu0 0.0
  %2323 = vmatmul.mubr.f32.gmra.mxu0 %v2253
  %v2324 = vpop.f32.mrf.mxu0
  %v2325 = vadd.f32 %v2245, %v2324
  %v2326 = vpop.f32.mrf.mxu0
  %2327 = vmatprep.mubr.f32.mxu0 0.0
  %2328 = vmatmul.mubr.f32.gmra.mxu0 %v2256
  %v2329 = vpop.f32.mrf.mxu0
  %v2330 = vadd.f32 %v2250, %v2329
  %v2331 = vpop.f32.mrf.mxu0
  %2332 = vdwg.mxu0
  %v2333 = vadd.f32 %v1908, %v2325
  %v2334 = vmul.f32 %v2333, 0.70710677
  %v2335 = vadd.f32 %v1909, %v2330
  %2337 = vset.pattern.permute.xlu0 0
  %2338 = vperm.xlu0 %2337, %v379
  %v2339 = vpop.permute.xlu0 %2338
  %v2341 = vadd.f32 %v2334, %v2339
  %2343 = vrot.lane.b32.xlu0 %v2341, 2
  %v2344 = vpop.permute.xlu0 %2343
  %v2346 = vsel %vm1479, 0.0, %v2344
  %v2347 = vsel %vm1486, %v2346, 0.0
  %2348 = vrot.lane.b32.xlu0 %v2341, 126
  %v2349 = vpop.permute.xlu0 %2348
  %v2351 = vsel %vm1492, %v2349, 0.0
  %v2352 = vsel %vm1499, %v2351, 0.0
  %s2353 = scalar_lea.vmem %s49, 48
  %v2354 = vld [vmem:[%s2353] sm:$0xff]
  %v2355 = vld [vmem:[%s2353 + $0x8] sm:$0xff]
  %2357 = vset.pattern.permute.xlu0 0
  %2358 = vperm.xlu0 %2357, %v2354
  %v2359 = vpop.permute.xlu0 %2358
  %2362 = vset.pattern.permute.xlu0 0
  %2363 = vperm.xlu0 %2362, %v2355
  %v2364 = vpop.permute.xlu0 %2363
  %v2366 = vmul.f32 %v2359, %v1075
  %v2367 = vmul.f32 %v2364, %v1075
  %s2368 = scalar_lea.vmem %s51, 48
  %v2369 = vld [vmem:[%s2368] sm:$0xff]
  %v2370 = vld [vmem:[%s2368 + $0x8] sm:$0xff]
  %2372 = vset.pattern.permute.xlu0 0
  %2373 = vperm.xlu0 %2372, %v2369
  %v2374 = vpop.permute.xlu0 %2373
  %2377 = vset.pattern.permute.xlu0 0
  %2378 = vperm.xlu0 %2377, %v2370
  %v2379 = vpop.permute.xlu0 %2378
  %v2381 = vadd.f32 %v2366, %v2374
  %v2382 = vadd.f32 %v2367, %v2379
  %s2383 = scalar_lea.vmem %s53, 144
  %v2384 = vld [vmem:[%s2383] sm:$0xff]
  %v2385 = vld [vmem:[%s2383 + $0x8] sm:$0xff]
  %s2386 = scalar_lea.vmem %s53, 160
  %v2387 = vld [vmem:[%s2386] sm:$0xff]
  %v2388 = vld [vmem:[%s2386 + $0x8] sm:$0xff]
  %v2390 = vsel %vm1097, %v2387, 0
  %v2393 = vsel %vm1097, %v2388, 0
  %2395 = vmatprep.subr.mxu0 0.0
  %2396 = vmatpush1.msra.mxu0 0.0
  %2397 = vmatprep.subr.mxu0 0.0
  %2398 = vmatpush1.msra.mxu0 0.0
  %2399 = vmatprep.subr.mxu0 0.0
  %2400 = vmatpush1.msra.mxu0 0.0
  %2401 = vmatprep.subr.mxu0 0.0
  %2402 = vmatpush1.msra.mxu0 0.0
  %2403 = vmatprep.subr.mxu0 0.0
  %2404 = vmatpush1.msra.mxu0 0.0
  %2405 = vmatprep.subr.mxu0 0.0
  %2406 = vmatpush1.msra.mxu0 0.0
  %2407 = vmatprep.subr.mxu0 0.0
  %2408 = vmatpush1.msra.mxu0 0.0
  %2409 = vmatprep.subr.mxu0 0.0
  %2410 = vmatpush1.msra.mxu0 0.0
  %2411 = vmatprep.subr.mxu0 0.0
  %2412 = vmatpush1.msra.mxu0 0.0
  %2413 = vmatprep.subr.mxu0 0.0
  %2414 = vmatpush1.msra.mxu0 0.0
  %2415 = vmatprep.subr.mxu0 0.0
  %2416 = vmatpush1.msra.mxu0 0.0
  %2417 = vmatprep.subr.mxu0 0.0
  %2418 = vmatpush1.msra.mxu0 0.0
  %2419 = vmatprep.subr.mxu0 0.0
  %2420 = vmatpush1.msra.mxu0 0.0
  %2421 = vmatprep.subr.mxu0 0.0
  %2422 = vmatpush1.msra.mxu0 0.0
  %2423 = vmatprep.subr.mxu0 0.0
  %2424 = vmatpush1.msra.mxu0 0.0
  %2425 = vmatprep.subr.mxu0 0.0
  %2426 = vmatpush1.msra.mxu0 %v2341
  %2427 = vmatprep.subr.mxu0 0.0
  %2428 = vmatpush2.msra.mxu0 0.0
  %2429 = vmatprep.subr.mxu0 0.0
  %2430 = vmatpush2.msra.mxu0 0.0
  %2431 = vmatprep.subr.mxu0 0.0
  %2432 = vmatpush2.msra.mxu0 0.0
  %2433 = vmatprep.subr.mxu0 0.0
  %2434 = vmatpush2.msra.mxu0 0.0
  %2435 = vmatprep.subr.mxu0 0.0
  %2436 = vmatpush2.msra.mxu0 0.0
  %2437 = vmatprep.subr.mxu0 0.0
  %2438 = vmatpush2.msra.mxu0 0.0
  %2439 = vmatprep.subr.mxu0 0.0
  %2440 = vmatpush2.msra.mxu0 0.0
  %2441 = vmatprep.subr.mxu0 0.0
  %2442 = vmatpush2.msra.mxu0 0.0
  %2443 = vmatprep.subr.mxu0 0.0
  %2444 = vmatpush2.msra.mxu0 0.0
  %2445 = vmatprep.subr.mxu0 0.0
  %2446 = vmatpush2.msra.mxu0 0.0
  %2447 = vmatprep.subr.mxu0 0.0
  %2448 = vmatpush2.msra.mxu0 0.0
  %2449 = vmatprep.subr.mxu0 0.0
  %2450 = vmatpush2.msra.mxu0 0.0
  %2451 = vmatprep.subr.mxu0 0.0
  %2452 = vmatpush2.msra.mxu0 0.0
  %2453 = vmatprep.subr.mxu0 0.0
  %2454 = vmatpush2.msra.mxu0 0.0
  %2455 = vmatprep.subr.mxu0 0.0
  %2456 = vmatpush2.msra.mxu0 0.0
  %2457 = vmatprep.subr.mxu0 0.0
  %2458 = vmatpush2.msra.mxu0 0.0
  %2459 = vmatprep.mubr.f32.mxu0 0.0
  %2460 = vmatmul.mubr.f32.gmra.mxu0 %v2390
  %v2461 = vpop.f32.mrf.mxu0
  %v2462 = vadd.f32 0.0, %v2461
  %v2463 = vpop.f32.mrf.mxu0
  %2464 = vmatprep.mubr.f32.mxu0 0.0
  %2465 = vmatmul.mubr.f32.gmra.mxu0 %v2393
  %v2466 = vpop.f32.mrf.mxu0
  %v2467 = vadd.f32 0.0, %v2466
  %v2468 = vpop.f32.mrf.mxu0
  %2469 = vdwg.mxu0
  %v2471 = vsel %vm1097, %v2384, 0
  %v2474 = vsel %vm1097, %v2385, 0
  %2476 = vmatprep.subr.mxu0 0.0
  %2477 = vmatpush1.msra.mxu0 0.0
  %2478 = vmatprep.subr.mxu0 0.0
  %2479 = vmatpush1.msra.mxu0 0.0
  %2480 = vmatprep.subr.mxu0 0.0
  %2481 = vmatpush1.msra.mxu0 0.0
  %2482 = vmatprep.subr.mxu0 0.0
  %2483 = vmatpush1.msra.mxu0 0.0
  %2484 = vmatprep.subr.mxu0 0.0
  %2485 = vmatpush1.msra.mxu0 0.0
  %2486 = vmatprep.subr.mxu0 0.0
  %2487 = vmatpush1.msra.mxu0 0.0
  %2488 = vmatprep.subr.mxu0 0.0
  %2489 = vmatpush1.msra.mxu0 0.0
  %2490 = vmatprep.subr.mxu0 0.0
  %2491 = vmatpush1.msra.mxu0 0.0
  %2492 = vmatprep.subr.mxu0 0.0
  %2493 = vmatpush1.msra.mxu0 0.0
  %2494 = vmatprep.subr.mxu0 0.0
  %2495 = vmatpush1.msra.mxu0 0.0
  %2496 = vmatprep.subr.mxu0 0.0
  %2497 = vmatpush1.msra.mxu0 0.0
  %2498 = vmatprep.subr.mxu0 0.0
  %2499 = vmatpush1.msra.mxu0 0.0
  %2500 = vmatprep.subr.mxu0 0.0
  %2501 = vmatpush1.msra.mxu0 0.0
  %2502 = vmatprep.subr.mxu0 0.0
  %2503 = vmatpush1.msra.mxu0 0.0
  %2504 = vmatprep.subr.mxu0 0.0
  %2505 = vmatpush1.msra.mxu0 0.0
  %2506 = vmatprep.subr.mxu0 0.0
  %2507 = vmatpush1.msra.mxu0 %v2347
  %2508 = vmatprep.subr.mxu0 0.0
  %2509 = vmatpush2.msra.mxu0 0.0
  %2510 = vmatprep.subr.mxu0 0.0
  %2511 = vmatpush2.msra.mxu0 0.0
  %2512 = vmatprep.subr.mxu0 0.0
  %2513 = vmatpush2.msra.mxu0 0.0
  %2514 = vmatprep.subr.mxu0 0.0
  %2515 = vmatpush2.msra.mxu0 0.0
  %2516 = vmatprep.subr.mxu0 0.0
  %2517 = vmatpush2.msra.mxu0 0.0
  %2518 = vmatprep.subr.mxu0 0.0
  %2519 = vmatpush2.msra.mxu0 0.0
  %2520 = vmatprep.subr.mxu0 0.0
  %2521 = vmatpush2.msra.mxu0 0.0
  %2522 = vmatprep.subr.mxu0 0.0
  %2523 = vmatpush2.msra.mxu0 0.0
  %2524 = vmatprep.subr.mxu0 0.0
  %2525 = vmatpush2.msra.mxu0 0.0
  %2526 = vmatprep.subr.mxu0 0.0
  %2527 = vmatpush2.msra.mxu0 0.0
  %2528 = vmatprep.subr.mxu0 0.0
  %2529 = vmatpush2.msra.mxu0 0.0
  %2530 = vmatprep.subr.mxu0 0.0
  %2531 = vmatpush2.msra.mxu0 0.0
  %2532 = vmatprep.subr.mxu0 0.0
  %2533 = vmatpush2.msra.mxu0 0.0
  %2534 = vmatprep.subr.mxu0 0.0
  %2535 = vmatpush2.msra.mxu0 0.0
  %2536 = vmatprep.subr.mxu0 0.0
  %2537 = vmatpush2.msra.mxu0 0.0
  %2538 = vmatprep.subr.mxu0 0.0
  %2539 = vmatpush2.msra.mxu0 0.0
  %2540 = vmatprep.mubr.f32.mxu0 0.0
  %2541 = vmatmul.mubr.f32.gmra.mxu0 %v2471
  %v2542 = vpop.f32.mrf.mxu0
  %v2543 = vadd.f32 %v2462, %v2542
  %v2544 = vpop.f32.mrf.mxu0
  %2545 = vmatprep.mubr.f32.mxu0 0.0
  %2546 = vmatmul.mubr.f32.gmra.mxu0 %v2474
  %v2547 = vpop.f32.mrf.mxu0
  %v2548 = vadd.f32 %v2467, %v2547
  %v2549 = vpop.f32.mrf.mxu0
  %2550 = vdwg.mxu0
  %s2551 = scalar_lea.vmem %s53, 176
  %v2552 = vld [vmem:[%s2551] sm:$0xff]
  %v2553 = vld [vmem:[%s2551 + $0x8] sm:$0xff]
  %v2555 = vsel %vm1097, %v2552, 0
  %v2558 = vsel %vm1097, %v2553, 0
  %2560 = vmatprep.subr.mxu0 0.0
  %2561 = vmatpush1.msra.mxu0 0.0
  %2562 = vmatprep.subr.mxu0 0.0
  %2563 = vmatpush1.msra.mxu0 0.0
  %2564 = vmatprep.subr.mxu0 0.0
  %2565 = vmatpush1.msra.mxu0 0.0
  %2566 = vmatprep.subr.mxu0 0.0
  %2567 = vmatpush1.msra.mxu0 0.0
  %2568 = vmatprep.subr.mxu0 0.0
  %2569 = vmatpush1.msra.mxu0 0.0
  %2570 = vmatprep.subr.mxu0 0.0
  %2571 = vmatpush1.msra.mxu0 0.0
  %2572 = vmatprep.subr.mxu0 0.0
  %2573 = vmatpush1.msra.mxu0 0.0
  %2574 = vmatprep.subr.mxu0 0.0
  %2575 = vmatpush1.msra.mxu0 0.0
  %2576 = vmatprep.subr.mxu0 0.0
  %2577 = vmatpush1.msra.mxu0 0.0
  %2578 = vmatprep.subr.mxu0 0.0
  %2579 = vmatpush1.msra.mxu0 0.0
  %2580 = vmatprep.subr.mxu0 0.0
  %2581 = vmatpush1.msra.mxu0 0.0
  %2582 = vmatprep.subr.mxu0 0.0
  %2583 = vmatpush1.msra.mxu0 0.0
  %2584 = vmatprep.subr.mxu0 0.0
  %2585 = vmatpush1.msra.mxu0 0.0
  %2586 = vmatprep.subr.mxu0 0.0
  %2587 = vmatpush1.msra.mxu0 0.0
  %2588 = vmatprep.subr.mxu0 0.0
  %2589 = vmatpush1.msra.mxu0 0.0
  %2590 = vmatprep.subr.mxu0 0.0
  %2591 = vmatpush1.msra.mxu0 %v2352
  %2592 = vmatprep.subr.mxu0 0.0
  %2593 = vmatpush2.msra.mxu0 0.0
  %2594 = vmatprep.subr.mxu0 0.0
  %2595 = vmatpush2.msra.mxu0 0.0
  %2596 = vmatprep.subr.mxu0 0.0
  %2597 = vmatpush2.msra.mxu0 0.0
  %2598 = vmatprep.subr.mxu0 0.0
  %2599 = vmatpush2.msra.mxu0 0.0
  %2600 = vmatprep.subr.mxu0 0.0
  %2601 = vmatpush2.msra.mxu0 0.0
  %2602 = vmatprep.subr.mxu0 0.0
  %2603 = vmatpush2.msra.mxu0 0.0
  %2604 = vmatprep.subr.mxu0 0.0
  %2605 = vmatpush2.msra.mxu0 0.0
  %2606 = vmatprep.subr.mxu0 0.0
  %2607 = vmatpush2.msra.mxu0 0.0
  %2608 = vmatprep.subr.mxu0 0.0
  %2609 = vmatpush2.msra.mxu0 0.0
  %2610 = vmatprep.subr.mxu0 0.0
  %2611 = vmatpush2.msra.mxu0 0.0
  %2612 = vmatprep.subr.mxu0 0.0
  %2613 = vmatpush2.msra.mxu0 0.0
  %2614 = vmatprep.subr.mxu0 0.0
  %2615 = vmatpush2.msra.mxu0 0.0
  %2616 = vmatprep.subr.mxu0 0.0
  %2617 = vmatpush2.msra.mxu0 0.0
  %2618 = vmatprep.subr.mxu0 0.0
  %2619 = vmatpush2.msra.mxu0 0.0
  %2620 = vmatprep.subr.mxu0 0.0
  %2621 = vmatpush2.msra.mxu0 0.0
  %2622 = vmatprep.subr.mxu0 0.0
  %2623 = vmatpush2.msra.mxu0 0.0
  %2624 = vmatprep.mubr.f32.mxu0 0.0
  %2625 = vmatmul.mubr.f32.gmra.mxu0 %v2555
  %v2626 = vpop.f32.mrf.mxu0
  %v2627 = vadd.f32 0.0, %v2626
  %v2628 = vpop.f32.mrf.mxu0
  %2629 = vmatprep.mubr.f32.mxu0 0.0
  %2630 = vmatmul.mubr.f32.gmra.mxu0 %v2558
  %v2631 = vpop.f32.mrf.mxu0
  %v2632 = vadd.f32 0.0, %v2631
  %v2633 = vpop.f32.mrf.mxu0
  %2634 = vdwg.mxu0
  %v2635 = vadd.f32 %v2543, %v2627
  %v2636 = vadd.f32 %v2548, %v2632
  %s2637 = scalar_lea.vmem %s55, 48
  %v2638 = vld [vmem:[%s2637] sm:$0xff]
  %v2639 = vld [vmem:[%s2637 + $0x8] sm:$0xff]
  %2641 = vset.pattern.permute.xlu0 0
  %2642 = vperm.xlu0 %2641, %v2638
  %v2643 = vpop.permute.xlu0 %2642
  %2646 = vset.pattern.permute.xlu0 0
  %2647 = vperm.xlu0 %2646, %v2639
  %v2648 = vpop.permute.xlu0 %2647
  %v2650 = vadd.f32 %v2635, %v2643
  %v2651 = vadd.f32 %v2636, %v2648
  %v2652 = vadd.f32 %v2650, %v2381
  %v2653 = vadd.f32 %v2651, %v2382
  %v2654 = vxor.u32 %v2652, 2147483648
  %v2655 = vmul.f32 %v2654, 1.442695
  %v2656 = vpow.pop %v2655
  %v2657 = vadd.f32 %v2656, 1.0
  %v2658 = vrcp.pop %v2657
  %v2659 = vmul.f32 1.0, %v2658
  %v2660 = vtanh.pop %v2653
  %v2661 = vmul.f32 %v2659, %v2660
  %s2662 = scalar_lea.vmem %s57, 48
  %v2663 = vld [vmem:[%s2662] sm:$0xff]
  %v2664 = vld [vmem:[%s2662 + $0x8] sm:$0xff]
  %s2665 = scalar_lea.vmem %s59, 48
  %v2666 = vld [vmem:[%s2665] sm:$0xff]
  %v2667 = vld [vmem:[%s2665 + $0x8] sm:$0xff]
  %2669 = vset.pattern.permute.xlu0 0
  %2670 = vperm.xlu0 %2669, %v2666
  %v2671 = vpop.permute.xlu0 %2670
  %2674 = vset.pattern.permute.xlu0 0
  %2675 = vperm.xlu0 %2674, %v2667
  %v2676 = vpop.permute.xlu0 %2675
  %v2679 = vsel %vm1097, %v2663, 0
  %v2682 = vsel %vm1097, %v2664, 0
  %2684 = vmatprep.subr.mxu0 0.0
  %2685 = vmatpush1.msra.mxu0 0.0
  %2686 = vmatprep.subr.mxu0 0.0
  %2687 = vmatpush1.msra.mxu0 0.0
  %2688 = vmatprep.subr.mxu0 0.0
  %2689 = vmatpush1.msra.mxu0 0.0
  %2690 = vmatprep.subr.mxu0 0.0
  %2691 = vmatpush1.msra.mxu0 0.0
  %2692 = vmatprep.subr.mxu0 0.0
  %2693 = vmatpush1.msra.mxu0 0.0
  %2694 = vmatprep.subr.mxu0 0.0
  %2695 = vmatpush1.msra.mxu0 0.0
  %2696 = vmatprep.subr.mxu0 0.0
  %2697 = vmatpush1.msra.mxu0 0.0
  %2698 = vmatprep.subr.mxu0 0.0
  %2699 = vmatpush1.msra.mxu0 0.0
  %2700 = vmatprep.subr.mxu0 0.0
  %2701 = vmatpush1.msra.mxu0 0.0
  %2702 = vmatprep.subr.mxu0 0.0
  %2703 = vmatpush1.msra.mxu0 0.0
  %2704 = vmatprep.subr.mxu0 0.0
  %2705 = vmatpush1.msra.mxu0 0.0
  %2706 = vmatprep.subr.mxu0 0.0
  %2707 = vmatpush1.msra.mxu0 0.0
  %2708 = vmatprep.subr.mxu0 0.0
  %2709 = vmatpush1.msra.mxu0 0.0
  %2710 = vmatprep.subr.mxu0 0.0
  %2711 = vmatpush1.msra.mxu0 0.0
  %2712 = vmatprep.subr.mxu0 0.0
  %2713 = vmatpush1.msra.mxu0 0.0
  %2714 = vmatprep.subr.mxu0 0.0
  %2715 = vmatpush1.msra.mxu0 %v2661
  %2716 = vmatprep.subr.mxu0 0.0
  %2717 = vmatpush2.msra.mxu0 0.0
  %2718 = vmatprep.subr.mxu0 0.0
  %2719 = vmatpush2.msra.mxu0 0.0
  %2720 = vmatprep.subr.mxu0 0.0
  %2721 = vmatpush2.msra.mxu0 0.0
  %2722 = vmatprep.subr.mxu0 0.0
  %2723 = vmatpush2.msra.mxu0 0.0
  %2724 = vmatprep.subr.mxu0 0.0
  %2725 = vmatpush2.msra.mxu0 0.0
  %2726 = vmatprep.subr.mxu0 0.0
  %2727 = vmatpush2.msra.mxu0 0.0
  %2728 = vmatprep.subr.mxu0 0.0
  %2729 = vmatpush2.msra.mxu0 0.0
  %2730 = vmatprep.subr.mxu0 0.0
  %2731 = vmatpush2.msra.mxu0 0.0
  %2732 = vmatprep.subr.mxu0 0.0
  %2733 = vmatpush2.msra.mxu0 0.0
  %2734 = vmatprep.subr.mxu0 0.0
  %2735 = vmatpush2.msra.mxu0 0.0
  %2736 = vmatprep.subr.mxu0 0.0
  %2737 = vmatpush2.msra.mxu0 0.0
  %2738 = vmatprep.subr.mxu0 0.0
  %2739 = vmatpush2.msra.mxu0 0.0
  %2740 = vmatprep.subr.mxu0 0.0
  %2741 = vmatpush2.msra.mxu0 0.0
  %2742 = vmatprep.subr.mxu0 0.0
  %2743 = vmatpush2.msra.mxu0 0.0
  %2744 = vmatprep.subr.mxu0 0.0
  %2745 = vmatpush2.msra.mxu0 0.0
  %2746 = vmatprep.subr.mxu0 0.0
  %2747 = vmatpush2.msra.mxu0 0.0
  %2748 = vmatprep.mubr.f32.mxu0 0.0
  %2749 = vmatmul.mubr.f32.gmra.mxu0 %v2679
  %v2750 = vpop.f32.mrf.mxu0
  %v2751 = vadd.f32 %v2671, %v2750
  %v2752 = vpop.f32.mrf.mxu0
  %2753 = vmatprep.mubr.f32.mxu0 0.0
  %2754 = vmatmul.mubr.f32.gmra.mxu0 %v2682
  %v2755 = vpop.f32.mrf.mxu0
  %v2756 = vadd.f32 %v2676, %v2755
  %v2757 = vpop.f32.mrf.mxu0
  %2758 = vdwg.mxu0
  %v2759 = vadd.f32 %v2334, %v2751
  %v2760 = vmul.f32 %v2759, 0.70710677
  %v2761 = vadd.f32 %v2335, %v2756
  %2763 = vset.pattern.permute.xlu0 0
  %2764 = vperm.xlu0 %2763, %v380
  %v2765 = vpop.permute.xlu0 %2764
  %v2767 = vadd.f32 %v2760, %v2765
  %2769 = vrot.lane.b32.xlu0 %v2767, 1
  %v2770 = vpop.permute.xlu0 %2769
  %v2772 = vsel %vm1038, 0.0, %v2770
  %v2773 = vsel %vm1045, %v2772, 0.0
  %2774 = vrot.lane.b32.xlu0 %v2767, 127
  %v2775 = vpop.permute.xlu0 %2774
  %v2777 = vsel %vm1051, %v2775, 0.0
  %v2778 = vsel %vm1058, %v2777, 0.0
  %s2779 = scalar_lea.vmem %s49, 64
  %v2780 = vld [vmem:[%s2779] sm:$0xff]
  %v2781 = vld [vmem:[%s2779 + $0x8] sm:$0xff]
  %2783 = vset.pattern.permute.xlu0 0
  %2784 = vperm.xlu0 %2783, %v2780
  %v2785 = vpop.permute.xlu0 %2784
  %2788 = vset.pattern.permute.xlu0 0
  %2789 = vperm.xlu0 %2788, %v2781
  %v2790 = vpop.permute.xlu0 %2789
  %v2792 = vmul.f32 %v2785, %v1075
  %v2793 = vmul.f32 %v2790, %v1075
  %s2794 = scalar_lea.vmem %s51, 64
  %v2795 = vld [vmem:[%s2794] sm:$0xff]
  %v2796 = vld [vmem:[%s2794 + $0x8] sm:$0xff]
  %2798 = vset.pattern.permute.xlu0 0
  %2799 = vperm.xlu0 %2798, %v2795
  %v2800 = vpop.permute.xlu0 %2799
  %2803 = vset.pattern.permute.xlu0 0
  %2804 = vperm.xlu0 %2803, %v2796
  %v2805 = vpop.permute.xlu0 %2804
  %v2807 = vadd.f32 %v2792, %v2800
  %v2808 = vadd.f32 %v2793, %v2805
  %s2809 = scalar_lea.vmem %s53, 192
  %v2810 = vld [vmem:[%s2809] sm:$0xff]
  %v2811 = vld [vmem:[%s2809 + $0x8] sm:$0xff]
  %s2812 = scalar_lea.vmem %s53, 208
  %v2813 = vld [vmem:[%s2812] sm:$0xff]
  %v2814 = vld [vmem:[%s2812 + $0x8] sm:$0xff]
  %v2816 = vsel %vm1097, %v2813, 0
  %v2819 = vsel %vm1097, %v2814, 0
  %2821 = vmatprep.subr.mxu0 0.0
  %2822 = vmatpush1.msra.mxu0 0.0
  %2823 = vmatprep.subr.mxu0 0.0
  %2824 = vmatpush1.msra.mxu0 0.0
  %2825 = vmatprep.subr.mxu0 0.0
  %2826 = vmatpush1.msra.mxu0 0.0
  %2827 = vmatprep.subr.mxu0 0.0
  %2828 = vmatpush1.msra.mxu0 0.0
  %2829 = vmatprep.subr.mxu0 0.0
  %2830 = vmatpush1.msra.mxu0 0.0
  %2831 = vmatprep.subr.mxu0 0.0
  %2832 = vmatpush1.msra.mxu0 0.0
  %2833 = vmatprep.subr.mxu0 0.0
  %2834 = vmatpush1.msra.mxu0 0.0
  %2835 = vmatprep.subr.mxu0 0.0
  %2836 = vmatpush1.msra.mxu0 0.0
  %2837 = vmatprep.subr.mxu0 0.0
  %2838 = vmatpush1.msra.mxu0 0.0
  %2839 = vmatprep.subr.mxu0 0.0
  %2840 = vmatpush1.msra.mxu0 0.0
  %2841 = vmatprep.subr.mxu0 0.0
  %2842 = vmatpush1.msra.mxu0 0.0
  %2843 = vmatprep.subr.mxu0 0.0
  %2844 = vmatpush1.msra.mxu0 0.0
  %2845 = vmatprep.subr.mxu0 0.0
  %2846 = vmatpush1.msra.mxu0 0.0
  %2847 = vmatprep.subr.mxu0 0.0
  %2848 = vmatpush1.msra.mxu0 0.0
  %2849 = vmatprep.subr.mxu0 0.0
  %2850 = vmatpush1.msra.mxu0 0.0
  %2851 = vmatprep.subr.mxu0 0.0
  %2852 = vmatpush1.msra.mxu0 %v2767
  %2853 = vmatprep.subr.mxu0 0.0
  %2854 = vmatpush2.msra.mxu0 0.0
  %2855 = vmatprep.subr.mxu0 0.0
  %2856 = vmatpush2.msra.mxu0 0.0
  %2857 = vmatprep.subr.mxu0 0.0
  %2858 = vmatpush2.msra.mxu0 0.0
  %2859 = vmatprep.subr.mxu0 0.0
  %2860 = vmatpush2.msra.mxu0 0.0
  %2861 = vmatprep.subr.mxu0 0.0
  %2862 = vmatpush2.msra.mxu0 0.0
  %2863 = vmatprep.subr.mxu0 0.0
  %2864 = vmatpush2.msra.mxu0 0.0
  %2865 = vmatprep.subr.mxu0 0.0
  %2866 = vmatpush2.msra.mxu0 0.0
  %2867 = vmatprep.subr.mxu0 0.0
  %2868 = vmatpush2.msra.mxu0 0.0
  %2869 = vmatprep.subr.mxu0 0.0
  %2870 = vmatpush2.msra.mxu0 0.0
  %2871 = vmatprep.subr.mxu0 0.0
  %2872 = vmatpush2.msra.mxu0 0.0
  %2873 = vmatprep.subr.mxu0 0.0
  %2874 = vmatpush2.msra.mxu0 0.0
  %2875 = vmatprep.subr.mxu0 0.0
  %2876 = vmatpush2.msra.mxu0 0.0
  %2877 = vmatprep.subr.mxu0 0.0
  %2878 = vmatpush2.msra.mxu0 0.0
  %2879 = vmatprep.subr.mxu0 0.0
  %2880 = vmatpush2.msra.mxu0 0.0
  %2881 = vmatprep.subr.mxu0 0.0
  %2882 = vmatpush2.msra.mxu0 0.0
  %2883 = vmatprep.subr.mxu0 0.0
  %2884 = vmatpush2.msra.mxu0 0.0
  %2885 = vmatprep.mubr.f32.mxu0 0.0
  %2886 = vmatmul.mubr.f32.gmra.mxu0 %v2816
  %v2887 = vpop.f32.mrf.mxu0
  %v2888 = vadd.f32 0.0, %v2887
  %v2889 = vpop.f32.mrf.mxu0
  %2890 = vmatprep.mubr.f32.mxu0 0.0
  %2891 = vmatmul.mubr.f32.gmra.mxu0 %v2819
  %v2892 = vpop.f32.mrf.mxu0
  %v2893 = vadd.f32 0.0, %v2892
  %v2894 = vpop.f32.mrf.mxu0
  %2895 = vdwg.mxu0
  %v2897 = vsel %vm1097, %v2810, 0
  %v2900 = vsel %vm1097, %v2811, 0
  %2902 = vmatprep.subr.mxu0 0.0
  %2903 = vmatpush1.msra.mxu0 0.0
  %2904 = vmatprep.subr.mxu0 0.0
  %2905 = vmatpush1.msra.mxu0 0.0
  %2906 = vmatprep.subr.mxu0 0.0
  %2907 = vmatpush1.msra.mxu0 0.0
  %2908 = vmatprep.subr.mxu0 0.0
  %2909 = vmatpush1.msra.mxu0 0.0
  %2910 = vmatprep.subr.mxu0 0.0
  %2911 = vmatpush1.msra.mxu0 0.0
  %2912 = vmatprep.subr.mxu0 0.0
  %2913 = vmatpush1.msra.mxu0 0.0
  %2914 = vmatprep.subr.mxu0 0.0
  %2915 = vmatpush1.msra.mxu0 0.0
  %2916 = vmatprep.subr.mxu0 0.0
  %2917 = vmatpush1.msra.mxu0 0.0
  %2918 = vmatprep.subr.mxu0 0.0
  %2919 = vmatpush1.msra.mxu0 0.0
  %2920 = vmatprep.subr.mxu0 0.0
  %2921 = vmatpush1.msra.mxu0 0.0
  %2922 = vmatprep.subr.mxu0 0.0
  %2923 = vmatpush1.msra.mxu0 0.0
  %2924 = vmatprep.subr.mxu0 0.0
  %2925 = vmatpush1.msra.mxu0 0.0
  %2926 = vmatprep.subr.mxu0 0.0
  %2927 = vmatpush1.msra.mxu0 0.0
  %2928 = vmatprep.subr.mxu0 0.0
  %2929 = vmatpush1.msra.mxu0 0.0
  %2930 = vmatprep.subr.mxu0 0.0
  %2931 = vmatpush1.msra.mxu0 0.0
  %2932 = vmatprep.subr.mxu0 0.0
  %2933 = vmatpush1.msra.mxu0 %v2773
  %2934 = vmatprep.subr.mxu0 0.0
  %2935 = vmatpush2.msra.mxu0 0.0
  %2936 = vmatprep.subr.mxu0 0.0
  %2937 = vmatpush2.msra.mxu0 0.0
  %2938 = vmatprep.subr.mxu0 0.0
  %2939 = vmatpush2.msra.mxu0 0.0
  %2940 = vmatprep.subr.mxu0 0.0
  %2941 = vmatpush2.msra.mxu0 0.0
  %2942 = vmatprep.subr.mxu0 0.0
  %2943 = vmatpush2.msra.mxu0 0.0
  %2944 = vmatprep.subr.mxu0 0.0
  %2945 = vmatpush2.msra.mxu0 0.0
  %2946 = vmatprep.subr.mxu0 0.0
  %2947 = vmatpush2.msra.mxu0 0.0
  %2948 = vmatprep.subr.mxu0 0.0
  %2949 = vmatpush2.msra.mxu0 0.0
  %2950 = vmatprep.subr.mxu0 0.0
  %2951 = vmatpush2.msra.mxu0 0.0
  %2952 = vmatprep.subr.mxu0 0.0
  %2953 = vmatpush2.msra.mxu0 0.0
  %2954 = vmatprep.subr.mxu0 0.0
  %2955 = vmatpush2.msra.mxu0 0.0
  %2956 = vmatprep.subr.mxu0 0.0
  %2957 = vmatpush2.msra.mxu0 0.0
  %2958 = vmatprep.subr.mxu0 0.0
  %2959 = vmatpush2.msra.mxu0 0.0
  %2960 = vmatprep.subr.mxu0 0.0
  %2961 = vmatpush2.msra.mxu0 0.0
  %2962 = vmatprep.subr.mxu0 0.0
  %2963 = vmatpush2.msra.mxu0 0.0
  %2964 = vmatprep.subr.mxu0 0.0
  %2965 = vmatpush2.msra.mxu0 0.0
  %2966 = vmatprep.mubr.f32.mxu0 0.0
  %2967 = vmatmul.mubr.f32.gmra.mxu0 %v2897
  %v2968 = vpop.f32.mrf.mxu0
  %v2969 = vadd.f32 %v2888, %v2968
  %v2970 = vpop.f32.mrf.mxu0
  %2971 = vmatprep.mubr.f32.mxu0 0.0
  %2972 = vmatmul.mubr.f32.gmra.mxu0 %v2900
  %v2973 = vpop.f32.mrf.mxu0
  %v2974 = vadd.f32 %v2893, %v2973
  %v2975 = vpop.f32.mrf.mxu0
  %2976 = vdwg.mxu0
  %s2977 = scalar_lea.vmem %s53, 224
  %v2978 = vld [vmem:[%s2977] sm:$0xff]
  %v2979 = vld [vmem:[%s2977 + $0x8] sm:$0xff]
  %v2981 = vsel %vm1097, %v2978, 0
  %v2984 = vsel %vm1097, %v2979, 0
  %2986 = vmatprep.subr.mxu0 0.0
  %2987 = vmatpush1.msra.mxu0 0.0
  %2988 = vmatprep.subr.mxu0 0.0
  %2989 = vmatpush1.msra.mxu0 0.0
  %2990 = vmatprep.subr.mxu0 0.0
  %2991 = vmatpush1.msra.mxu0 0.0
  %2992 = vmatprep.subr.mxu0 0.0
  %2993 = vmatpush1.msra.mxu0 0.0
  %2994 = vmatprep.subr.mxu0 0.0
  %2995 = vmatpush1.msra.mxu0 0.0
  %2996 = vmatprep.subr.mxu0 0.0
  %2997 = vmatpush1.msra.mxu0 0.0
  %2998 = vmatprep.subr.mxu0 0.0
  %2999 = vmatpush1.msra.mxu0 0.0
  %3000 = vmatprep.subr.mxu0 0.0
  %3001 = vmatpush1.msra.mxu0 0.0
  %3002 = vmatprep.subr.mxu0 0.0
  %3003 = vmatpush1.msra.mxu0 0.0
  %3004 = vmatprep.subr.mxu0 0.0
  %3005 = vmatpush1.msra.mxu0 0.0
  %3006 = vmatprep.subr.mxu0 0.0
  %3007 = vmatpush1.msra.mxu0 0.0
  %3008 = vmatprep.subr.mxu0 0.0
  %3009 = vmatpush1.msra.mxu0 0.0
  %3010 = vmatprep.subr.mxu0 0.0
  %3011 = vmatpush1.msra.mxu0 0.0
  %3012 = vmatprep.subr.mxu0 0.0
  %3013 = vmatpush1.msra.mxu0 0.0
  %3014 = vmatprep.subr.mxu0 0.0
  %3015 = vmatpush1.msra.mxu0 0.0
  %3016 = vmatprep.subr.mxu0 0.0
  %3017 = vmatpush1.msra.mxu0 %v2778
  %3018 = vmatprep.subr.mxu0 0.0
  %3019 = vmatpush2.msra.mxu0 0.0
  %3020 = vmatprep.subr.mxu0 0.0
  %3021 = vmatpush2.msra.mxu0 0.0
  %3022 = vmatprep.subr.mxu0 0.0
  %3023 = vmatpush2.msra.mxu0 0.0
  %3024 = vmatprep.subr.mxu0 0.0
  %3025 = vmatpush2.msra.mxu0 0.0
  %3026 = vmatprep.subr.mxu0 0.0
  %3027 = vmatpush2.msra.mxu0 0.0
  %3028 = vmatprep.subr.mxu0 0.0
  %3029 = vmatpush2.msra.mxu0 0.0
  %3030 = vmatprep.subr.mxu0 0.0
  %3031 = vmatpush2.msra.mxu0 0.0
  %3032 = vmatprep.subr.mxu0 0.0
  %3033 = vmatpush2.msra.mxu0 0.0
  %3034 = vmatprep.subr.mxu0 0.0
  %3035 = vmatpush2.msra.mxu0 0.0
  %3036 = vmatprep.subr.mxu0 0.0
  %3037 = vmatpush2.msra.mxu0 0.0
  %3038 = vmatprep.subr.mxu0 0.0
  %3039 = vmatpush2.msra.mxu0 0.0
  %3040 = vmatprep.subr.mxu0 0.0
  %3041 = vmatpush2.msra.mxu0 0.0
  %3042 = vmatprep.subr.mxu0 0.0
  %3043 = vmatpush2.msra.mxu0 0.0
  %3044 = vmatprep.subr.mxu0 0.0
  %3045 = vmatpush2.msra.mxu0 0.0
  %3046 = vmatprep.subr.mxu0 0.0
  %3047 = vmatpush2.msra.mxu0 0.0
  %3048 = vmatprep.subr.mxu0 0.0
  %3049 = vmatpush2.msra.mxu0 0.0
  %3050 = vmatprep.mubr.f32.mxu0 0.0
  %3051 = vmatmul.mubr.f32.gmra.mxu0 %v2981
  %v3052 = vpop.f32.mrf.mxu0
  %v3053 = vadd.f32 0.0, %v3052
  %v3054 = vpop.f32.mrf.mxu0
  %3055 = vmatprep.mubr.f32.mxu0 0.0
  %3056 = vmatmul.mubr.f32.gmra.mxu0 %v2984
  %v3057 = vpop.f32.mrf.mxu0
  %v3058 = vadd.f32 0.0, %v3057
  %v3059 = vpop.f32.mrf.mxu0
  %3060 = vdwg.mxu0
  %v3061 = vadd.f32 %v2969, %v3053
  %v3062 = vadd.f32 %v2974, %v3058
  %s3063 = scalar_lea.vmem %s55, 64
  %v3064 = vld [vmem:[%s3063] sm:$0xff]
  %v3065 = vld [vmem:[%s3063 + $0x8] sm:$0xff]
  %3067 = vset.pattern.permute.xlu0 0
  %3068 = vperm.xlu0 %3067, %v3064
  %v3069 = vpop.permute.xlu0 %3068
  %3072 = vset.pattern.permute.xlu0 0
  %3073 = vperm.xlu0 %3072, %v3065
  %v3074 = vpop.permute.xlu0 %3073
  %v3076 = vadd.f32 %v3061, %v3069
  %v3077 = vadd.f32 %v3062, %v3074
  %v3078 = vadd.f32 %v3076, %v2807
  %v3079 = vadd.f32 %v3077, %v2808
  %v3080 = vxor.u32 %v3078, 2147483648
  %v3081 = vmul.f32 %v3080, 1.442695
  %v3082 = vpow.pop %v3081
  %v3083 = vadd.f32 %v3082, 1.0
  %v3084 = vrcp.pop %v3083
  %v3085 = vmul.f32 1.0, %v3084
  %v3086 = vtanh.pop %v3079
  %v3087 = vmul.f32 %v3085, %v3086
  %s3088 = scalar_lea.vmem %s57, 64
  %v3089 = vld [vmem:[%s3088] sm:$0xff]
  %v3090 = vld [vmem:[%s3088 + $0x8] sm:$0xff]
  %s3091 = scalar_lea.vmem %s59, 64
  %v3092 = vld [vmem:[%s3091] sm:$0xff]
  %v3093 = vld [vmem:[%s3091 + $0x8] sm:$0xff]
  %3095 = vset.pattern.permute.xlu0 0
  %3096 = vperm.xlu0 %3095, %v3092
  %v3097 = vpop.permute.xlu0 %3096
  %3100 = vset.pattern.permute.xlu0 0
  %3101 = vperm.xlu0 %3100, %v3093
  %v3102 = vpop.permute.xlu0 %3101
  %v3105 = vsel %vm1097, %v3089, 0
  %v3108 = vsel %vm1097, %v3090, 0
  %3110 = vmatprep.subr.mxu0 0.0
  %3111 = vmatpush1.msra.mxu0 0.0
  %3112 = vmatprep.subr.mxu0 0.0
  %3113 = vmatpush1.msra.mxu0 0.0
  %3114 = vmatprep.subr.mxu0 0.0
  %3115 = vmatpush1.msra.mxu0 0.0
  %3116 = vmatprep.subr.mxu0 0.0
  %3117 = vmatpush1.msra.mxu0 0.0
  %3118 = vmatprep.subr.mxu0 0.0
  %3119 = vmatpush1.msra.mxu0 0.0
  %3120 = vmatprep.subr.mxu0 0.0
  %3121 = vmatpush1.msra.mxu0 0.0
  %3122 = vmatprep.subr.mxu0 0.0
  %3123 = vmatpush1.msra.mxu0 0.0
  %3124 = vmatprep.subr.mxu0 0.0
  %3125 = vmatpush1.msra.mxu0 0.0
  %3126 = vmatprep.subr.mxu0 0.0
  %3127 = vmatpush1.msra.mxu0 0.0
  %3128 = vmatprep.subr.mxu0 0.0
  %3129 = vmatpush1.msra.mxu0 0.0
  %3130 = vmatprep.subr.mxu0 0.0
  %3131 = vmatpush1.msra.mxu0 0.0
  %3132 = vmatprep.subr.mxu0 0.0
  %3133 = vmatpush1.msra.mxu0 0.0
  %3134 = vmatprep.subr.mxu0 0.0
  %3135 = vmatpush1.msra.mxu0 0.0
  %3136 = vmatprep.subr.mxu0 0.0
  %3137 = vmatpush1.msra.mxu0 0.0
  %3138 = vmatprep.subr.mxu0 0.0
  %3139 = vmatpush1.msra.mxu0 0.0
  %3140 = vmatprep.subr.mxu0 0.0
  %3141 = vmatpush1.msra.mxu0 %v3087
  %3142 = vmatprep.subr.mxu0 0.0
  %3143 = vmatpush2.msra.mxu0 0.0
  %3144 = vmatprep.subr.mxu0 0.0
  %3145 = vmatpush2.msra.mxu0 0.0
  %3146 = vmatprep.subr.mxu0 0.0
  %3147 = vmatpush2.msra.mxu0 0.0
  %3148 = vmatprep.subr.mxu0 0.0
  %3149 = vmatpush2.msra.mxu0 0.0
  %3150 = vmatprep.subr.mxu0 0.0
  %3151 = vmatpush2.msra.mxu0 0.0
  %3152 = vmatprep.subr.mxu0 0.0
  %3153 = vmatpush2.msra.mxu0 0.0
  %3154 = vmatprep.subr.mxu0 0.0
  %3155 = vmatpush2.msra.mxu0 0.0
  %3156 = vmatprep.subr.mxu0 0.0
  %3157 = vmatpush2.msra.mxu0 0.0
  %3158 = vmatprep.subr.mxu0 0.0
  %3159 = vmatpush2.msra.mxu0 0.0
  %3160 = vmatprep.subr.mxu0 0.0
  %3161 = vmatpush2.msra.mxu0 0.0
  %3162 = vmatprep.subr.mxu0 0.0
  %3163 = vmatpush2.msra.mxu0 0.0
  %3164 = vmatprep.subr.mxu0 0.0
  %3165 = vmatpush2.msra.mxu0 0.0
  %3166 = vmatprep.subr.mxu0 0.0
  %3167 = vmatpush2.msra.mxu0 0.0
  %3168 = vmatprep.subr.mxu0 0.0
  %3169 = vmatpush2.msra.mxu0 0.0
  %3170 = vmatprep.subr.mxu0 0.0
  %3171 = vmatpush2.msra.mxu0 0.0
  %3172 = vmatprep.subr.mxu0 0.0
  %3173 = vmatpush2.msra.mxu0 0.0
  %3174 = vmatprep.mubr.f32.mxu0 0.0
  %3175 = vmatmul.mubr.f32.gmra.mxu0 %v3105
  %v3176 = vpop.f32.mrf.mxu0
  %v3177 = vadd.f32 %v3097, %v3176
  %v3178 = vpop.f32.mrf.mxu0
  %3179 = vmatprep.mubr.f32.mxu0 0.0
  %3180 = vmatmul.mubr.f32.gmra.mxu0 %v3108
  %v3181 = vpop.f32.mrf.mxu0
  %v3182 = vadd.f32 %v3102, %v3181
  %v3183 = vpop.f32.mrf.mxu0
  %3184 = vdwg.mxu0
  %v3185 = vadd.f32 %v2760, %v3177
  %v3186 = vmul.f32 %v3185, 0.70710677
  %v3187 = vadd.f32 %v2761, %v3182
  %3189 = vset.pattern.permute.xlu0 0
  %3190 = vperm.xlu0 %3189, %v381
  %v3191 = vpop.permute.xlu0 %3190
  %v3193 = vadd.f32 %v3186, %v3191
  %3195 = vrot.lane.b32.xlu0 %v3193, 2
  %v3196 = vpop.permute.xlu0 %3195
  %v3198 = vsel %vm1479, 0.0, %v3196
  %v3199 = vsel %vm1486, %v3198, 0.0
  %3200 = vrot.lane.b32.xlu0 %v3193, 126
  %v3201 = vpop.permute.xlu0 %3200
  %v3203 = vsel %vm1492, %v3201, 0.0
  %v3204 = vsel %vm1499, %v3203, 0.0
  %s3205 = scalar_lea.vmem %s49, 80
  %v3206 = vld [vmem:[%s3205] sm:$0xff]
  %v3207 = vld [vmem:[%s3205 + $0x8] sm:$0xff]
  %3209 = vset.pattern.permute.xlu0 0
  %3210 = vperm.xlu0 %3209, %v3206
  %v3211 = vpop.permute.xlu0 %3210
  %3214 = vset.pattern.permute.xlu0 0
  %3215 = vperm.xlu0 %3214, %v3207
  %v3216 = vpop.permute.xlu0 %3215
  %v3218 = vmul.f32 %v3211, %v1075
  %v3219 = vmul.f32 %v3216, %v1075
  %s3220 = scalar_lea.vmem %s51, 80
  %v3221 = vld [vmem:[%s3220] sm:$0xff]
  %v3222 = vld [vmem:[%s3220 + $0x8] sm:$0xff]
  %3224 = vset.pattern.permute.xlu0 0
  %3225 = vperm.xlu0 %3224, %v3221
  %v3226 = vpop.permute.xlu0 %3225
  %3229 = vset.pattern.permute.xlu0 0
  %3230 = vperm.xlu0 %3229, %v3222
  %v3231 = vpop.permute.xlu0 %3230
  %v3233 = vadd.f32 %v3218, %v3226
  %v3234 = vadd.f32 %v3219, %v3231
  %s3235 = scalar_lea.vmem %s53, 240
  %v3236 = vld [vmem:[%s3235] sm:$0xff]
  %v3237 = vld [vmem:[%s3235 + $0x8] sm:$0xff]
  %s3238 = scalar_lea.vmem %s53, 256
  %v3239 = vld [vmem:[%s3238] sm:$0xff]
  %v3240 = vld [vmem:[%s3238 + $0x8] sm:$0xff]
  %v3242 = vsel %vm1097, %v3239, 0
  %v3245 = vsel %vm1097, %v3240, 0
  %3247 = vmatprep.subr.mxu0 0.0
  %3248 = vmatpush1.msra.mxu0 0.0
  %3249 = vmatprep.subr.mxu0 0.0
  %3250 = vmatpush1.msra.mxu0 0.0
  %3251 = vmatprep.subr.mxu0 0.0
  %3252 = vmatpush1.msra.mxu0 0.0
  %3253 = vmatprep.subr.mxu0 0.0
  %3254 = vmatpush1.msra.mxu0 0.0
  %3255 = vmatprep.subr.mxu0 0.0
  %3256 = vmatpush1.msra.mxu0 0.0
  %3257 = vmatprep.subr.mxu0 0.0
  %3258 = vmatpush1.msra.mxu0 0.0
  %3259 = vmatprep.subr.mxu0 0.0
  %3260 = vmatpush1.msra.mxu0 0.0
  %3261 = vmatprep.subr.mxu0 0.0
  %3262 = vmatpush1.msra.mxu0 0.0
  %3263 = vmatprep.subr.mxu0 0.0
  %3264 = vmatpush1.msra.mxu0 0.0
  %3265 = vmatprep.subr.mxu0 0.0
  %3266 = vmatpush1.msra.mxu0 0.0
  %3267 = vmatprep.subr.mxu0 0.0
  %3268 = vmatpush1.msra.mxu0 0.0
  %3269 = vmatprep.subr.mxu0 0.0
  %3270 = vmatpush1.msra.mxu0 0.0
  %3271 = vmatprep.subr.mxu0 0.0
  %3272 = vmatpush1.msra.mxu0 0.0
  %3273 = vmatprep.subr.mxu0 0.0
  %3274 = vmatpush1.msra.mxu0 0.0
  %3275 = vmatprep.subr.mxu0 0.0
  %3276 = vmatpush1.msra.mxu0 0.0
  %3277 = vmatprep.subr.mxu0 0.0
  %3278 = vmatpush1.msra.mxu0 %v3193
  %3279 = vmatprep.subr.mxu0 0.0
  %3280 = vmatpush2.msra.mxu0 0.0
  %3281 = vmatprep.subr.mxu0 0.0
  %3282 = vmatpush2.msra.mxu0 0.0
  %3283 = vmatprep.subr.mxu0 0.0
  %3284 = vmatpush2.msra.mxu0 0.0
  %3285 = vmatprep.subr.mxu0 0.0
  %3286 = vmatpush2.msra.mxu0 0.0
  %3287 = vmatprep.subr.mxu0 0.0
  %3288 = vmatpush2.msra.mxu0 0.0
  %3289 = vmatprep.subr.mxu0 0.0
  %3290 = vmatpush2.msra.mxu0 0.0
  %3291 = vmatprep.subr.mxu0 0.0
  %3292 = vmatpush2.msra.mxu0 0.0
  %3293 = vmatprep.subr.mxu0 0.0
  %3294 = vmatpush2.msra.mxu0 0.0
  %3295 = vmatprep.subr.mxu0 0.0
  %3296 = vmatpush2.msra.mxu0 0.0
  %3297 = vmatprep.subr.mxu0 0.0
  %3298 = vmatpush2.msra.mxu0 0.0
  %3299 = vmatprep.subr.mxu0 0.0
  %3300 = vmatpush2.msra.mxu0 0.0
  %3301 = vmatprep.subr.mxu0 0.0
  %3302 = vmatpush2.msra.mxu0 0.0
  %3303 = vmatprep.subr.mxu0 0.0
  %3304 = vmatpush2.msra.mxu0 0.0
  %3305 = vmatprep.subr.mxu0 0.0
  %3306 = vmatpush2.msra.mxu0 0.0
  %3307 = vmatprep.subr.mxu0 0.0
  %3308 = vmatpush2.msra.mxu0 0.0
  %3309 = vmatprep.subr.mxu0 0.0
  %3310 = vmatpush2.msra.mxu0 0.0
  %3311 = vmatprep.mubr.f32.mxu0 0.0
  %3312 = vmatmul.mubr.f32.gmra.mxu0 %v3242
  %v3313 = vpop.f32.mrf.mxu0
  %v3314 = vadd.f32 0.0, %v3313
  %v3315 = vpop.f32.mrf.mxu0
  %3316 = vmatprep.mubr.f32.mxu0 0.0
  %3317 = vmatmul.mubr.f32.gmra.mxu0 %v3245
  %v3318 = vpop.f32.mrf.mxu0
  %v3319 = vadd.f32 0.0, %v3318
  %v3320 = vpop.f32.mrf.mxu0
  %3321 = vdwg.mxu0
  %v3323 = vsel %vm1097, %v3236, 0
  %v3326 = vsel %vm1097, %v3237, 0
  %3328 = vmatprep.subr.mxu0 0.0
  %3329 = vmatpush1.msra.mxu0 0.0
  %3330 = vmatprep.subr.mxu0 0.0
  %3331 = vmatpush1.msra.mxu0 0.0
  %3332 = vmatprep.subr.mxu0 0.0
  %3333 = vmatpush1.msra.mxu0 0.0
  %3334 = vmatprep.subr.mxu0 0.0
  %3335 = vmatpush1.msra.mxu0 0.0
  %3336 = vmatprep.subr.mxu0 0.0
  %3337 = vmatpush1.msra.mxu0 0.0
  %3338 = vmatprep.subr.mxu0 0.0
  %3339 = vmatpush1.msra.mxu0 0.0
  %3340 = vmatprep.subr.mxu0 0.0
  %3341 = vmatpush1.msra.mxu0 0.0
  %3342 = vmatprep.subr.mxu0 0.0
  %3343 = vmatpush1.msra.mxu0 0.0
  %3344 = vmatprep.subr.mxu0 0.0
  %3345 = vmatpush1.msra.mxu0 0.0
  %3346 = vmatprep.subr.mxu0 0.0
  %3347 = vmatpush1.msra.mxu0 0.0
  %3348 = vmatprep.subr.mxu0 0.0
  %3349 = vmatpush1.msra.mxu0 0.0
  %3350 = vmatprep.subr.mxu0 0.0
  %3351 = vmatpush1.msra.mxu0 0.0
  %3352 = vmatprep.subr.mxu0 0.0
  %3353 = vmatpush1.msra.mxu0 0.0
  %3354 = vmatprep.subr.mxu0 0.0
  %3355 = vmatpush1.msra.mxu0 0.0
  %3356 = vmatprep.subr.mxu0 0.0
  %3357 = vmatpush1.msra.mxu0 0.0
  %3358 = vmatprep.subr.mxu0 0.0
  %3359 = vmatpush1.msra.mxu0 %v3199
  %3360 = vmatprep.subr.mxu0 0.0
  %3361 = vmatpush2.msra.mxu0 0.0
  %3362 = vmatprep.subr.mxu0 0.0
  %3363 = vmatpush2.msra.mxu0 0.0
  %3364 = vmatprep.subr.mxu0 0.0
  %3365 = vmatpush2.msra.mxu0 0.0
  %3366 = vmatprep.subr.mxu0 0.0
  %3367 = vmatpush2.msra.mxu0 0.0
  %3368 = vmatprep.subr.mxu0 0.0
  %3369 = vmatpush2.msra.mxu0 0.0
  %3370 = vmatprep.subr.mxu0 0.0
  %3371 = vmatpush2.msra.mxu0 0.0
  %3372 = vmatprep.subr.mxu0 0.0
  %3373 = vmatpush2.msra.mxu0 0.0
  %3374 = vmatprep.subr.mxu0 0.0
  %3375 = vmatpush2.msra.mxu0 0.0
  %3376 = vmatprep.subr.mxu0 0.0
  %3377 = vmatpush2.msra.mxu0 0.0
  %3378 = vmatprep.subr.mxu0 0.0
  %3379 = vmatpush2.msra.mxu0 0.0
  %3380 = vmatprep.subr.mxu0 0.0
  %3381 = vmatpush2.msra.mxu0 0.0
  %3382 = vmatprep.subr.mxu0 0.0
  %3383 = vmatpush2.msra.mxu0 0.0
  %3384 = vmatprep.subr.mxu0 0.0
  %3385 = vmatpush2.msra.mxu0 0.0
  %3386 = vmatprep.subr.mxu0 0.0
  %3387 = vmatpush2.msra.mxu0 0.0
  %3388 = vmatprep.subr.mxu0 0.0
  %3389 = vmatpush2.msra.mxu0 0.0
  %3390 = vmatprep.subr.mxu0 0.0
  %3391 = vmatpush2.msra.mxu0 0.0
  %3392 = vmatprep.mubr.f32.mxu0 0.0
  %3393 = vmatmul.mubr.f32.gmra.mxu0 %v3323
  %v3394 = vpop.f32.mrf.mxu0
  %v3395 = vadd.f32 %v3314, %v3394
  %v3396 = vpop.f32.mrf.mxu0
  %3397 = vmatprep.mubr.f32.mxu0 0.0
  %3398 = vmatmul.mubr.f32.gmra.mxu0 %v3326
  %v3399 = vpop.f32.mrf.mxu0
  %v3400 = vadd.f32 %v3319, %v3399
  %v3401 = vpop.f32.mrf.mxu0
  %3402 = vdwg.mxu0
  %s3403 = scalar_lea.vmem %s53, 272
  %v3404 = vld [vmem:[%s3403] sm:$0xff]
  %v3405 = vld [vmem:[%s3403 + $0x8] sm:$0xff]
  %v3407 = vsel %vm1097, %v3404, 0
  %v3410 = vsel %vm1097, %v3405, 0
  %3412 = vmatprep.subr.mxu0 0.0
  %3413 = vmatpush1.msra.mxu0 0.0
  %3414 = vmatprep.subr.mxu0 0.0
  %3415 = vmatpush1.msra.mxu0 0.0
  %3416 = vmatprep.subr.mxu0 0.0
  %3417 = vmatpush1.msra.mxu0 0.0
  %3418 = vmatprep.subr.mxu0 0.0
  %3419 = vmatpush1.msra.mxu0 0.0
  %3420 = vmatprep.subr.mxu0 0.0
  %3421 = vmatpush1.msra.mxu0 0.0
  %3422 = vmatprep.subr.mxu0 0.0
  %3423 = vmatpush1.msra.mxu0 0.0
  %3424 = vmatprep.subr.mxu0 0.0
  %3425 = vmatpush1.msra.mxu0 0.0
  %3426 = vmatprep.subr.mxu0 0.0
  %3427 = vmatpush1.msra.mxu0 0.0
  %3428 = vmatprep.subr.mxu0 0.0
  %3429 = vmatpush1.msra.mxu0 0.0
  %3430 = vmatprep.subr.mxu0 0.0
  %3431 = vmatpush1.msra.mxu0 0.0
  %3432 = vmatprep.subr.mxu0 0.0
  %3433 = vmatpush1.msra.mxu0 0.0
  %3434 = vmatprep.subr.mxu0 0.0
  %3435 = vmatpush1.msra.mxu0 0.0
  %3436 = vmatprep.subr.mxu0 0.0
  %3437 = vmatpush1.msra.mxu0 0.0
  %3438 = vmatprep.subr.mxu0 0.0
  %3439 = vmatpush1.msra.mxu0 0.0
  %3440 = vmatprep.subr.mxu0 0.0
  %3441 = vmatpush1.msra.mxu0 0.0
  %3442 = vmatprep.subr.mxu0 0.0
  %3443 = vmatpush1.msra.mxu0 %v3204
  %3444 = vmatprep.subr.mxu0 0.0
  %3445 = vmatpush2.msra.mxu0 0.0
  %3446 = vmatprep.subr.mxu0 0.0
  %3447 = vmatpush2.msra.mxu0 0.0
  %3448 = vmatprep.subr.mxu0 0.0
  %3449 = vmatpush2.msra.mxu0 0.0
  %3450 = vmatprep.subr.mxu0 0.0
  %3451 = vmatpush2.msra.mxu0 0.0
  %3452 = vmatprep.subr.mxu0 0.0
  %3453 = vmatpush2.msra.mxu0 0.0
  %3454 = vmatprep.subr.mxu0 0.0
  %3455 = vmatpush2.msra.mxu0 0.0
  %3456 = vmatprep.subr.mxu0 0.0
  %3457 = vmatpush2.msra.mxu0 0.0
  %3458 = vmatprep.subr.mxu0 0.0
  %3459 = vmatpush2.msra.mxu0 0.0
  %3460 = vmatprep.subr.mxu0 0.0
  %3461 = vmatpush2.msra.mxu0 0.0
  %3462 = vmatprep.subr.mxu0 0.0
  %3463 = vmatpush2.msra.mxu0 0.0
  %3464 = vmatprep.subr.mxu0 0.0
  %3465 = vmatpush2.msra.mxu0 0.0
  %3466 = vmatprep.subr.mxu0 0.0
  %3467 = vmatpush2.msra.mxu0 0.0
  %3468 = vmatprep.subr.mxu0 0.0
  %3469 = vmatpush2.msra.mxu0 0.0
  %3470 = vmatprep.subr.mxu0 0.0
  %3471 = vmatpush2.msra.mxu0 0.0
  %3472 = vmatprep.subr.mxu0 0.0
  %3473 = vmatpush2.msra.mxu0 0.0
  %3474 = vmatprep.subr.mxu0 0.0
  %3475 = vmatpush2.msra.mxu0 0.0
  %3476 = vmatprep.mubr.f32.mxu0 0.0
  %3477 = vmatmul.mubr.f32.gmra.mxu0 %v3407
  %v3478 = vpop.f32.mrf.mxu0
  %v3479 = vadd.f32 0.0, %v3478
  %v3480 = vpop.f32.mrf.mxu0
  %3481 = vmatprep.mubr.f32.mxu0 0.0
  %3482 = vmatmul.mubr.f32.gmra.mxu0 %v3410
  %v3483 = vpop.f32.mrf.mxu0
  %v3484 = vadd.f32 0.0, %v3483
  %v3485 = vpop.f32.mrf.mxu0
  %3486 = vdwg.mxu0
  %v3487 = vadd.f32 %v3395, %v3479
  %v3488 = vadd.f32 %v3400, %v3484
  %s3489 = scalar_lea.vmem %s55, 80
  %v3490 = vld [vmem:[%s3489] sm:$0xff]
  %v3491 = vld [vmem:[%s3489 + $0x8] sm:$0xff]
  %3493 = vset.pattern.permute.xlu0 0
  %3494 = vperm.xlu0 %3493, %v3490
  %v3495 = vpop.permute.xlu0 %3494
  %3498 = vset.pattern.permute.xlu0 0
  %3499 = vperm.xlu0 %3498, %v3491
  %v3500 = vpop.permute.xlu0 %3499
  %v3502 = vadd.f32 %v3487, %v3495
  %v3503 = vadd.f32 %v3488, %v3500
  %v3504 = vadd.f32 %v3502, %v3233
  %v3505 = vadd.f32 %v3503, %v3234
  %v3506 = vxor.u32 %v3504, 2147483648
  %v3507 = vmul.f32 %v3506, 1.442695
  %v3508 = vpow.pop %v3507
  %v3509 = vadd.f32 %v3508, 1.0
  %v3510 = vrcp.pop %v3509
  %v3511 = vmul.f32 1.0, %v3510
  %v3512 = vtanh.pop %v3505
  %v3513 = vmul.f32 %v3511, %v3512
  %s3514 = scalar_lea.vmem %s57, 80
  %v3515 = vld [vmem:[%s3514] sm:$0xff]
  %v3516 = vld [vmem:[%s3514 + $0x8] sm:$0xff]
  %s3517 = scalar_lea.vmem %s59, 80
  %v3518 = vld [vmem:[%s3517] sm:$0xff]
  %v3519 = vld [vmem:[%s3517 + $0x8] sm:$0xff]
  %3521 = vset.pattern.permute.xlu0 0
  %3522 = vperm.xlu0 %3521, %v3518
  %v3523 = vpop.permute.xlu0 %3522
  %3526 = vset.pattern.permute.xlu0 0
  %3527 = vperm.xlu0 %3526, %v3519
  %v3528 = vpop.permute.xlu0 %3527
  %v3531 = vsel %vm1097, %v3515, 0
  %v3534 = vsel %vm1097, %v3516, 0
  %3536 = vmatprep.subr.mxu0 0.0
  %3537 = vmatpush1.msra.mxu0 0.0
  %3538 = vmatprep.subr.mxu0 0.0
  %3539 = vmatpush1.msra.mxu0 0.0
  %3540 = vmatprep.subr.mxu0 0.0
  %3541 = vmatpush1.msra.mxu0 0.0
  %3542 = vmatprep.subr.mxu0 0.0
  %3543 = vmatpush1.msra.mxu0 0.0
  %3544 = vmatprep.subr.mxu0 0.0
  %3545 = vmatpush1.msra.mxu0 0.0
  %3546 = vmatprep.subr.mxu0 0.0
  %3547 = vmatpush1.msra.mxu0 0.0
  %3548 = vmatprep.subr.mxu0 0.0
  %3549 = vmatpush1.msra.mxu0 0.0
  %3550 = vmatprep.subr.mxu0 0.0
  %3551 = vmatpush1.msra.mxu0 0.0
  %3552 = vmatprep.subr.mxu0 0.0
  %3553 = vmatpush1.msra.mxu0 0.0
  %3554 = vmatprep.subr.mxu0 0.0
  %3555 = vmatpush1.msra.mxu0 0.0
  %3556 = vmatprep.subr.mxu0 0.0
  %3557 = vmatpush1.msra.mxu0 0.0
  %3558 = vmatprep.subr.mxu0 0.0
  %3559 = vmatpush1.msra.mxu0 0.0
  %3560 = vmatprep.subr.mxu0 0.0
  %3561 = vmatpush1.msra.mxu0 0.0
  %3562 = vmatprep.subr.mxu0 0.0
  %3563 = vmatpush1.msra.mxu0 0.0
  %3564 = vmatprep.subr.mxu0 0.0
  %3565 = vmatpush1.msra.mxu0 0.0
  %3566 = vmatprep.subr.mxu0 0.0
  %3567 = vmatpush1.msra.mxu0 %v3513
  %3568 = vmatprep.subr.mxu0 0.0
  %3569 = vmatpush2.msra.mxu0 0.0
  %3570 = vmatprep.subr.mxu0 0.0
  %3571 = vmatpush2.msra.mxu0 0.0
  %3572 = vmatprep.subr.mxu0 0.0
  %3573 = vmatpush2.msra.mxu0 0.0
  %3574 = vmatprep.subr.mxu0 0.0
  %3575 = vmatpush2.msra.mxu0 0.0
  %3576 = vmatprep.subr.mxu0 0.0
  %3577 = vmatpush2.msra.mxu0 0.0
  %3578 = vmatprep.subr.mxu0 0.0
  %3579 = vmatpush2.msra.mxu0 0.0
  %3580 = vmatprep.subr.mxu0 0.0
  %3581 = vmatpush2.msra.mxu0 0.0
  %3582 = vmatprep.subr.mxu0 0.0
  %3583 = vmatpush2.msra.mxu0 0.0
  %3584 = vmatprep.subr.mxu0 0.0
  %3585 = vmatpush2.msra.mxu0 0.0
  %3586 = vmatprep.subr.mxu0 0.0
  %3587 = vmatpush2.msra.mxu0 0.0
  %3588 = vmatprep.subr.mxu0 0.0
  %3589 = vmatpush2.msra.mxu0 0.0
  %3590 = vmatprep.subr.mxu0 0.0
  %3591 = vmatpush2.msra.mxu0 0.0
  %3592 = vmatprep.subr.mxu0 0.0
  %3593 = vmatpush2.msra.mxu0 0.0
  %3594 = vmatprep.subr.mxu0 0.0
  %3595 = vmatpush2.msra.mxu0 0.0
  %3596 = vmatprep.subr.mxu0 0.0
  %3597 = vmatpush2.msra.mxu0 0.0
  %3598 = vmatprep.subr.mxu0 0.0
  %3599 = vmatpush2.msra.mxu0 0.0
  %3600 = vmatprep.mubr.f32.mxu0 0.0
  %3601 = vmatmul.mubr.f32.gmra.mxu0 %v3531
  %v3602 = vpop.f32.mrf.mxu0
  %v3603 = vadd.f32 %v3523, %v3602
  %v3604 = vpop.f32.mrf.mxu0
  %3605 = vmatprep.mubr.f32.mxu0 0.0
  %3606 = vmatmul.mubr.f32.gmra.mxu0 %v3534
  %v3607 = vpop.f32.mrf.mxu0
  %v3608 = vadd.f32 %v3528, %v3607
  %v3609 = vpop.f32.mrf.mxu0
  %3610 = vdwg.mxu0
  %v3611 = vadd.f32 %v3186, %v3603
  %v3612 = vmul.f32 %v3611, 0.70710677
  %v3613 = vadd.f32 %v3187, %v3608
  %3615 = vset.pattern.permute.xlu0 0
  %3616 = vperm.xlu0 %3615, %v382
  %v3617 = vpop.permute.xlu0 %3616
  %v3619 = vadd.f32 %v3612, %v3617
  %3621 = vrot.lane.b32.xlu0 %v3619, 1
  %v3622 = vpop.permute.xlu0 %3621
  %v3624 = vsel %vm1038, 0.0, %v3622
  %v3625 = vsel %vm1045, %v3624, 0.0
  %3626 = vrot.lane.b32.xlu0 %v3619, 127
  %v3627 = vpop.permute.xlu0 %3626
  %v3629 = vsel %vm1051, %v3627, 0.0
  %v3630 = vsel %vm1058, %v3629, 0.0
  %s3631 = scalar_lea.vmem %s49, 96
  %v3632 = vld [vmem:[%s3631] sm:$0xff]
  %v3633 = vld [vmem:[%s3631 + $0x8] sm:$0xff]
  %3635 = vset.pattern.permute.xlu0 0
  %3636 = vperm.xlu0 %3635, %v3632
  %v3637 = vpop.permute.xlu0 %3636
  %3640 = vset.pattern.permute.xlu0 0
  %3641 = vperm.xlu0 %3640, %v3633
  %v3642 = vpop.permute.xlu0 %3641
  %v3644 = vmul.f32 %v3637, %v1075
  %v3645 = vmul.f32 %v3642, %v1075
  %s3646 = scalar_lea.vmem %s51, 96
  %v3647 = vld [vmem:[%s3646] sm:$0xff]
  %v3648 = vld [vmem:[%s3646 + $0x8] sm:$0xff]
  %3650 = vset.pattern.permute.xlu0 0
  %3651 = vperm.xlu0 %3650, %v3647
  %v3652 = vpop.permute.xlu0 %3651
  %3655 = vset.pattern.permute.xlu0 0
  %3656 = vperm.xlu0 %3655, %v3648
  %v3657 = vpop.permute.xlu0 %3656
  %v3659 = vadd.f32 %v3644, %v3652
  %v3660 = vadd.f32 %v3645, %v3657
  %s3661 = scalar_lea.vmem %s53, 288
  %v3662 = vld [vmem:[%s3661] sm:$0xff]
  %v3663 = vld [vmem:[%s3661 + $0x8] sm:$0xff]
  %s3664 = scalar_lea.vmem %s53, 304
  %v3665 = vld [vmem:[%s3664] sm:$0xff]
  %v3666 = vld [vmem:[%s3664 + $0x8] sm:$0xff]
  %v3668 = vsel %vm1097, %v3665, 0
  %v3671 = vsel %vm1097, %v3666, 0
  %3673 = vmatprep.subr.mxu0 0.0
  %3674 = vmatpush1.msra.mxu0 0.0
  %3675 = vmatprep.subr.mxu0 0.0
  %3676 = vmatpush1.msra.mxu0 0.0
  %3677 = vmatprep.subr.mxu0 0.0
  %3678 = vmatpush1.msra.mxu0 0.0
  %3679 = vmatprep.subr.mxu0 0.0
  %3680 = vmatpush1.msra.mxu0 0.0
  %3681 = vmatprep.subr.mxu0 0.0
  %3682 = vmatpush1.msra.mxu0 0.0
  %3683 = vmatprep.subr.mxu0 0.0
  %3684 = vmatpush1.msra.mxu0 0.0
  %3685 = vmatprep.subr.mxu0 0.0
  %3686 = vmatpush1.msra.mxu0 0.0
  %3687 = vmatprep.subr.mxu0 0.0
  %3688 = vmatpush1.msra.mxu0 0.0
  %3689 = vmatprep.subr.mxu0 0.0
  %3690 = vmatpush1.msra.mxu0 0.0
  %3691 = vmatprep.subr.mxu0 0.0
  %3692 = vmatpush1.msra.mxu0 0.0
  %3693 = vmatprep.subr.mxu0 0.0
  %3694 = vmatpush1.msra.mxu0 0.0
  %3695 = vmatprep.subr.mxu0 0.0
  %3696 = vmatpush1.msra.mxu0 0.0
  %3697 = vmatprep.subr.mxu0 0.0
  %3698 = vmatpush1.msra.mxu0 0.0
  %3699 = vmatprep.subr.mxu0 0.0
  %3700 = vmatpush1.msra.mxu0 0.0
  %3701 = vmatprep.subr.mxu0 0.0
  %3702 = vmatpush1.msra.mxu0 0.0
  %3703 = vmatprep.subr.mxu0 0.0
  %3704 = vmatpush1.msra.mxu0 %v3619
  %3705 = vmatprep.subr.mxu0 0.0
  %3706 = vmatpush2.msra.mxu0 0.0
  %3707 = vmatprep.subr.mxu0 0.0
  %3708 = vmatpush2.msra.mxu0 0.0
  %3709 = vmatprep.subr.mxu0 0.0
  %3710 = vmatpush2.msra.mxu0 0.0
  %3711 = vmatprep.subr.mxu0 0.0
  %3712 = vmatpush2.msra.mxu0 0.0
  %3713 = vmatprep.subr.mxu0 0.0
  %3714 = vmatpush2.msra.mxu0 0.0
  %3715 = vmatprep.subr.mxu0 0.0
  %3716 = vmatpush2.msra.mxu0 0.0
  %3717 = vmatprep.subr.mxu0 0.0
  %3718 = vmatpush2.msra.mxu0 0.0
  %3719 = vmatprep.subr.mxu0 0.0
  %3720 = vmatpush2.msra.mxu0 0.0
  %3721 = vmatprep.subr.mxu0 0.0
  %3722 = vmatpush2.msra.mxu0 0.0
  %3723 = vmatprep.subr.mxu0 0.0
  %3724 = vmatpush2.msra.mxu0 0.0
  %3725 = vmatprep.subr.mxu0 0.0
  %3726 = vmatpush2.msra.mxu0 0.0
  %3727 = vmatprep.subr.mxu0 0.0
  %3728 = vmatpush2.msra.mxu0 0.0
  %3729 = vmatprep.subr.mxu0 0.0
  %3730 = vmatpush2.msra.mxu0 0.0
  %3731 = vmatprep.subr.mxu0 0.0
  %3732 = vmatpush2.msra.mxu0 0.0
  %3733 = vmatprep.subr.mxu0 0.0
  %3734 = vmatpush2.msra.mxu0 0.0
  %3735 = vmatprep.subr.mxu0 0.0
  %3736 = vmatpush2.msra.mxu0 0.0
  %3737 = vmatprep.mubr.f32.mxu0 0.0
  %3738 = vmatmul.mubr.f32.gmra.mxu0 %v3668
  %v3739 = vpop.f32.mrf.mxu0
  %v3740 = vadd.f32 0.0, %v3739
  %v3741 = vpop.f32.mrf.mxu0
  %3742 = vmatprep.mubr.f32.mxu0 0.0
  %3743 = vmatmul.mubr.f32.gmra.mxu0 %v3671
  %v3744 = vpop.f32.mrf.mxu0
  %v3745 = vadd.f32 0.0, %v3744
  %v3746 = vpop.f32.mrf.mxu0
  %3747 = vdwg.mxu0
  %v3749 = vsel %vm1097, %v3662, 0
  %v3752 = vsel %vm1097, %v3663, 0
  %3754 = vmatprep.subr.mxu0 0.0
  %3755 = vmatpush1.msra.mxu0 0.0
  %3756 = vmatprep.subr.mxu0 0.0
  %3757 = vmatpush1.msra.mxu0 0.0
  %3758 = vmatprep.subr.mxu0 0.0
  %3759 = vmatpush1.msra.mxu0 0.0
  %3760 = vmatprep.subr.mxu0 0.0
  %3761 = vmatpush1.msra.mxu0 0.0
  %3762 = vmatprep.subr.mxu0 0.0
  %3763 = vmatpush1.msra.mxu0 0.0
  %3764 = vmatprep.subr.mxu0 0.0
  %3765 = vmatpush1.msra.mxu0 0.0
  %3766 = vmatprep.subr.mxu0 0.0
  %3767 = vmatpush1.msra.mxu0 0.0
  %3768 = vmatprep.subr.mxu0 0.0
  %3769 = vmatpush1.msra.mxu0 0.0
  %3770 = vmatprep.subr.mxu0 0.0
  %3771 = vmatpush1.msra.mxu0 0.0
  %3772 = vmatprep.subr.mxu0 0.0
  %3773 = vmatpush1.msra.mxu0 0.0
  %3774 = vmatprep.subr.mxu0 0.0
  %3775 = vmatpush1.msra.mxu0 0.0
  %3776 = vmatprep.subr.mxu0 0.0
  %3777 = vmatpush1.msra.mxu0 0.0
  %3778 = vmatprep.subr.mxu0 0.0
  %3779 = vmatpush1.msra.mxu0 0.0
  %3780 = vmatprep.subr.mxu0 0.0
  %3781 = vmatpush1.msra.mxu0 0.0
  %3782 = vmatprep.subr.mxu0 0.0
  %3783 = vmatpush1.msra.mxu0 0.0
  %3784 = vmatprep.subr.mxu0 0.0
  %3785 = vmatpush1.msra.mxu0 %v3625
  %3786 = vmatprep.subr.mxu0 0.0
  %3787 = vmatpush2.msra.mxu0 0.0
  %3788 = vmatprep.subr.mxu0 0.0
  %3789 = vmatpush2.msra.mxu0 0.0
  %3790 = vmatprep.subr.mxu0 0.0
  %3791 = vmatpush2.msra.mxu0 0.0
  %3792 = vmatprep.subr.mxu0 0.0
  %3793 = vmatpush2.msra.mxu0 0.0
  %3794 = vmatprep.subr.mxu0 0.0
  %3795 = vmatpush2.msra.mxu0 0.0
  %3796 = vmatprep.subr.mxu0 0.0
  %3797 = vmatpush2.msra.mxu0 0.0
  %3798 = vmatprep.subr.mxu0 0.0
  %3799 = vmatpush2.msra.mxu0 0.0
  %3800 = vmatprep.subr.mxu0 0.0
  %3801 = vmatpush2.msra.mxu0 0.0
  %3802 = vmatprep.subr.mxu0 0.0
  %3803 = vmatpush2.msra.mxu0 0.0
  %3804 = vmatprep.subr.mxu0 0.0
  %3805 = vmatpush2.msra.mxu0 0.0
  %3806 = vmatprep.subr.mxu0 0.0
  %3807 = vmatpush2.msra.mxu0 0.0
  %3808 = vmatprep.subr.mxu0 0.0
  %3809 = vmatpush2.msra.mxu0 0.0
  %3810 = vmatprep.subr.mxu0 0.0
  %3811 = vmatpush2.msra.mxu0 0.0
  %3812 = vmatprep.subr.mxu0 0.0
  %3813 = vmatpush2.msra.mxu0 0.0
  %3814 = vmatprep.subr.mxu0 0.0
  %3815 = vmatpush2.msra.mxu0 0.0
  %3816 = vmatprep.subr.mxu0 0.0
  %3817 = vmatpush2.msra.mxu0 0.0
  %3818 = vmatprep.mubr.f32.mxu0 0.0
  %3819 = vmatmul.mubr.f32.gmra.mxu0 %v3749
  %v3820 = vpop.f32.mrf.mxu0
  %v3821 = vadd.f32 %v3740, %v3820
  %v3822 = vpop.f32.mrf.mxu0
  %3823 = vmatprep.mubr.f32.mxu0 0.0
  %3824 = vmatmul.mubr.f32.gmra.mxu0 %v3752
  %v3825 = vpop.f32.mrf.mxu0
  %v3826 = vadd.f32 %v3745, %v3825
  %v3827 = vpop.f32.mrf.mxu0
  %3828 = vdwg.mxu0
  %s3829 = scalar_lea.vmem %s53, 320
  %v3830 = vld [vmem:[%s3829] sm:$0xff]
  %v3831 = vld [vmem:[%s3829 + $0x8] sm:$0xff]
  %v3833 = vsel %vm1097, %v3830, 0
  %v3836 = vsel %vm1097, %v3831, 0
  %3838 = vmatprep.subr.mxu0 0.0
  %3839 = vmatpush1.msra.mxu0 0.0
  %3840 = vmatprep.subr.mxu0 0.0
  %3841 = vmatpush1.msra.mxu0 0.0
  %3842 = vmatprep.subr.mxu0 0.0
  %3843 = vmatpush1.msra.mxu0 0.0
  %3844 = vmatprep.subr.mxu0 0.0
  %3845 = vmatpush1.msra.mxu0 0.0
  %3846 = vmatprep.subr.mxu0 0.0
  %3847 = vmatpush1.msra.mxu0 0.0
  %3848 = vmatprep.subr.mxu0 0.0
  %3849 = vmatpush1.msra.mxu0 0.0
  %3850 = vmatprep.subr.mxu0 0.0
  %3851 = vmatpush1.msra.mxu0 0.0
  %3852 = vmatprep.subr.mxu0 0.0
  %3853 = vmatpush1.msra.mxu0 0.0
  %3854 = vmatprep.subr.mxu0 0.0
  %3855 = vmatpush1.msra.mxu0 0.0
  %3856 = vmatprep.subr.mxu0 0.0
  %3857 = vmatpush1.msra.mxu0 0.0
  %3858 = vmatprep.subr.mxu0 0.0
  %3859 = vmatpush1.msra.mxu0 0.0
  %3860 = vmatprep.subr.mxu0 0.0
  %3861 = vmatpush1.msra.mxu0 0.0
  %3862 = vmatprep.subr.mxu0 0.0
  %3863 = vmatpush1.msra.mxu0 0.0
  %3864 = vmatprep.subr.mxu0 0.0
  %3865 = vmatpush1.msra.mxu0 0.0
  %3866 = vmatprep.subr.mxu0 0.0
  %3867 = vmatpush1.msra.mxu0 0.0
  %3868 = vmatprep.subr.mxu0 0.0
  %3869 = vmatpush1.msra.mxu0 %v3630
  %3870 = vmatprep.subr.mxu0 0.0
  %3871 = vmatpush2.msra.mxu0 0.0
  %3872 = vmatprep.subr.mxu0 0.0
  %3873 = vmatpush2.msra.mxu0 0.0
  %3874 = vmatprep.subr.mxu0 0.0
  %3875 = vmatpush2.msra.mxu0 0.0
  %3876 = vmatprep.subr.mxu0 0.0
  %3877 = vmatpush2.msra.mxu0 0.0
  %3878 = vmatprep.subr.mxu0 0.0
  %3879 = vmatpush2.msra.mxu0 0.0
  %3880 = vmatprep.subr.mxu0 0.0
  %3881 = vmatpush2.msra.mxu0 0.0
  %3882 = vmatprep.subr.mxu0 0.0
  %3883 = vmatpush2.msra.mxu0 0.0
  %3884 = vmatprep.subr.mxu0 0.0
  %3885 = vmatpush2.msra.mxu0 0.0
  %3886 = vmatprep.subr.mxu0 0.0
  %3887 = vmatpush2.msra.mxu0 0.0
  %3888 = vmatprep.subr.mxu0 0.0
  %3889 = vmatpush2.msra.mxu0 0.0
  %3890 = vmatprep.subr.mxu0 0.0
  %3891 = vmatpush2.msra.mxu0 0.0
  %3892 = vmatprep.subr.mxu0 0.0
  %3893 = vmatpush2.msra.mxu0 0.0
  %3894 = vmatprep.subr.mxu0 0.0
  %3895 = vmatpush2.msra.mxu0 0.0
  %3896 = vmatprep.subr.mxu0 0.0
  %3897 = vmatpush2.msra.mxu0 0.0
  %3898 = vmatprep.subr.mxu0 0.0
  %3899 = vmatpush2.msra.mxu0 0.0
  %3900 = vmatprep.subr.mxu0 0.0
  %3901 = vmatpush2.msra.mxu0 0.0
  %3902 = vmatprep.mubr.f32.mxu0 0.0
  %3903 = vmatmul.mubr.f32.gmra.mxu0 %v3833
  %v3904 = vpop.f32.mrf.mxu0
  %v3905 = vadd.f32 0.0, %v3904
  %v3906 = vpop.f32.mrf.mxu0
  %3907 = vmatprep.mubr.f32.mxu0 0.0
  %3908 = vmatmul.mubr.f32.gmra.mxu0 %v3836
  %v3909 = vpop.f32.mrf.mxu0
  %v3910 = vadd.f32 0.0, %v3909
  %v3911 = vpop.f32.mrf.mxu0
  %3912 = vdwg.mxu0
  %v3913 = vadd.f32 %v3821, %v3905
  %v3914 = vadd.f32 %v3826, %v3910
  %s3915 = scalar_lea.vmem %s55, 96
  %v3916 = vld [vmem:[%s3915] sm:$0xff]
  %v3917 = vld [vmem:[%s3915 + $0x8] sm:$0xff]
  %3919 = vset.pattern.permute.xlu0 0
  %3920 = vperm.xlu0 %3919, %v3916
  %v3921 = vpop.permute.xlu0 %3920
  %3924 = vset.pattern.permute.xlu0 0
  %3925 = vperm.xlu0 %3924, %v3917
  %v3926 = vpop.permute.xlu0 %3925
  %v3928 = vadd.f32 %v3913, %v3921
  %v3929 = vadd.f32 %v3914, %v3926
  %v3930 = vadd.f32 %v3928, %v3659
  %v3931 = vadd.f32 %v3929, %v3660
  %v3932 = vxor.u32 %v3930, 2147483648
  %v3933 = vmul.f32 %v3932, 1.442695
  %v3934 = vpow.pop %v3933
  %v3935 = vadd.f32 %v3934, 1.0
  %v3936 = vrcp.pop %v3935
  %v3937 = vmul.f32 1.0, %v3936
  %v3938 = vtanh.pop %v3931
  %v3939 = vmul.f32 %v3937, %v3938
  %s3940 = scalar_lea.vmem %s57, 96
  %v3941 = vld [vmem:[%s3940] sm:$0xff]
  %v3942 = vld [vmem:[%s3940 + $0x8] sm:$0xff]
  %s3943 = scalar_lea.vmem %s59, 96
  %v3944 = vld [vmem:[%s3943] sm:$0xff]
  %v3945 = vld [vmem:[%s3943 + $0x8] sm:$0xff]
  %3947 = vset.pattern.permute.xlu0 0
  %3948 = vperm.xlu0 %3947, %v3944
  %v3949 = vpop.permute.xlu0 %3948
  %3952 = vset.pattern.permute.xlu0 0
  %3953 = vperm.xlu0 %3952, %v3945
  %v3954 = vpop.permute.xlu0 %3953
  %v3957 = vsel %vm1097, %v3941, 0
  %v3960 = vsel %vm1097, %v3942, 0
  %3962 = vmatprep.subr.mxu0 0.0
  %3963 = vmatpush1.msra.mxu0 0.0
  %3964 = vmatprep.subr.mxu0 0.0
  %3965 = vmatpush1.msra.mxu0 0.0
  %3966 = vmatprep.subr.mxu0 0.0
  %3967 = vmatpush1.msra.mxu0 0.0
  %3968 = vmatprep.subr.mxu0 0.0
  %3969 = vmatpush1.msra.mxu0 0.0
  %3970 = vmatprep.subr.mxu0 0.0
  %3971 = vmatpush1.msra.mxu0 0.0
  %3972 = vmatprep.subr.mxu0 0.0
  %3973 = vmatpush1.msra.mxu0 0.0
  %3974 = vmatprep.subr.mxu0 0.0
  %3975 = vmatpush1.msra.mxu0 0.0
  %3976 = vmatprep.subr.mxu0 0.0
  %3977 = vmatpush1.msra.mxu0 0.0
  %3978 = vmatprep.subr.mxu0 0.0
  %3979 = vmatpush1.msra.mxu0 0.0
  %3980 = vmatprep.subr.mxu0 0.0
  %3981 = vmatpush1.msra.mxu0 0.0
  %3982 = vmatprep.subr.mxu0 0.0
  %3983 = vmatpush1.msra.mxu0 0.0
  %3984 = vmatprep.subr.mxu0 0.0
  %3985 = vmatpush1.msra.mxu0 0.0
  %3986 = vmatprep.subr.mxu0 0.0
  %3987 = vmatpush1.msra.mxu0 0.0
  %3988 = vmatprep.subr.mxu0 0.0
  %3989 = vmatpush1.msra.mxu0 0.0
  %3990 = vmatprep.subr.mxu0 0.0
  %3991 = vmatpush1.msra.mxu0 0.0
  %3992 = vmatprep.subr.mxu0 0.0
  %3993 = vmatpush1.msra.mxu0 %v3939
  %3994 = vmatprep.subr.mxu0 0.0
  %3995 = vmatpush2.msra.mxu0 0.0
  %3996 = vmatprep.subr.mxu0 0.0
  %3997 = vmatpush2.msra.mxu0 0.0
  %3998 = vmatprep.subr.mxu0 0.0
  %3999 = vmatpush2.msra.mxu0 0.0
  %4000 = vmatprep.subr.mxu0 0.0
  %4001 = vmatpush2.msra.mxu0 0.0
  %4002 = vmatprep.subr.mxu0 0.0
  %4003 = vmatpush2.msra.mxu0 0.0
  %4004 = vmatprep.subr.mxu0 0.0
  %4005 = vmatpush2.msra.mxu0 0.0
  %4006 = vmatprep.subr.mxu0 0.0
  %4007 = vmatpush2.msra.mxu0 0.0
  %4008 = vmatprep.subr.mxu0 0.0
  %4009 = vmatpush2.msra.mxu0 0.0
  %4010 = vmatprep.subr.mxu0 0.0
  %4011 = vmatpush2.msra.mxu0 0.0
  %4012 = vmatprep.subr.mxu0 0.0
  %4013 = vmatpush2.msra.mxu0 0.0
  %4014 = vmatprep.subr.mxu0 0.0
  %4015 = vmatpush2.msra.mxu0 0.0
  %4016 = vmatprep.subr.mxu0 0.0
  %4017 = vmatpush2.msra.mxu0 0.0
  %4018 = vmatprep.subr.mxu0 0.0
  %4019 = vmatpush2.msra.mxu0 0.0
  %4020 = vmatprep.subr.mxu0 0.0
  %4021 = vmatpush2.msra.mxu0 0.0
  %4022 = vmatprep.subr.mxu0 0.0
  %4023 = vmatpush2.msra.mxu0 0.0
  %4024 = vmatprep.subr.mxu0 0.0
  %4025 = vmatpush2.msra.mxu0 0.0
  %4026 = vmatprep.mubr.f32.mxu0 0.0
  %4027 = vmatmul.mubr.f32.gmra.mxu0 %v3957
  %v4028 = vpop.f32.mrf.mxu0
  %v4029 = vadd.f32 %v3949, %v4028
  %v4030 = vpop.f32.mrf.mxu0
  %4031 = vmatprep.mubr.f32.mxu0 0.0
  %4032 = vmatmul.mubr.f32.gmra.mxu0 %v3960
  %v4033 = vpop.f32.mrf.mxu0
  %v4034 = vadd.f32 %v3954, %v4033
  %v4035 = vpop.f32.mrf.mxu0
  %4036 = vdwg.mxu0
  %v4037 = vadd.f32 %v3612, %v4029
  %v4038 = vmul.f32 %v4037, 0.70710677
  %v4039 = vadd.f32 %v3613, %v4034
  %4041 = vset.pattern.permute.xlu0 0
  %4042 = vperm.xlu0 %4041, %v383
  %v4043 = vpop.permute.xlu0 %4042
  %v4045 = vadd.f32 %v4038, %v4043
  %4047 = vrot.lane.b32.xlu0 %v4045, 2
  %v4048 = vpop.permute.xlu0 %4047
  %v4050 = vsel %vm1479, 0.0, %v4048
  %v4051 = vsel %vm1486, %v4050, 0.0
  %4052 = vrot.lane.b32.xlu0 %v4045, 126
  %v4053 = vpop.permute.xlu0 %4052
  %v4055 = vsel %vm1492, %v4053, 0.0
  %v4056 = vsel %vm1499, %v4055, 0.0
  %s4057 = scalar_lea.vmem %s49, 112
  %v4058 = vld [vmem:[%s4057] sm:$0xff]
  %v4059 = vld [vmem:[%s4057 + $0x8] sm:$0xff]
  %4061 = vset.pattern.permute.xlu0 0
  %4062 = vperm.xlu0 %4061, %v4058
  %v4063 = vpop.permute.xlu0 %4062
  %4066 = vset.pattern.permute.xlu0 0
  %4067 = vperm.xlu0 %4066, %v4059
  %v4068 = vpop.permute.xlu0 %4067
  %v4070 = vmul.f32 %v4063, %v1075
  %v4071 = vmul.f32 %v4068, %v1075
  %s4072 = scalar_lea.vmem %s51, 112
  %v4073 = vld [vmem:[%s4072] sm:$0xff]
  %v4074 = vld [vmem:[%s4072 + $0x8] sm:$0xff]
  %4076 = vset.pattern.permute.xlu0 0
  %4077 = vperm.xlu0 %4076, %v4073
  %v4078 = vpop.permute.xlu0 %4077
  %4081 = vset.pattern.permute.xlu0 0
  %4082 = vperm.xlu0 %4081, %v4074
  %v4083 = vpop.permute.xlu0 %4082
  %v4085 = vadd.f32 %v4070, %v4078
  %v4086 = vadd.f32 %v4071, %v4083
  %s4087 = scalar_lea.vmem %s53, 336
  %v4088 = vld [vmem:[%s4087] sm:$0xff]
  %v4089 = vld [vmem:[%s4087 + $0x8] sm:$0xff]
  %s4090 = scalar_lea.vmem %s53, 352
  %v4091 = vld [vmem:[%s4090] sm:$0xff]
  %v4092 = vld [vmem:[%s4090 + $0x8] sm:$0xff]
  %v4094 = vsel %vm1097, %v4091, 0
  %v4097 = vsel %vm1097, %v4092, 0
  %4099 = vmatprep.subr.mxu0 0.0
  %4100 = vmatpush1.msra.mxu0 0.0
  %4101 = vmatprep.subr.mxu0 0.0
  %4102 = vmatpush1.msra.mxu0 0.0
  %4103 = vmatprep.subr.mxu0 0.0
  %4104 = vmatpush1.msra.mxu0 0.0
  %4105 = vmatprep.subr.mxu0 0.0
  %4106 = vmatpush1.msra.mxu0 0.0
  %4107 = vmatprep.subr.mxu0 0.0
  %4108 = vmatpush1.msra.mxu0 0.0
  %4109 = vmatprep.subr.mxu0 0.0
  %4110 = vmatpush1.msra.mxu0 0.0
  %4111 = vmatprep.subr.mxu0 0.0
  %4112 = vmatpush1.msra.mxu0 0.0
  %4113 = vmatprep.subr.mxu0 0.0
  %4114 = vmatpush1.msra.mxu0 0.0
  %4115 = vmatprep.subr.mxu0 0.0
  %4116 = vmatpush1.msra.mxu0 0.0
  %4117 = vmatprep.subr.mxu0 0.0
  %4118 = vmatpush1.msra.mxu0 0.0
  %4119 = vmatprep.subr.mxu0 0.0
  %4120 = vmatpush1.msra.mxu0 0.0
  %4121 = vmatprep.subr.mxu0 0.0
  %4122 = vmatpush1.msra.mxu0 0.0
  %4123 = vmatprep.subr.mxu0 0.0
  %4124 = vmatpush1.msra.mxu0 0.0
  %4125 = vmatprep.subr.mxu0 0.0
  %4126 = vmatpush1.msra.mxu0 0.0
  %4127 = vmatprep.subr.mxu0 0.0
  %4128 = vmatpush1.msra.mxu0 0.0
  %4129 = vmatprep.subr.mxu0 0.0
  %4130 = vmatpush1.msra.mxu0 %v4045
  %4131 = vmatprep.subr.mxu0 0.0
  %4132 = vmatpush2.msra.mxu0 0.0
  %4133 = vmatprep.subr.mxu0 0.0
  %4134 = vmatpush2.msra.mxu0 0.0
  %4135 = vmatprep.subr.mxu0 0.0
  %4136 = vmatpush2.msra.mxu0 0.0
  %4137 = vmatprep.subr.mxu0 0.0
  %4138 = vmatpush2.msra.mxu0 0.0
  %4139 = vmatprep.subr.mxu0 0.0
  %4140 = vmatpush2.msra.mxu0 0.0
  %4141 = vmatprep.subr.mxu0 0.0
  %4142 = vmatpush2.msra.mxu0 0.0
  %4143 = vmatprep.subr.mxu0 0.0
  %4144 = vmatpush2.msra.mxu0 0.0
  %4145 = vmatprep.subr.mxu0 0.0
  %4146 = vmatpush2.msra.mxu0 0.0
  %4147 = vmatprep.subr.mxu0 0.0
  %4148 = vmatpush2.msra.mxu0 0.0
  %4149 = vmatprep.subr.mxu0 0.0
  %4150 = vmatpush2.msra.mxu0 0.0
  %4151 = vmatprep.subr.mxu0 0.0
  %4152 = vmatpush2.msra.mxu0 0.0
  %4153 = vmatprep.subr.mxu0 0.0
  %4154 = vmatpush2.msra.mxu0 0.0
  %4155 = vmatprep.subr.mxu0 0.0
  %4156 = vmatpush2.msra.mxu0 0.0
  %4157 = vmatprep.subr.mxu0 0.0
  %4158 = vmatpush2.msra.mxu0 0.0
  %4159 = vmatprep.subr.mxu0 0.0
  %4160 = vmatpush2.msra.mxu0 0.0
  %4161 = vmatprep.subr.mxu0 0.0
  %4162 = vmatpush2.msra.mxu0 0.0
  %4163 = vmatprep.mubr.f32.mxu0 0.0
  %4164 = vmatmul.mubr.f32.gmra.mxu0 %v4094
  %v4165 = vpop.f32.mrf.mxu0
  %v4166 = vadd.f32 0.0, %v4165
  %v4167 = vpop.f32.mrf.mxu0
  %4168 = vmatprep.mubr.f32.mxu0 0.0
  %4169 = vmatmul.mubr.f32.gmra.mxu0 %v4097
  %v4170 = vpop.f32.mrf.mxu0
  %v4171 = vadd.f32 0.0, %v4170
  %v4172 = vpop.f32.mrf.mxu0
  %4173 = vdwg.mxu0
  %v4175 = vsel %vm1097, %v4088, 0
  %v4178 = vsel %vm1097, %v4089, 0
  %4180 = vmatprep.subr.mxu0 0.0
  %4181 = vmatpush1.msra.mxu0 0.0
  %4182 = vmatprep.subr.mxu0 0.0
  %4183 = vmatpush1.msra.mxu0 0.0
  %4184 = vmatprep.subr.mxu0 0.0
  %4185 = vmatpush1.msra.mxu0 0.0
  %4186 = vmatprep.subr.mxu0 0.0
  %4187 = vmatpush1.msra.mxu0 0.0
  %4188 = vmatprep.subr.mxu0 0.0
  %4189 = vmatpush1.msra.mxu0 0.0
  %4190 = vmatprep.subr.mxu0 0.0
  %4191 = vmatpush1.msra.mxu0 0.0
  %4192 = vmatprep.subr.mxu0 0.0
  %4193 = vmatpush1.msra.mxu0 0.0
  %4194 = vmatprep.subr.mxu0 0.0
  %4195 = vmatpush1.msra.mxu0 0.0
  %4196 = vmatprep.subr.mxu0 0.0
  %4197 = vmatpush1.msra.mxu0 0.0
  %4198 = vmatprep.subr.mxu0 0.0
  %4199 = vmatpush1.msra.mxu0 0.0
  %4200 = vmatprep.subr.mxu0 0.0
  %4201 = vmatpush1.msra.mxu0 0.0
  %4202 = vmatprep.subr.mxu0 0.0
  %4203 = vmatpush1.msra.mxu0 0.0
  %4204 = vmatprep.subr.mxu0 0.0
  %4205 = vmatpush1.msra.mxu0 0.0
  %4206 = vmatprep.subr.mxu0 0.0
  %4207 = vmatpush1.msra.mxu0 0.0
  %4208 = vmatprep.subr.mxu0 0.0
  %4209 = vmatpush1.msra.mxu0 0.0
  %4210 = vmatprep.subr.mxu0 0.0
  %4211 = vmatpush1.msra.mxu0 %v4051
  %4212 = vmatprep.subr.mxu0 0.0
  %4213 = vmatpush2.msra.mxu0 0.0
  %4214 = vmatprep.subr.mxu0 0.0
  %4215 = vmatpush2.msra.mxu0 0.0
  %4216 = vmatprep.subr.mxu0 0.0
  %4217 = vmatpush2.msra.mxu0 0.0
  %4218 = vmatprep.subr.mxu0 0.0
  %4219 = vmatpush2.msra.mxu0 0.0
  %4220 = vmatprep.subr.mxu0 0.0
  %4221 = vmatpush2.msra.mxu0 0.0
  %4222 = vmatprep.subr.mxu0 0.0
  %4223 = vmatpush2.msra.mxu0 0.0
  %4224 = vmatprep.subr.mxu0 0.0
  %4225 = vmatpush2.msra.mxu0 0.0
  %4226 = vmatprep.subr.mxu0 0.0
  %4227 = vmatpush2.msra.mxu0 0.0
  %4228 = vmatprep.subr.mxu0 0.0
  %4229 = vmatpush2.msra.mxu0 0.0
  %4230 = vmatprep.subr.mxu0 0.0
  %4231 = vmatpush2.msra.mxu0 0.0
  %4232 = vmatprep.subr.mxu0 0.0
  %4233 = vmatpush2.msra.mxu0 0.0
  %4234 = vmatprep.subr.mxu0 0.0
  %4235 = vmatpush2.msra.mxu0 0.0
  %4236 = vmatprep.subr.mxu0 0.0
  %4237 = vmatpush2.msra.mxu0 0.0
  %4238 = vmatprep.subr.mxu0 0.0
  %4239 = vmatpush2.msra.mxu0 0.0
  %4240 = vmatprep.subr.mxu0 0.0
  %4241 = vmatpush2.msra.mxu0 0.0
  %4242 = vmatprep.subr.mxu0 0.0
  %4243 = vmatpush2.msra.mxu0 0.0
  %4244 = vmatprep.mubr.f32.mxu0 0.0
  %4245 = vmatmul.mubr.f32.gmra.mxu0 %v4175
  %v4246 = vpop.f32.mrf.mxu0
  %v4247 = vadd.f32 %v4166, %v4246
  %v4248 = vpop.f32.mrf.mxu0
  %4249 = vmatprep.mubr.f32.mxu0 0.0
  %4250 = vmatmul.mubr.f32.gmra.mxu0 %v4178
  %v4251 = vpop.f32.mrf.mxu0
  %v4252 = vadd.f32 %v4171, %v4251
  %v4253 = vpop.f32.mrf.mxu0
  %4254 = vdwg.mxu0
  %s4255 = scalar_lea.vmem %s53, 368
  %v4256 = vld [vmem:[%s4255] sm:$0xff]
  %v4257 = vld [vmem:[%s4255 + $0x8] sm:$0xff]
  %v4259 = vsel %vm1097, %v4256, 0
  %v4262 = vsel %vm1097, %v4257, 0
  %4264 = vmatprep.subr.mxu0 0.0
  %4265 = vmatpush1.msra.mxu0 0.0
  %4266 = vmatprep.subr.mxu0 0.0
  %4267 = vmatpush1.msra.mxu0 0.0
  %4268 = vmatprep.subr.mxu0 0.0
  %4269 = vmatpush1.msra.mxu0 0.0
  %4270 = vmatprep.subr.mxu0 0.0
  %4271 = vmatpush1.msra.mxu0 0.0
  %4272 = vmatprep.subr.mxu0 0.0
  %4273 = vmatpush1.msra.mxu0 0.0
  %4274 = vmatprep.subr.mxu0 0.0
  %4275 = vmatpush1.msra.mxu0 0.0
  %4276 = vmatprep.subr.mxu0 0.0
  %4277 = vmatpush1.msra.mxu0 0.0
  %4278 = vmatprep.subr.mxu0 0.0
  %4279 = vmatpush1.msra.mxu0 0.0
  %4280 = vmatprep.subr.mxu0 0.0
  %4281 = vmatpush1.msra.mxu0 0.0
  %4282 = vmatprep.subr.mxu0 0.0
  %4283 = vmatpush1.msra.mxu0 0.0
  %4284 = vmatprep.subr.mxu0 0.0
  %4285 = vmatpush1.msra.mxu0 0.0
  %4286 = vmatprep.subr.mxu0 0.0
  %4287 = vmatpush1.msra.mxu0 0.0
  %4288 = vmatprep.subr.mxu0 0.0
  %4289 = vmatpush1.msra.mxu0 0.0
  %4290 = vmatprep.subr.mxu0 0.0
  %4291 = vmatpush1.msra.mxu0 0.0
  %4292 = vmatprep.subr.mxu0 0.0
  %4293 = vmatpush1.msra.mxu0 0.0
  %4294 = vmatprep.subr.mxu0 0.0
  %4295 = vmatpush1.msra.mxu0 %v4056
  %4296 = vmatprep.subr.mxu0 0.0
  %4297 = vmatpush2.msra.mxu0 0.0
  %4298 = vmatprep.subr.mxu0 0.0
  %4299 = vmatpush2.msra.mxu0 0.0
  %4300 = vmatprep.subr.mxu0 0.0
  %4301 = vmatpush2.msra.mxu0 0.0
  %4302 = vmatprep.subr.mxu0 0.0
  %4303 = vmatpush2.msra.mxu0 0.0
  %4304 = vmatprep.subr.mxu0 0.0
  %4305 = vmatpush2.msra.mxu0 0.0
  %4306 = vmatprep.subr.mxu0 0.0
  %4307 = vmatpush2.msra.mxu0 0.0
  %4308 = vmatprep.subr.mxu0 0.0
  %4309 = vmatpush2.msra.mxu0 0.0
  %4310 = vmatprep.subr.mxu0 0.0
  %4311 = vmatpush2.msra.mxu0 0.0
  %4312 = vmatprep.subr.mxu0 0.0
  %4313 = vmatpush2.msra.mxu0 0.0
  %4314 = vmatprep.subr.mxu0 0.0
  %4315 = vmatpush2.msra.mxu0 0.0
  %4316 = vmatprep.subr.mxu0 0.0
  %4317 = vmatpush2.msra.mxu0 0.0
  %4318 = vmatprep.subr.mxu0 0.0
  %4319 = vmatpush2.msra.mxu0 0.0
  %4320 = vmatprep.subr.mxu0 0.0
  %4321 = vmatpush2.msra.mxu0 0.0
  %4322 = vmatprep.subr.mxu0 0.0
  %4323 = vmatpush2.msra.mxu0 0.0
  %4324 = vmatprep.subr.mxu0 0.0
  %4325 = vmatpush2.msra.mxu0 0.0
  %4326 = vmatprep.subr.mxu0 0.0
  %4327 = vmatpush2.msra.mxu0 0.0
  %4328 = vmatprep.mubr.f32.mxu0 0.0
  %4329 = vmatmul.mubr.f32.gmra.mxu0 %v4259
  %v4330 = vpop.f32.mrf.mxu0
  %v4331 = vadd.f32 0.0, %v4330
  %v4332 = vpop.f32.mrf.mxu0
  %4333 = vmatprep.mubr.f32.mxu0 0.0
  %4334 = vmatmul.mubr.f32.gmra.mxu0 %v4262
  %v4335 = vpop.f32.mrf.mxu0
  %v4336 = vadd.f32 0.0, %v4335
  %v4337 = vpop.f32.mrf.mxu0
  %4338 = vdwg.mxu0
  %v4339 = vadd.f32 %v4247, %v4331
  %v4340 = vadd.f32 %v4252, %v4336
  %s4341 = scalar_lea.vmem %s55, 112
  %v4342 = vld [vmem:[%s4341] sm:$0xff]
  %v4343 = vld [vmem:[%s4341 + $0x8] sm:$0xff]
  %4345 = vset.pattern.permute.xlu0 0
  %4346 = vperm.xlu0 %4345, %v4342
  %v4347 = vpop.permute.xlu0 %4346
  %4350 = vset.pattern.permute.xlu0 0
  %4351 = vperm.xlu0 %4350, %v4343
  %v4352 = vpop.permute.xlu0 %4351
  %v4354 = vadd.f32 %v4339, %v4347
  %v4355 = vadd.f32 %v4340, %v4352
  %v4356 = vadd.f32 %v4354, %v4085
  %v4357 = vadd.f32 %v4355, %v4086
  %v4358 = vxor.u32 %v4356, 2147483648
  %v4359 = vmul.f32 %v4358, 1.442695
  %v4360 = vpow.pop %v4359
  %v4361 = vadd.f32 %v4360, 1.0
  %v4362 = vrcp.pop %v4361
  %v4363 = vmul.f32 1.0, %v4362
  %v4364 = vtanh.pop %v4357
  %v4365 = vmul.f32 %v4363, %v4364
  %s4366 = scalar_lea.vmem %s57, 112
  %v4367 = vld [vmem:[%s4366] sm:$0xff]
  %v4368 = vld [vmem:[%s4366 + $0x8] sm:$0xff]
  %s4369 = scalar_lea.vmem %s59, 112
  %v4370 = vld [vmem:[%s4369] sm:$0xff]
  %v4371 = vld [vmem:[%s4369 + $0x8] sm:$0xff]
  %4373 = vset.pattern.permute.xlu0 0
  %4374 = vperm.xlu0 %4373, %v4370
  %v4375 = vpop.permute.xlu0 %4374
  %4377 = vset.pattern.permute.xlu0 0
  %4378 = vperm.xlu0 %4377, %v4371
  %v4379 = vpop.permute.xlu0 %4378
  %v4382 = vsel %vm1097, %v4367, 0
  %v4385 = vsel %vm1097, %v4368, 0
  %4387 = vmatprep.subr.mxu0 0.0
  %4388 = vmatpush1.msra.mxu0 0.0
  %4389 = vmatprep.subr.mxu0 0.0
  %4390 = vmatpush1.msra.mxu0 0.0
  %4391 = vmatprep.subr.mxu0 0.0
  %4392 = vmatpush1.msra.mxu0 0.0
  %4393 = vmatprep.subr.mxu0 0.0
  %4394 = vmatpush1.msra.mxu0 0.0
  %4395 = vmatprep.subr.mxu0 0.0
  %4396 = vmatpush1.msra.mxu0 0.0
  %4397 = vmatprep.subr.mxu0 0.0
  %4398 = vmatpush1.msra.mxu0 0.0
  %4399 = vmatprep.subr.mxu0 0.0
  %4400 = vmatpush1.msra.mxu0 0.0
  %4401 = vmatprep.subr.mxu0 0.0
  %4402 = vmatpush1.msra.mxu0 0.0
  %4403 = vmatprep.subr.mxu0 0.0
  %4404 = vmatpush1.msra.mxu0 0.0
  %4405 = vmatprep.subr.mxu0 0.0
  %4406 = vmatpush1.msra.mxu0 0.0
  %4407 = vmatprep.subr.mxu0 0.0
  %4408 = vmatpush1.msra.mxu0 0.0
  %4409 = vmatprep.subr.mxu0 0.0
  %4410 = vmatpush1.msra.mxu0 0.0
  %4411 = vmatprep.subr.mxu0 0.0
  %4412 = vmatpush1.msra.mxu0 0.0
  %4413 = vmatprep.subr.mxu0 0.0
  %4414 = vmatpush1.msra.mxu0 0.0
  %4415 = vmatprep.subr.mxu0 0.0
  %4416 = vmatpush1.msra.mxu0 0.0
  %4417 = vmatprep.subr.mxu0 0.0
  %4418 = vmatpush1.msra.mxu0 %v4365
  %4419 = vmatprep.subr.mxu0 0.0
  %4420 = vmatpush2.msra.mxu0 0.0
  %4421 = vmatprep.subr.mxu0 0.0
  %4422 = vmatpush2.msra.mxu0 0.0
  %4423 = vmatprep.subr.mxu0 0.0
  %4424 = vmatpush2.msra.mxu0 0.0
  %4425 = vmatprep.subr.mxu0 0.0
  %4426 = vmatpush2.msra.mxu0 0.0
  %4427 = vmatprep.subr.mxu0 0.0
  %4428 = vmatpush2.msra.mxu0 0.0
  %4429 = vmatprep.subr.mxu0 0.0
  %4430 = vmatpush2.msra.mxu0 0.0
  %4431 = vmatprep.subr.mxu0 0.0
  %4432 = vmatpush2.msra.mxu0 0.0
  %4433 = vmatprep.subr.mxu0 0.0
  %4434 = vmatpush2.msra.mxu0 0.0
  %4435 = vmatprep.subr.mxu0 0.0
  %4436 = vmatpush2.msra.mxu0 0.0
  %4437 = vmatprep.subr.mxu0 0.0
  %4438 = vmatpush2.msra.mxu0 0.0
  %4439 = vmatprep.subr.mxu0 0.0
  %4440 = vmatpush2.msra.mxu0 0.0
  %4441 = vmatprep.subr.mxu0 0.0
  %4442 = vmatpush2.msra.mxu0 0.0
  %4443 = vmatprep.subr.mxu0 0.0
  %4444 = vmatpush2.msra.mxu0 0.0
  %4445 = vmatprep.subr.mxu0 0.0
  %4446 = vmatpush2.msra.mxu0 0.0
  %4447 = vmatprep.subr.mxu0 0.0
  %4448 = vmatpush2.msra.mxu0 0.0
  %4449 = vmatprep.subr.mxu0 0.0
  %4450 = vmatpush2.msra.mxu0 0.0
  %4451 = vmatprep.mubr.f32.mxu0 0.0
  %4452 = vmatmul.mubr.f32.gmra.mxu0 %v4382
  %v4453 = vpop.f32.mrf.mxu0
  %v4454 = vpop.f32.mrf.mxu0
  %4455 = vmatprep.mubr.f32.mxu0 0.0
  %4456 = vmatmul.mubr.f32.gmra.mxu0 %v4385
  %v4457 = vpop.f32.mrf.mxu0
  %v4458 = vadd.f32 %v4379, %v4457
  %v4459 = vpop.f32.mrf.mxu0
  %4460 = vdwg.mxu0
  %v4461 = vadd.f32 %v4039, %v4458
  %v4462 = vmul.f32 %v4461, 0.35355338
  %v4463 = vld [vmem:[%s61] sm:$0xff]
  %v4464 = vld [vmem:[%s63] sm:$0xff]
  %4466 = vset.pattern.permute.xlu0 0
  %4467 = vperm.xlu0 %4466, %v4464
  %v4468 = vpop.permute.xlu0 %4467
  %v4471 = vsel %vm1097, %v4463, 0
  %4473 = vmatprep.subr.mxu0 0.0
  %4474 = vmatpush1.msra.mxu0 0.0
  %4475 = vmatprep.subr.mxu0 0.0
  %4476 = vmatpush1.msra.mxu0 0.0
  %4477 = vmatprep.subr.mxu0 0.0
  %4478 = vmatpush1.msra.mxu0 0.0
  %4479 = vmatprep.subr.mxu0 0.0
  %4480 = vmatpush1.msra.mxu0 0.0
  %4481 = vmatprep.subr.mxu0 0.0
  %4482 = vmatpush1.msra.mxu0 0.0
  %4483 = vmatprep.subr.mxu0 0.0
  %4484 = vmatpush1.msra.mxu0 0.0
  %4485 = vmatprep.subr.mxu0 0.0
  %4486 = vmatpush1.msra.mxu0 0.0
  %4487 = vmatprep.subr.mxu0 0.0
  %4488 = vmatpush1.msra.mxu0 0.0
  %4489 = vmatprep.subr.mxu0 0.0
  %4490 = vmatpush1.msra.mxu0 0.0
  %4491 = vmatprep.subr.mxu0 0.0
  %4492 = vmatpush1.msra.mxu0 0.0
  %4493 = vmatprep.subr.mxu0 0.0
  %4494 = vmatpush1.msra.mxu0 0.0
  %4495 = vmatprep.subr.mxu0 0.0
  %4496 = vmatpush1.msra.mxu0 0.0
  %4497 = vmatprep.subr.mxu0 0.0
  %4498 = vmatpush1.msra.mxu0 0.0
  %4499 = vmatprep.subr.mxu0 0.0
  %4500 = vmatpush1.msra.mxu0 0.0
  %4501 = vmatprep.subr.mxu0 0.0
  %4502 = vmatpush1.msra.mxu0 0.0
  %4503 = vmatprep.subr.mxu0 0.0
  %4504 = vmatpush1.msra.mxu0 %v4462
  %4505 = vmatprep.subr.mxu0 0.0
  %4506 = vmatpush2.msra.mxu0 0.0
  %4507 = vmatprep.subr.mxu0 0.0
  %4508 = vmatpush2.msra.mxu0 0.0
  %4509 = vmatprep.subr.mxu0 0.0
  %4510 = vmatpush2.msra.mxu0 0.0
  %4511 = vmatprep.subr.mxu0 0.0
  %4512 = vmatpush2.msra.mxu0 0.0
  %4513 = vmatprep.subr.mxu0 0.0
  %4514 = vmatpush2.msra.mxu0 0.0
  %4515 = vmatprep.subr.mxu0 0.0
  %4516 = vmatpush2.msra.mxu0 0.0
  %4517 = vmatprep.subr.mxu0 0.0
  %4518 = vmatpush2.msra.mxu0 0.0
  %4519 = vmatprep.subr.mxu0 0.0
  %4520 = vmatpush2.msra.mxu0 0.0
  %4521 = vmatprep.subr.mxu0 0.0
  %4522 = vmatpush2.msra.mxu0 0.0
  %4523 = vmatprep.subr.mxu0 0.0
  %4524 = vmatpush2.msra.mxu0 0.0
  %4525 = vmatprep.subr.mxu0 0.0
  %4526 = vmatpush2.msra.mxu0 0.0
  %4527 = vmatprep.subr.mxu0 0.0
  %4528 = vmatpush2.msra.mxu0 0.0
  %4529 = vmatprep.subr.mxu0 0.0
  %4530 = vmatpush2.msra.mxu0 0.0
  %4531 = vmatprep.subr.mxu0 0.0
  %4532 = vmatpush2.msra.mxu0 0.0
  %4533 = vmatprep.subr.mxu0 0.0
  %4534 = vmatpush2.msra.mxu0 0.0
  %4535 = vmatprep.subr.mxu0 0.0
  %4536 = vmatpush2.msra.mxu0 0.0
  %4537 = vmatprep.mubr.f32.mxu0 0.0
  %4538 = vmatmul.mubr.f32.gmra.mxu0 %v4471
  %v4539 = vpop.f32.mrf.mxu0
  %v4540 = vadd.f32 %v4468, %v4539
  %v4541 = vpop.f32.mrf.mxu0
  %4542 = vdwg.mxu0
  %v4543 = vmax.f32 %v4540, 0.0
  %v4544 = vld [vmem:[%s65] sm:$0x1]
  %v4545 = vld [vmem:[#allocation2] sm:$0x1]
  %4547 = vset.pattern.permute.xlu0 0
  %4548 = vperm.xlu0 %4547, %v4545
  %v4549 = vpop.permute.xlu0 %4548
  %v4551 = vlaneseq
  %v4552 = vshrl.u32 %v4551, 7
  %v4553 = vsub.s32 0, %v4552
  %v4554 = vrot.slane %v4549, %v4553
  %v4556 = vsel %vm1097, %v4544, 0
  %4558 = vmatprep.subr.mxu0 0.0
  %4559 = vmatpush1.msra.mxu0 0.0
  %4560 = vmatprep.subr.mxu0 0.0
  %4561 = vmatpush1.msra.mxu0 0.0
  %4562 = vmatprep.subr.mxu0 0.0
  %4563 = vmatpush1.msra.mxu0 0.0
  %4564 = vmatprep.subr.mxu0 0.0
  %4565 = vmatpush1.msra.mxu0 0.0
  %4566 = vmatprep.subr.mxu0 0.0
  %4567 = vmatpush1.msra.mxu0 0.0
  %4568 = vmatprep.subr.mxu0 0.0
  %4569 = vmatpush1.msra.mxu0 0.0
  %4570 = vmatprep.subr.mxu0 0.0
  %4571 = vmatpush1.msra.mxu0 0.0
  %4572 = vmatprep.subr.mxu0 0.0
  %4573 = vmatpush1.msra.mxu0 0.0
  %4574 = vmatprep.subr.mxu0 0.0
  %4575 = vmatpush1.msra.mxu0 0.0
  %4576 = vmatprep.subr.mxu0 0.0
  %4577 = vmatpush1.msra.mxu0 0.0
  %4578 = vmatprep.subr.mxu0 0.0
  %4579 = vmatpush1.msra.mxu0 0.0
  %4580 = vmatprep.subr.mxu0 0.0
  %4581 = vmatpush1.msra.mxu0 0.0
  %4582 = vmatprep.subr.mxu0 0.0
  %4583 = vmatpush1.msra.mxu0 0.0
  %4584 = vmatprep.subr.mxu0 0.0
  %4585 = vmatpush1.msra.mxu0 0.0
  %4586 = vmatprep.subr.mxu0 0.0
  %4587 = vmatpush1.msra.mxu0 0.0
  %4588 = vmatprep.subr.mxu0 0.0
  %4589 = vmatpush1.msra.mxu0 %v4543
  %4590 = vmatprep.subr.mxu0 0.0
  %4591 = vmatpush2.msra.mxu0 0.0
  %4592 = vmatprep.subr.mxu0 0.0
  %4593 = vmatpush2.msra.mxu0 0.0
  %4594 = vmatprep.subr.mxu0 0.0
  %4595 = vmatpush2.msra.mxu0 0.0
  %4596 = vmatprep.subr.mxu0 0.0
  %4597 = vmatpush2.msra.mxu0 0.0
  %4598 = vmatprep.subr.mxu0 0.0
  %4599 = vmatpush2.msra.mxu0 0.0
  %4600 = vmatprep.subr.mxu0 0.0
  %4601 = vmatpush2.msra.mxu0 0.0
  %4602 = vmatprep.subr.mxu0 0.0
  %4603 = vmatpush2.msra.mxu0 0.0
  %4604 = vmatprep.subr.mxu0 0.0
  %4605 = vmatpush2.msra.mxu0 0.0
  %4606 = vmatprep.subr.mxu0 0.0
  %4607 = vmatpush2.msra.mxu0 0.0
  %4608 = vmatprep.subr.mxu0 0.0
  %4609 = vmatpush2.msra.mxu0 0.0
  %4610 = vmatprep.subr.mxu0 0.0
  %4611 = vmatpush2.msra.mxu0 0.0
  %4612 = vmatprep.subr.mxu0 0.0
  %4613 = vmatpush2.msra.mxu0 0.0
  %4614 = vmatprep.subr.mxu0 0.0
  %4615 = vmatpush2.msra.mxu0 0.0
  %4616 = vmatprep.subr.mxu0 0.0
  %4617 = vmatpush2.msra.mxu0 0.0
  %4618 = vmatprep.subr.mxu0 0.0
  %4619 = vmatpush2.msra.mxu0 0.0
  %4620 = vmatprep.subr.mxu0 0.0
  %4621 = vmatpush2.msra.mxu0 0.0
  %4622 = vmatprep.mubr.f32.mxu0 0.0
  %4623 = vmatmul.mubr.f32.gmra.mxu0 %v4556
  %v4624 = vpop.f32.mrf.mxu0
  %v4625 = vadd.f32 %v4554, %v4624
  %v4626 = vpop.f32.mrf.mxu0
  %4627 = vdwg.mxu0
  %4628 = vst [vmem:[%s69] sm:$0x1] %v4625
  // Predicated region
  $region138: #{epsilon_theta_cond_forward.1} parent=0 // pred_check
    _
  $region139: #{epsilon_theta_cond_forward.1} parent=0 // pred_check_branch
    %4630 = sbr.rel (0) target = $region141
  $region140: #{epsilon_theta_cond_forward.1} parent=0 // pred_region
    _
  $region141: #{epsilon_theta_cond_forward.1} parent=0 // pred_fallthru
    _
  // Predicated region
  $region142: #{epsilon_theta_cond_forward.1} parent=0 // pred_check
    _
  $region143: #{epsilon_theta_cond_forward.1} parent=0 // pred_check_branch
    %4632 = sbr.rel (0) target = $region145
  $region144: #{epsilon_theta_cond_forward.1} parent=0 // pred_region
    _
  $region145: #{epsilon_theta_cond_forward.1} parent=0 // pred_fallthru
    _

</llo_original>
